<compile_context>
chip_gen: v6e
topology: v6e:2x2x1
jax: 0.10.0
libtpu: 0.0.40
codegen_flags: <defaults>
</compile_context>

<pallas_src>
import math

import jax
import jax.numpy as jnp
from jax import lax
from jax.experimental import pallas as pl
from jax.experimental.pallas import tpu as pltpu

D_MODEL = 64
D_K = 32
D_V = 32
N_HEADS = 1            # head axis folds into the feature dim exactly when n_heads == 1
QKV_PAD = 128          # fused [Wq|Wk|Wv] (64x96) zero-padded to lane-dense 128
LN_EPS = 1e-5          # nn.LayerNorm default
MASK_FILL = -1e9       # torch masked_fill_ value (-1000000000.0)
SCALE = 1.0 / math.sqrt(D_K)


def _mha_kernel(q_ref, k_ref, v_ref, mask_ref,
                w_qkv_ref, b_qkv_ref, wo_ref, bo_ref,
                gamma_ref, beta_ref, out_ref):
    TB, S, D = q_ref.shape
    M = TB * S

    # Flatten the batch tile to 2-D so the MXU sees one large-M matmul.
    q2 = q_ref[...].reshape(M, D)
    k2 = k_ref[...].reshape(M, D)
    v2 = v_ref[...].reshape(M, D)

    # Fused QKV projection: stack [Q;K;V] rows against the fused, lane-padded
    # (64,128) weight -> single MXU pass, single weight load, single bias add.
    # Row block b only reads its own 32-column slice, so the "wasted" columns
    # never leave the MXU result and the concatenated bias is correct per block.
    qkv_in = jnp.concatenate([q2, k2, v2], axis=0)                    # (3M, D)
    proj = jnp.dot(qkv_in, w_qkv_ref[...],
                   preferred_element_type=jnp.float32) + b_qkv_ref[...]

    q_s = proj[0 * M:1 * M, 0:D_K].reshape(TB, S, D_K)                # Q @ Wq + bq
    k_s = proj[1 * M:2 * M, D_K:2 * D_K].reshape(TB, S, D_K)          # K @ Wk + bk
    v_s = proj[2 * M:3 * M, 2 * D_K:2 * D_K + D_V].reshape(TB, S, D_V)

    # Scaled dot-product attention with exact masked_fill semantics.
    scores = jnp.einsum('bqk,bsk->bqs', q_s, k_s,
                        preferred_element_type=jnp.float32) * SCALE
    mask = mask_ref[...].astype(jnp.float32)                          # int8 -> f32
    scores = jnp.where(mask > 0.0, MASK_FILL, scores)

    # Numerically-stable softmax over the key axis; divide goes to the EUP.
    m = jnp.max(scores, axis=-1, keepdims=True)
    p = jnp.exp(scores - m)
    attn = p * pl.reciprocal(jnp.sum(p, axis=-1, keepdims=True), approx=True)

    context = jnp.einsum('bqs,bsk->bqk', attn, v_s,
                         preferred_element_type=jnp.float32)          # (TB, S, d_v)

    # Output projection + residual + LayerNorm(d_model), all flat (M, D).
    ctx2 = context.reshape(M, D_V)
    out = jnp.dot(ctx2, wo_ref[...],
                  preferred_element_type=jnp.float32) + bo_ref[...]
    e = out + q2
    mean = jnp.mean(e, axis=-1, keepdims=True)
    c = e - mean
    var = jnp.mean(c * c, axis=-1, keepdims=True)
    normed = c * lax.rsqrt(var + LN_EPS)
    y = normed * gamma_ref[...] + beta_ref[...]
    out_ref[...] = y.reshape(TB, S, D).astype(out_ref.dtype)


def _vmem_capacity_bytes():
    try:
        return int(pltpu.get_tpu_info().vmem_capacity_bytes)
    except Exception:
        return 64 * 1024 * 1024      # conservative (v7x physical per-core VMEM)


def _pick_batch_tile(B, S, D, vmem_budget_bytes):
    """Largest divisor of B whose double-buffered per-step footprint fits the
    VMEM budget, capped at B//2 so the 'parallel' axis has >=2 grid steps
    (needed for megacore sharding across v7x's two TensorCores)."""
    per_elem = 2 * (3 * S * D * 4      # Q, K, V blocks (f32, double-buffered)
                    + S * S * 1        # int8 mask block
                    + S * D * 4)       # output block
    tb_vmem = max(1, vmem_budget_bytes // per_elem)
    tb_cap = max(1, B // 2)
    tb_max = max(1, min(tb_vmem, tb_cap, B))
    for tb in range(tb_max, 0, -1):
        if B % tb == 0:
            return tb
    return 1


def mha_forward(Q, K, V, attn_mask, params):
    """Q, K, V: (B, S, d_model) f32; attn_mask: (B, S, S) bool -> (B, S, d_model) f32."""
    B, S, D = Q.shape
    assert D == D_MODEL

    capacity = _vmem_capacity_bytes()
    tb = _pick_batch_tile(B, S, D, capacity // 2)     # ~50% of VMEM for tiles
    vmem_limit = int(min(capacity * 3 // 4, 100 * 1024 * 1024))

    # nn.Linear stores weight as (out, in); pre-transpose once and fuse
    # Wq|Wk|Wv into one lane-dense (64,128) weight (zero-padded) + fused bias.
    wq_t, wk_t, wv_t = params['wq'].T, params['wk'].T, params['wv'].T
    w_qkv = jnp.concatenate([wq_t, wk_t, wv_t], axis=1)              # (64, 96)
    w_qkv = jnp.pad(w_qkv, ((0, 0), (0, QKV_PAD - w_qkv.shape[1])))  # (64, 128)
    b_qkv = jnp.concatenate([params['bq'], params['bk'], params['bv']])
    b_qkv = jnp.pad(b_qkv, (0, QKV_PAD - b_qkv.shape[0])).reshape(1, QKV_PAD)

    wo_t = params['wo'].T                                            # (32, 64)
    bo = params['bo'].reshape(1, D)
    gamma = params['gamma'].reshape(1, D)
    beta = params['beta'].reshape(1, D)

    mask_i8 = attn_mask.astype(jnp.int8)     # only O(B*S^2) tensor: 1 B/elem

    batch3 = lambda b: (b, 0, 0)             # batch-tiled tensors
    full2 = lambda b: (0, 0)                 # VMEM-resident params (same block)

    in_specs = [
        pl.BlockSpec((tb, S, D), batch3),        # Q
        pl.BlockSpec((tb, S, D), batch3),        # K
        pl.BlockSpec((tb, S, D), batch3),        # V
        pl.BlockSpec((tb, S, S), batch3),        # attn_mask (int8)
        pl.BlockSpec((D, QKV_PAD), full2),       # fused [Wq|Wk|Wv]^T padded
        pl.BlockSpec((1, QKV_PAD), full2),       # fused bias
        pl.BlockSpec((D_V, D), full2),           # fc W^T
        pl.BlockSpec((1, D), full2),             # fc b
        pl.BlockSpec((1, D), full2),             # LN gamma
        pl.BlockSpec((1, D), full2),             # LN beta
    ]

    # Advisory cost estimate so XLA schedules around the call sensibly.
    flops = (2 * (3 * B * S) * D * QKV_PAD          # fused stacked projection
             + B * 2 * S * S * D_K                  # scores
             + B * 2 * S * S * D_V                  # attn @ V
             + B * 2 * S * D_V * D                  # output projection
             + B * S * (4 * S + 12 * D))            # softmax/LN elementwise
    transcendentals = B * (S * S + 2 * S)           # exp + rcp + rsqrt
    bytes_accessed = (4 * 4 * B * S * D + B * S * S
                      + 4 * (D * QKV_PAD + QKV_PAD + D_V * D + 4 * D))

    out = pl.pallas_call(
        _mha_kernel,
        out_shape=jax.ShapeDtypeStruct((B, S, D), jnp.float32),
        grid_spec=pltpu.PrefetchScalarGridSpec(
            num_scalar_prefetch=0,
            grid=(B // tb,),
            in_specs=in_specs,
            out_specs=pl.BlockSpec((tb, S, D), batch3),
        ),
        compiler_params=pltpu.CompilerParams(
            dimension_semantics=("parallel",),
            vmem_limit_bytes=vmem_limit),
        cost_estimate=pl.CostEstimate(
            flops=flops, transcendentals=transcendentals,
            bytes_accessed=bytes_accessed),
    )(Q, K, V, mask_i8, w_qkv, b_qkv, wo_t, bo, gamma, beta)

    return out


def _reference(Q, K, V, attn_mask, params):
    """Pure-JAX mirror of the PyTorch forward (default stage)."""
    with jax.default_matmul_precision("highest"):
        q_s = Q @ params['wq'].T + params['bq']
        k_s = K @ params['wk'].T + params['bk']
        v_s = V @ params['wv'].T + params['bv']
        scores = jnp.einsum('bqk,bsk->bqs', q_s, k_s) / math.sqrt(D_K)
        scores = jnp.where(attn_mask, MASK_FILL, scores)
        attn = jax.nn.softmax(scores, axis=-1)
        context = jnp.einsum('bqs,bsk->bqk', attn, v_s)
        out = context @ params['wo'].T + params['bo']
    e = out + Q
    mean = jnp.mean(e, axis=-1, keepdims=True)
    var = jnp.mean((e - mean) ** 2, axis=-1, keepdims=True)
    return (e - mean) * lax.rsqrt(var + LN_EPS) * params['gamma'] + params['beta']


if __name__ == "__main__":
    key = jax.random.PRNGKey(0)
    ks = jax.random.split(key, 10)

    B, S = 24, 16     # module's batch_size = 24; small sequence length

    # Deterministic parameter init (nn.Linear-style uniform scale).
    def _lin(k, out_f, in_f):
        bound = 1.0 / math.sqrt(in_f)
        kw, kb = jax.random.split(k)
        w = jax.random.uniform(kw, (out_f, in_f), jnp.float32, -bound, bound)
        b = jax.random.uniform(kb, (out_f,), jnp.float32, -bound, bound)
        return w, b

    wq, bq = _lin(ks[0], D_K * N_HEADS, D_MODEL)
    wk, bk = _lin(ks[1], D_K * N_HEADS, D_MODEL)
    wv, bv = _lin(ks[2], D_V * N_HEADS, D_MODEL)
    wo, bo = _lin(ks[3], D_MODEL, N_HEADS * D_V)
    params = dict(wq=wq, bq=bq, wk=wk, bk=bk, wv=wv, bv=bv, wo=wo, bo=bo,
                  gamma=jnp.ones((D_MODEL,), jnp.float32),
                  beta=jnp.zeros((D_MODEL,), jnp.float32))

    Q = jax.random.normal(ks[4], (B, S, D_MODEL), jnp.float32)
    K = jax.random.normal(ks[5], (B, S, D_MODEL), jnp.float32)
    V = jax.random.normal(ks[6], (B, S, D_MODEL), jnp.float32)
    attn_mask = jax.random.bernoulli(ks[7], 0.2, (B, S, S))   # True = masked

    # TODO(synk): stage == 'parse' / 'check' return intermediate tensors
    # (attention matrix / pre-fc context) on the host; only the default
    # forward path (LayerNorm output) is implemented as a kernel.

    out = mha_forward(Q, K, V, attn_mask, params)
    out = jax.block_until_ready(out)

    ref = _reference(Q, K, V, attn_mask, params)
    assert out.shape == (B, S, D_MODEL)
    # Tolerance relaxed slightly vs 1e-4 because the softmax denominator uses
    # the approximate EUP reciprocal (per the performance review).
    assert jnp.allclose(out, ref, atol=2e-3, rtol=2e-3), "mismatch vs reference"

    print("KERNEL_OK")
</pallas_src>

<mosaic_0001>
module attributes {stable_mosaic.version = 11 : i64} {
  func.func @_mha_kernel(%arg0: i32, %arg1: memref<12x16x64xf32, #tpu.memory_space<vmem>>, %arg2: memref<12x16x64xf32, #tpu.memory_space<vmem>>, %arg3: memref<12x16x64xf32, #tpu.memory_space<vmem>>, %arg4: memref<12x16x16xi8, #tpu.memory_space<vmem>>, %arg5: memref<64x128xf32, #tpu.memory_space<vmem>>, %arg6: memref<1x128xf32, #tpu.memory_space<vmem>>, %arg7: memref<32x64xf32, #tpu.memory_space<vmem>>, %arg8: memref<1x64xf32, #tpu.memory_space<vmem>>, %arg9: memref<1x64xf32, #tpu.memory_space<vmem>>, %arg10: memref<1x64xf32, #tpu.memory_space<vmem>>, %arg11: memref<12x16x64xf32, #tpu.memory_space<vmem>>) attributes {dimension_semantics = [#tpu.dimension_semantics<parallel>], iteration_bounds = array<i64: 2>, scalar_prefetch = 0 : i64, scratch_operands = 0 : i64, tpu.core_type = #tpu.core_type<tc>, window_params = [{transform_indices = @transform_0, window_bounds = array<i64: 12, 16, 64>}, {transform_indices = @transform_1, window_bounds = array<i64: 12, 16, 64>}, {transform_indices = @transform_2, window_bounds = array<i64: 12, 16, 64>}, {transform_indices = @transform_3, window_bounds = array<i64: 12, 16, 16>}, {pipeline_mode = #tpu.pipeline_mode<synchronous>, transform_indices = @transform_4, window_bounds = array<i64: 64, 128>}, {pipeline_mode = #tpu.pipeline_mode<synchronous>, transform_indices = @transform_5, window_bounds = array<i64: 1, 128>}, {pipeline_mode = #tpu.pipeline_mode<synchronous>, transform_indices = @transform_6, window_bounds = array<i64: 32, 64>}, {pipeline_mode = #tpu.pipeline_mode<synchronous>, transform_indices = @transform_7, window_bounds = array<i64: 1, 64>}, {pipeline_mode = #tpu.pipeline_mode<synchronous>, transform_indices = @transform_8, window_bounds = array<i64: 1, 64>}, {pipeline_mode = #tpu.pipeline_mode<synchronous>, transform_indices = @transform_9, window_bounds = array<i64: 1, 64>}, {transform_indices = @transform_10, window_bounds = array<i64: 12, 16, 64>}]} {
    %c0 = arith.constant 0 : index
    %c0_0 = arith.constant 0 : index
    %c0_1 = arith.constant 0 : index
    %0 = vector.load %arg1[%c0, %c0_0, %c0_1] : memref<12x16x64xf32, #tpu.memory_space<vmem>>, vector<12x16x64xf32>
    %1 = vector.shape_cast %0 : vector<12x16x64xf32> to vector<192x64xf32>
    %c0_2 = arith.constant 0 : index
    %c0_3 = arith.constant 0 : index
    %c0_4 = arith.constant 0 : index
    %2 = vector.load %arg2[%c0_2, %c0_3, %c0_4] : memref<12x16x64xf32, #tpu.memory_space<vmem>>, vector<12x16x64xf32>
    %3 = vector.shape_cast %2 : vector<12x16x64xf32> to vector<192x64xf32>
    %c0_5 = arith.constant 0 : index
    %c0_6 = arith.constant 0 : index
    %c0_7 = arith.constant 0 : index
    %4 = vector.load %arg3[%c0_5, %c0_6, %c0_7] : memref<12x16x64xf32, #tpu.memory_space<vmem>>, vector<12x16x64xf32>
    %5 = vector.shape_cast %4 : vector<12x16x64xf32> to vector<192x64xf32>
    %6 = tpu.concatenate %1, %3, %5 in 0 : vector<192x64xf32>, vector<192x64xf32>, vector<192x64xf32> -> vector<576x64xf32>
    %c0_8 = arith.constant 0 : index
    %c0_9 = arith.constant 0 : index
    %7 = vector.load %arg5[%c0_8, %c0_9] : memref<64x128xf32, #tpu.memory_space<vmem>>, vector<64x128xf32>
    %cst = arith.constant dense<0.000000e+00> : vector<576x128xf32>
    %8 = tpu.matmul %6, %7, %cst {dimension_numbers = #tpu.dot_dimension_numbers<[1], [0], [0], [1], [0, 0, 1, 1], [], []>} : vector<576x64xf32>, vector<64x128xf32>, vector<576x128xf32> -> vector<576x128xf32>
    %c0_10 = arith.constant 0 : index
    %c0_11 = arith.constant 0 : index
    %9 = vector.load %arg6[%c0_10, %c0_11] : memref<1x128xf32, #tpu.memory_space<vmem>>, vector<1x128xf32>
    %10 = vector.broadcast %9 : vector<1x128xf32> to vector<576x128xf32>
    %11 = arith.addf %8, %10 : vector<576x128xf32>
    %12 = vector.extract_strided_slice %11 {offsets = [0, 0], sizes = [192, 32], strides = [1, 1]} : vector<576x128xf32> to vector<192x32xf32>
    %13 = vector.shape_cast %12 : vector<192x32xf32> to vector<12x16x32xf32>
    %14 = vector.extract_strided_slice %11 {offsets = [192, 32], sizes = [192, 32], strides = [1, 1]} : vector<576x128xf32> to vector<192x32xf32>
    %15 = vector.shape_cast %14 : vector<192x32xf32> to vector<12x16x32xf32>
    %16 = vector.extract_strided_slice %11 {offsets = [384, 64], sizes = [192, 32], strides = [1, 1]} : vector<576x128xf32> to vector<192x32xf32>
    %17 = vector.shape_cast %16 : vector<192x32xf32> to vector<12x16x32xf32>
    "tpu.trace_start"() <{level = 10 : i32, message = "bqk,bsk->bqs"}> : () -> ()
    %cst_12 = arith.constant dense<0.000000e+00> : vector<12x16x16xf32>
    %18 = tpu.matmul %13, %15, %cst_12 {dimension_numbers = #tpu.dot_dimension_numbers<[2], [2], [1], [1], [0, 0, 0, 1, 1, 1], [0], [0]>} : vector<12x16x32xf32>, vector<12x16x32xf32>, vector<12x16x16xf32> -> vector<12x16x16xf32>
    "tpu.trace_stop"() : () -> ()
    %cst_13 = arith.constant 0.176776692 : f32
    %19 = vector.broadcast %cst_13 : f32 to vector<12x16x16xf32>
    %20 = arith.mulf %18, %19 : vector<12x16x16xf32>
    %c0_14 = arith.constant 0 : index
    %c0_15 = arith.constant 0 : index
    %c0_16 = arith.constant 0 : index
    %21 = vector.load %arg4[%c0_14, %c0_15, %c0_16] : memref<12x16x16xi8, #tpu.memory_space<vmem>>, vector<12x16x16xi8>
    %22 = arith.sitofp %21 : vector<12x16x16xi8> to vector<12x16x16xf32>
    %cst_17 = arith.constant 0.000000e+00 : f32
    %23 = vector.broadcast %cst_17 : f32 to vector<12x16x16xf32>
    %24 = arith.cmpf ogt, %22, %23 : vector<12x16x16xf32>
    %cst_18 = arith.constant -1.000000e+09 : f32
    %25 = vector.broadcast %cst_18 : f32 to vector<12x16x16xf32>
    %26 = arith.select %24, %25, %20 : vector<12x16x16xi1>, vector<12x16x16xf32>
    %cst_19 = arith.constant dense<0xFF800000> : vector<12x16xf32>
    %27 = vector.multi_reduction <maximumf>, %26, %cst_19 [2] : vector<12x16x16xf32> to vector<12x16xf32>
    %28 = vector.shape_cast %27 : vector<12x16xf32> to vector<12x16x1xf32>
    %29 = vector.broadcast %28 : vector<12x16x1xf32> to vector<12x16x16xf32>
    %30 = arith.subf %26, %29 : vector<12x16x16xf32>
    %31 = math.exp %30 : vector<12x16x16xf32>
    %cst_20 = arith.constant dense<0.000000e+00> : vector<12x16xf32>
    %32 = vector.multi_reduction <add>, %31, %cst_20 [2] : vector<12x16x16xf32> to vector<12x16xf32>
    %33 = vector.shape_cast %32 : vector<12x16xf32> to vector<12x16x1xf32>
    %34 = tpu.reciprocal %33 {approx = true} : vector<12x16x1xf32> -> vector<12x16x1xf32>
    %35 = vector.broadcast %34 : vector<12x16x1xf32> to vector<12x16x16xf32>
    %36 = arith.mulf %31, %35 : vector<12x16x16xf32>
    "tpu.trace_start"() <{level = 10 : i32, message = "bqs,bsk->bqk"}> : () -> ()
    %cst_21 = arith.constant dense<0.000000e+00> : vector<12x16x32xf32>
    %37 = tpu.matmul %36, %17, %cst_21 {dimension_numbers = #tpu.dot_dimension_numbers<[2], [1], [1], [2], [0, 0, 0, 1, 1, 2], [0], [0]>} : vector<12x16x16xf32>, vector<12x16x32xf32>, vector<12x16x32xf32> -> vector<12x16x32xf32>
    "tpu.trace_stop"() : () -> ()
    %38 = vector.shape_cast %37 : vector<12x16x32xf32> to vector<192x32xf32>
    %c0_22 = arith.constant 0 : index
    %c0_23 = arith.constant 0 : index
    %39 = vector.load %arg7[%c0_22, %c0_23] : memref<32x64xf32, #tpu.memory_space<vmem>>, vector<32x64xf32>
    %cst_24 = arith.constant dense<0.000000e+00> : vector<192x64xf32>
    %40 = tpu.matmul %38, %39, %cst_24 {dimension_numbers = #tpu.dot_dimension_numbers<[1], [0], [0], [1], [0, 0, 1, 1], [], []>} : vector<192x32xf32>, vector<32x64xf32>, vector<192x64xf32> -> vector<192x64xf32>
    %c0_25 = arith.constant 0 : index
    %c0_26 = arith.constant 0 : index
    %41 = vector.load %arg8[%c0_25, %c0_26] : memref<1x64xf32, #tpu.memory_space<vmem>>, vector<1x64xf32>
    %42 = vector.broadcast %41 : vector<1x64xf32> to vector<192x64xf32>
    %43 = arith.addf %40, %42 : vector<192x64xf32>
    %44 = arith.addf %43, %1 : vector<192x64xf32>
    %cst_27 = arith.constant dense<0.000000e+00> : vector<192xf32>
    %45 = vector.multi_reduction <add>, %44, %cst_27 [1] : vector<192x64xf32> to vector<192xf32>
    %46 = vector.shape_cast %45 : vector<192xf32> to vector<192x1xf32>
    %cst_28 = arith.constant 6.400000e+01 : f32
    %47 = vector.broadcast %cst_28 : f32 to vector<192x1xf32>
    %48 = arith.divf %46, %47 : vector<192x1xf32>
    %49 = vector.broadcast %48 : vector<192x1xf32> to vector<192x64xf32>
    %50 = arith.subf %44, %49 : vector<192x64xf32>
    %51 = arith.mulf %50, %50 : vector<192x64xf32>
    %cst_29 = arith.constant dense<0.000000e+00> : vector<192xf32>
    %52 = vector.multi_reduction <add>, %51, %cst_29 [1] : vector<192x64xf32> to vector<192xf32>
    %53 = vector.shape_cast %52 : vector<192xf32> to vector<192x1xf32>
    %cst_30 = arith.constant 6.400000e+01 : f32
    %54 = vector.broadcast %cst_30 : f32 to vector<192x1xf32>
    %55 = arith.divf %53, %54 : vector<192x1xf32>
    %cst_31 = arith.constant 9.99999974E-6 : f32
    %56 = vector.broadcast %cst_31 : f32 to vector<192x1xf32>
    %57 = arith.addf %55, %56 : vector<192x1xf32>
    %58 = math.rsqrt %57 : vector<192x1xf32>
    %59 = vector.broadcast %58 : vector<192x1xf32> to vector<192x64xf32>
    %60 = arith.mulf %50, %59 : vector<192x64xf32>
    %c0_32 = arith.constant 0 : index
    %c0_33 = arith.constant 0 : index
    %61 = vector.load %arg9[%c0_32, %c0_33] : memref<1x64xf32, #tpu.memory_space<vmem>>, vector<1x64xf32>
    %62 = vector.broadcast %61 : vector<1x64xf32> to vector<192x64xf32>
    %63 = arith.mulf %60, %62 : vector<192x64xf32>
    %c0_34 = arith.constant 0 : index
    %c0_35 = arith.constant 0 : index
    %64 = vector.load %arg10[%c0_34, %c0_35] : memref<1x64xf32, #tpu.memory_space<vmem>>, vector<1x64xf32>
    %65 = vector.broadcast %64 : vector<1x64xf32> to vector<192x64xf32>
    %66 = arith.addf %63, %65 : vector<192x64xf32>
    %67 = vector.shape_cast %66 : vector<192x64xf32> to vector<12x16x64xf32>
    %c0_36 = arith.constant 0 : index
    %c0_37 = arith.constant 0 : index
    %c0_38 = arith.constant 0 : index
    %68 = vector.load %arg11[%c0_36, %c0_37, %c0_38] : memref<12x16x64xf32, #tpu.memory_space<vmem>>, vector<12x16x64xf32>
    tpu.vector_store %arg11[%c0_36, %c0_37, %c0_38], %67 {strides = array<i32>} : memref<12x16x64xf32, #tpu.memory_space<vmem>>, vector<12x16x64xf32>,
    return
  }
  func.func @transform_0(%arg0: i32) -> (i32, i32, i32) {
    %c0_i32 = arith.constant 0 : i32
    %c0_i32_0 = arith.constant 0 : i32
    %c0_i32_1 = arith.constant 0 : i32
    return %arg0, %c0_i32, %c0_i32_0 : i32, i32, i32
  }
  func.func @transform_1(%arg0: i32) -> (i32, i32, i32) {
    %c0_i32 = arith.constant 0 : i32
    %c0_i32_0 = arith.constant 0 : i32
    %c0_i32_1 = arith.constant 0 : i32
    return %arg0, %c0_i32, %c0_i32_0 : i32, i32, i32
  }
  func.func @transform_2(%arg0: i32) -> (i32, i32, i32) {
    %c0_i32 = arith.constant 0 : i32
    %c0_i32_0 = arith.constant 0 : i32
    %c0_i32_1 = arith.constant 0 : i32
    return %arg0, %c0_i32, %c0_i32_0 : i32, i32, i32
  }
  func.func @transform_3(%arg0: i32) -> (i32, i32, i32) {
    %c0_i32 = arith.constant 0 : i32
    %c0_i32_0 = arith.constant 0 : i32
    %c0_i32_1 = arith.constant 0 : i32
    return %arg0, %c0_i32, %c0_i32_0 : i32, i32, i32
  }
  func.func @transform_4(%arg0: i32) -> (i32, i32) {
    %c0_i32 = arith.constant 0 : i32
    %c0_i32_0 = arith.constant 0 : i32
    %c0_i32_1 = arith.constant 0 : i32
    return %c0_i32, %c0_i32_0 : i32, i32
  }
  func.func @transform_5(%arg0: i32) -> (i32, i32) {
    %c0_i32 = arith.constant 0 : i32
    %c0_i32_0 = arith.constant 0 : i32
    %c0_i32_1 = arith.constant 0 : i32
    return %c0_i32, %c0_i32_0 : i32, i32
  }
  func.func @transform_6(%arg0: i32) -> (i32, i32) {
    %c0_i32 = arith.constant 0 : i32
    %c0_i32_0 = arith.constant 0 : i32
    %c0_i32_1 = arith.constant 0 : i32
    return %c0_i32, %c0_i32_0 : i32, i32
  }
  func.func @transform_7(%arg0: i32) -> (i32, i32) {
    %c0_i32 = arith.constant 0 : i32
    %c0_i32_0 = arith.constant 0 : i32
    %c0_i32_1 = arith.constant 0 : i32
    return %c0_i32, %c0_i32_0 : i32, i32
  }
  func.func @transform_8(%arg0: i32) -> (i32, i32) {
    %c0_i32 = arith.constant 0 : i32
    %c0_i32_0 = arith.constant 0 : i32
    %c0_i32_1 = arith.constant 0 : i32
    return %c0_i32, %c0_i32_0 : i32, i32
  }
  func.func @transform_9(%arg0: i32) -> (i32, i32) {
    %c0_i32 = arith.constant 0 : i32
    %c0_i32_0 = arith.constant 0 : i32
    %c0_i32_1 = arith.constant 0 : i32
    return %c0_i32, %c0_i32_0 : i32, i32
  }
  func.func @transform_10(%arg0: i32) -> (i32, i32, i32) {
    %c0_i32 = arith.constant 0 : i32
    %c0_i32_0 = arith.constant 0 : i32
    %c0_i32_1 = arith.constant 0 : i32
    return %arg0, %c0_i32, %c0_i32_0 : i32, i32, i32
  }
}

</mosaic_0001>

<llo_original>
// kernel: tpu_custom_call.1
$region0: #{tpu_custom_call.1}
  #allocation0 [shape = 'u32[]', space=smem, size = 0x4, offset = 0x4, fixed_abs, tag = 'smem constant byte address 0x4 - core index']
  #allocation1 [shape = 'u32[144,128]{1,0:T(1,128)}', space=vmem, size = 0x12000, scoped, tag = 'internal scratch']
  %s0 = inlined_call_operand.hbm [shape: f32[24,16,64], index: 0, kind: input, shape index: {}]
  %s1 = inlined_call_operand.hbm [shape: f32[24,16,64], index: 1, kind: input, shape index: {}]
  %s2 = inlined_call_operand.hbm [shape: f32[24,16,64], index: 2, kind: input, shape index: {}]
  %s3 = inlined_call_operand.vmem [shape: s8[24,16,16], index: 3, kind: input, shape index: {}]
  %s4 = inlined_call_operand.vmem [shape: f32[64,128], index: 4, kind: input, shape index: {}]
  %s5 = inlined_call_operand.vmem [shape: f32[1,128], index: 5, kind: input, shape index: {}]
  %s6 = inlined_call_operand.vmem [shape: f32[32,64], index: 6, kind: input, shape index: {}]
  %s7 = inlined_call_operand.vmem [shape: f32[1,64], index: 7, kind: input, shape index: {}]
  %s8 = inlined_call_operand.vmem [shape: f32[1,64], index: 8, kind: input, shape index: {}]
  %s9 = inlined_call_operand.vmem [shape: f32[1,64], index: 9, kind: input, shape index: {}]
  %s10 = inlined_call_operand.hbm [shape: f32[24,16,64], index: 10, kind: output, shape index: {}]
  %s11 = sld [smem:[#allocation0]]
  $region85: #{tpu_custom_call.1} parent=0
    _
  %s13 = ssub.s32 1, %s11
  %s14 = scalar_select 0, %s13, %s11
  $region1: #{tpu_custom_call.1} parent=0
    #allocation2 [shape = 'u8[196608]{0}', space=vmem, size = 0x30000, scoped, tag = 'input window, operand 0']
    #allocation3 [shape = 's32[2]{0}', space=sflag, size = 0x8, scoped, tag = 'scoped memory for tpu_custom_call.1']
    #allocation4 [shape = 's32[2]{0}', space=sflag, size = 0x8, scoped, tag = 'scoped memory for tpu_custom_call.1']
    #allocation5 [shape = 'u8[196608]{0}', space=vmem, size = 0x30000, scoped, tag = 'input window, operand 1']
    #allocation6 [shape = 's32[2]{0}', space=sflag, size = 0x8, scoped, tag = 'scoped memory for tpu_custom_call.1']
    #allocation7 [shape = 'u8[196608]{0}', space=vmem, size = 0x30000, scoped, tag = 'input window, operand 2']
    #allocation8 [shape = 'u8[196608]{0}', space=vmem, size = 0x30000, scoped, tag = 'output window, operand 0']
    %15 = vsyncpa [#allocation3], 0
    %s16 = scalar_lea.sflag [#allocation3], 1
    %17 = vsyncpa %s16, 0
    %18 = vsyncpa [#allocation6], 0
    %s19 = scalar_lea.sflag [#allocation6], 1
    %20 = vsyncpa %s19, 0
    %21 = vsyncpa [#allocation4], 0
    %s22 = scalar_lea.sflag [#allocation4], 1
    %23 = vsyncpa %s22, 0
    loop: start=0, step=1, limit=4
    $region2: #{tpu_custom_call.1} parent=1 // loop_pre_header
      _
    $region3: #{tpu_custom_call.1} parent=1 // loop_header
      %s25 = sphi 0, %s29
      %p26 = scmp.ge.s32.totalorder %s25, 4
      %s35 = sphi 0, %s37
      %s38 = sphi 0, %s35
      %s39 = sphi 0, %s38
      %s55 = sphi 0, %s39
      %s61 = sphi 0, %s63
      %s64 = sphi 0, %s61
      %s65 = sphi 0, %s64
      %s81 = sphi 0, %s65
      %s87 = sphi 0, %s89
      %s90 = sphi 0, %s87
      %s91 = sphi 0, %s90
      %s107 = sphi 0, %s91
      %s113 = sphi 0, %s115
      %s116 = sphi 0, %s113
      %s117 = sphi 0, %s116
      %s133 = sphi 0, %s117
      %s137 = sphi 0, %s137
      %s139 = sphi 0, %s137
      %s140 = sphi 0, %s139
      %s154 = sphi 0, %s140
      %s158 = sphi 0, %s158
      %s160 = sphi 0, %s158
      %s161 = sphi 0, %s160
      %s175 = sphi 0, %s161
      %s179 = sphi 0, %s179
      %s181 = sphi 0, %s179
      %s182 = sphi 0, %s181
      %s196 = sphi 0, %s182
      %s200 = sphi 0, %s200
      %s202 = sphi 0, %s200
      %s203 = sphi 0, %s202
      %s217 = sphi 0, %s203
      %s221 = sphi 0, %s221
      %s223 = sphi 0, %s221
      %s224 = sphi 0, %s223
      %s238 = sphi 0, %s224
      %s242 = sphi 0, %s242
      %s244 = sphi 0, %s242
      %s245 = sphi 0, %s244
      %s259 = sphi 0, %s245
      %s265 = sphi 0, %s267
      %s268 = sphi 0, %s265
      %s269 = sphi 0, %s268
      %s285 = sphi 0, %s269
    $region4: #{tpu_custom_call.1} parent=1 // loop_header_branch
      %28 = sbr.rel (%p26) target = $region8
    $region5: #{tpu_custom_call.1} parent=1 // loop_body
      %s30 = ssub.s32 %s25, 1
      %s31 = ssub.s32 %s25, 2
      %s32 = sadd.s32 %s25, 1
      %s33 = ssub.s32 %s25, %s32
      %p34 = scmp.eq.s32.totalorder %s33, 0
      %s36 = sadd.s32 %s35, 1
      %s37 = scalar_select %p34, %s35, %s36
      %p40 = pneg %p34
      %p41 = scmp.eq.s32.totalorder %s25, 1
      %p42 = por %p40, %p41
      %p43 = scmp.ne.s32.totalorder %s35, %s38
      %p44 = scmp.eq.s32.totalorder %s25, 0
      %p45 = por %p43, %p44
      %p46 = scmp.ne.s32.totalorder %s35, %s38
      %p47 = scmp.eq.s32.totalorder %s30, 1
      %p48 = por %p46, %p47
      %p49 = scmp.ne.s32.totalorder %s38, %s39
      %p50 = scmp.eq.s32.totalorder %s30, 0
      %p51 = por %p49, %p50
      %p52 = scmp.ne.s32.totalorder %s38, %s39
      %p53 = scmp.eq.s32.totalorder %s31, 1
      %p54 = por %p52, %p53
      %p56 = scmp.ne.s32.totalorder %s39, %s55
      %p57 = scmp.eq.s32.totalorder %s31, 0
      %p58 = por %p56, %p57
      %s59 = ssub.s32 %s25, %s32
      %p60 = scmp.eq.s32.totalorder %s59, 0
      %s62 = sadd.s32 %s61, 1
      %s63 = scalar_select %p60, %s61, %s62
      %p66 = pneg %p60
      %p67 = scmp.eq.s32.totalorder %s25, 1
      %p68 = por %p66, %p67
      %p69 = scmp.ne.s32.totalorder %s61, %s64
      %p70 = scmp.eq.s32.totalorder %s25, 0
      %p71 = por %p69, %p70
      %p72 = scmp.ne.s32.totalorder %s61, %s64
      %p73 = scmp.eq.s32.totalorder %s30, 1
      %p74 = por %p72, %p73
      %p75 = scmp.ne.s32.totalorder %s64, %s65
      %p76 = scmp.eq.s32.totalorder %s30, 0
      %p77 = por %p75, %p76
      %p78 = scmp.ne.s32.totalorder %s64, %s65
      %p79 = scmp.eq.s32.totalorder %s31, 1
      %p80 = por %p78, %p79
      %p82 = scmp.ne.s32.totalorder %s65, %s81
      %p83 = scmp.eq.s32.totalorder %s31, 0
      %p84 = por %p82, %p83
      %s85 = ssub.s32 %s25, %s32
      %p86 = scmp.eq.s32.totalorder %s85, 0
      %s88 = sadd.s32 %s87, 1
      %s89 = scalar_select %p86, %s87, %s88
      %p92 = pneg %p86
      %p93 = scmp.eq.s32.totalorder %s25, 1
      %p94 = por %p92, %p93
      %p95 = scmp.ne.s32.totalorder %s87, %s90
      %p96 = scmp.eq.s32.totalorder %s25, 0
      %p97 = por %p95, %p96
      %p98 = scmp.ne.s32.totalorder %s87, %s90
      %p99 = scmp.eq.s32.totalorder %s30, 1
      %p100 = por %p98, %p99
      %p101 = scmp.ne.s32.totalorder %s90, %s91
      %p102 = scmp.eq.s32.totalorder %s30, 0
      %p103 = por %p101, %p102
      %p104 = scmp.ne.s32.totalorder %s90, %s91
      %p105 = scmp.eq.s32.totalorder %s31, 1
      %p106 = por %p104, %p105
      %p108 = scmp.ne.s32.totalorder %s91, %s107
      %p109 = scmp.eq.s32.totalorder %s31, 0
      %p110 = por %p108, %p109
      %s111 = ssub.s32 %s25, %s32
      %p112 = scmp.eq.s32.totalorder %s111, 0
      %s114 = sadd.s32 %s113, 1
      %s115 = scalar_select %p112, %s113, %s114
      %p118 = pneg %p112
      %p119 = scmp.eq.s32.totalorder %s25, 1
      %p120 = por %p118, %p119
      %p121 = scmp.ne.s32.totalorder %s113, %s116
      %p122 = scmp.eq.s32.totalorder %s25, 0
      %p123 = por %p121, %p122
      %p124 = scmp.ne.s32.totalorder %s113, %s116
      %p125 = scmp.eq.s32.totalorder %s30, 1
      %p126 = por %p124, %p125
      %p127 = scmp.ne.s32.totalorder %s116, %s117
      %p128 = scmp.eq.s32.totalorder %s30, 0
      %p129 = por %p127, %p128
      %p130 = scmp.ne.s32.totalorder %s116, %s117
      %p131 = scmp.eq.s32.totalorder %s31, 1
      %p132 = por %p130, %p131
      %p134 = scmp.ne.s32.totalorder %s117, %s133
      %p135 = scmp.eq.s32.totalorder %s31, 0
      %p136 = por %p134, %p135
      %s138 = sadd.s32 %s137, 1
      %p141 = scmp.eq.s32.totalorder %s25, 1
      %p142 = scmp.ne.s32.totalorder %s137, %s139
      %p143 = scmp.eq.s32.totalorder %s25, 0
      %p144 = por %p142, %p143
      %p145 = scmp.ne.s32.totalorder %s137, %s139
      %p146 = scmp.eq.s32.totalorder %s30, 1
      %p147 = por %p145, %p146
      %p148 = scmp.ne.s32.totalorder %s139, %s140
      %p149 = scmp.eq.s32.totalorder %s30, 0
      %p150 = por %p148, %p149
      %p151 = scmp.ne.s32.totalorder %s139, %s140
      %p152 = scmp.eq.s32.totalorder %s31, 1
      %p153 = por %p151, %p152
      %p155 = scmp.ne.s32.totalorder %s140, %s154
      %p156 = scmp.eq.s32.totalorder %s31, 0
      %p157 = por %p155, %p156
      %s159 = sadd.s32 %s158, 1
      %p162 = scmp.eq.s32.totalorder %s25, 1
      %p163 = scmp.ne.s32.totalorder %s158, %s160
      %p164 = scmp.eq.s32.totalorder %s25, 0
      %p165 = por %p163, %p164
      %p166 = scmp.ne.s32.totalorder %s158, %s160
      %p167 = scmp.eq.s32.totalorder %s30, 1
      %p168 = por %p166, %p167
      %p169 = scmp.ne.s32.totalorder %s160, %s161
      %p170 = scmp.eq.s32.totalorder %s30, 0
      %p171 = por %p169, %p170
      %p172 = scmp.ne.s32.totalorder %s160, %s161
      %p173 = scmp.eq.s32.totalorder %s31, 1
      %p174 = por %p172, %p173
      %p176 = scmp.ne.s32.totalorder %s161, %s175
      %p177 = scmp.eq.s32.totalorder %s31, 0
      %p178 = por %p176, %p177
      %s180 = sadd.s32 %s179, 1
      %p183 = scmp.eq.s32.totalorder %s25, 1
      %p184 = scmp.ne.s32.totalorder %s179, %s181
      %p185 = scmp.eq.s32.totalorder %s25, 0
      %p186 = por %p184, %p185
      %p187 = scmp.ne.s32.totalorder %s179, %s181
      %p188 = scmp.eq.s32.totalorder %s30, 1
      %p189 = por %p187, %p188
      %p190 = scmp.ne.s32.totalorder %s181, %s182
      %p191 = scmp.eq.s32.totalorder %s30, 0
      %p192 = por %p190, %p191
      %p193 = scmp.ne.s32.totalorder %s181, %s182
      %p194 = scmp.eq.s32.totalorder %s31, 1
      %p195 = por %p193, %p194
      %p197 = scmp.ne.s32.totalorder %s182, %s196
      %p198 = scmp.eq.s32.totalorder %s31, 0
      %p199 = por %p197, %p198
      %s201 = sadd.s32 %s200, 1
      %p204 = scmp.eq.s32.totalorder %s25, 1
      %p205 = scmp.ne.s32.totalorder %s200, %s202
      %p206 = scmp.eq.s32.totalorder %s25, 0
      %p207 = por %p205, %p206
      %p208 = scmp.ne.s32.totalorder %s200, %s202
      %p209 = scmp.eq.s32.totalorder %s30, 1
      %p210 = por %p208, %p209
      %p211 = scmp.ne.s32.totalorder %s202, %s203
      %p212 = scmp.eq.s32.totalorder %s30, 0
      %p213 = por %p211, %p212
      %p214 = scmp.ne.s32.totalorder %s202, %s203
      %p215 = scmp.eq.s32.totalorder %s31, 1
      %p216 = por %p214, %p215
      %p218 = scmp.ne.s32.totalorder %s203, %s217
      %p219 = scmp.eq.s32.totalorder %s31, 0
      %p220 = por %p218, %p219
      %s222 = sadd.s32 %s221, 1
      %p225 = scmp.eq.s32.totalorder %s25, 1
      %p226 = scmp.ne.s32.totalorder %s221, %s223
      %p227 = scmp.eq.s32.totalorder %s25, 0
      %p228 = por %p226, %p227
      %p229 = scmp.ne.s32.totalorder %s221, %s223
      %p230 = scmp.eq.s32.totalorder %s30, 1
      %p231 = por %p229, %p230
      %p232 = scmp.ne.s32.totalorder %s223, %s224
      %p233 = scmp.eq.s32.totalorder %s30, 0
      %p234 = por %p232, %p233
      %p235 = scmp.ne.s32.totalorder %s223, %s224
      %p236 = scmp.eq.s32.totalorder %s31, 1
      %p237 = por %p235, %p236
      %p239 = scmp.ne.s32.totalorder %s224, %s238
      %p240 = scmp.eq.s32.totalorder %s31, 0
      %p241 = por %p239, %p240
      %s243 = sadd.s32 %s242, 1
      %p246 = scmp.eq.s32.totalorder %s25, 1
      %p247 = scmp.ne.s32.totalorder %s242, %s244
      %p248 = scmp.eq.s32.totalorder %s25, 0
      %p249 = por %p247, %p248
      %p250 = scmp.ne.s32.totalorder %s242, %s244
      %p251 = scmp.eq.s32.totalorder %s30, 1
      %p252 = por %p250, %p251
      %p253 = scmp.ne.s32.totalorder %s244, %s245
      %p254 = scmp.eq.s32.totalorder %s30, 0
      %p255 = por %p253, %p254
      %p256 = scmp.ne.s32.totalorder %s244, %s245
      %p257 = scmp.eq.s32.totalorder %s31, 1
      %p258 = por %p256, %p257
      %p260 = scmp.ne.s32.totalorder %s245, %s259
      %p261 = scmp.eq.s32.totalorder %s31, 0
      %p262 = por %p260, %p261
      %s263 = ssub.s32 %s25, %s32
      %p264 = scmp.eq.s32.totalorder %s263, 0
      %s266 = sadd.s32 %s265, 1
      %s267 = scalar_select %p264, %s265, %s266
      %p270 = pneg %p264
      %p271 = scmp.eq.s32.totalorder %s25, 1
      %p272 = por %p270, %p271
      %p273 = scmp.ne.s32.totalorder %s265, %s268
      %p274 = scmp.eq.s32.totalorder %s25, 0
      %p275 = por %p273, %p274
      %p276 = scmp.ne.s32.totalorder %s265, %s268
      %p277 = scmp.eq.s32.totalorder %s30, 1
      %p278 = por %p276, %p277
      %p279 = scmp.ne.s32.totalorder %s268, %s269
      %p280 = scmp.eq.s32.totalorder %s30, 0
      %p281 = por %p279, %p280
      %p282 = scmp.ne.s32.totalorder %s268, %s269
      %p283 = scmp.eq.s32.totalorder %s31, 1
      %p284 = por %p282, %p283
      %p286 = scmp.ne.s32.totalorder %s269, %s285
      %p287 = scmp.eq.s32.totalorder %s31, 0
      %p288 = por %p286, %p287
      %p289 = scmp.le.s32.totalorder 1, %s25
      %p290 = scmp.lt.s32.totalorder %s25, 3
      %p291 = pnand %p289, %p290
      %p292 = pneg %p291
      // Predicated region
      $region9: #{tpu_custom_call.1} parent=5 // pred_check
        _
      $region10: #{tpu_custom_call.1} parent=5 // pred_check_branch
        %294 = sbr.rel (%p291) target = $region12
      $region11: #{tpu_custom_call.1} parent=5 // pred_region
        %s295 = ssub.s32 %s25, 1
        // Predicated region
        $region13: #{tpu_custom_call.1} parent=11 // pred_check
          %p296 = pneg %p150
        $region14: #{tpu_custom_call.1} parent=11 // pred_check_branch
          %298 = sbr.rel (%p296) target = $region16
        $region15: #{tpu_custom_call.1} parent=11 // pred_region
          _
        $region16: #{tpu_custom_call.1} parent=11 // pred_fallthru
          _
        // Predicated region
        $region17: #{tpu_custom_call.1} parent=11 // pred_check
          %p299 = pneg %p171
        $region18: #{tpu_custom_call.1} parent=11 // pred_check_branch
          %301 = sbr.rel (%p299) target = $region20
        $region19: #{tpu_custom_call.1} parent=11 // pred_region
          _
        $region20: #{tpu_custom_call.1} parent=11 // pred_fallthru
          _
        // Predicated region
        $region21: #{tpu_custom_call.1} parent=11 // pred_check
          %p302 = pneg %p192
        $region22: #{tpu_custom_call.1} parent=11 // pred_check_branch
          %304 = sbr.rel (%p302) target = $region24
        $region23: #{tpu_custom_call.1} parent=11 // pred_region
          _
        $region24: #{tpu_custom_call.1} parent=11 // pred_fallthru
          _
        // Predicated region
        $region25: #{tpu_custom_call.1} parent=11 // pred_check
          %p305 = pneg %p213
        $region26: #{tpu_custom_call.1} parent=11 // pred_check_branch
          %307 = sbr.rel (%p305) target = $region28
        $region27: #{tpu_custom_call.1} parent=11 // pred_region
          _
        $region28: #{tpu_custom_call.1} parent=11 // pred_fallthru
          _
        // Predicated region
        $region29: #{tpu_custom_call.1} parent=11 // pred_check
          %p308 = pneg %p234
        $region30: #{tpu_custom_call.1} parent=11 // pred_check_branch
          %310 = sbr.rel (%p308) target = $region32
        $region31: #{tpu_custom_call.1} parent=11 // pred_region
          _
        $region32: #{tpu_custom_call.1} parent=11 // pred_fallthru
          _
        // Predicated region
        $region33: #{tpu_custom_call.1} parent=11 // pred_check
          %p311 = pneg %p255
        $region34: #{tpu_custom_call.1} parent=11 // pred_check_branch
          %313 = sbr.rel (%p311) target = $region36
        $region35: #{tpu_custom_call.1} parent=11 // pred_region
          _
        $region36: #{tpu_custom_call.1} parent=11 // pred_fallthru
          _
      $region12: #{tpu_custom_call.1} parent=5 // pred_fallthru
        _
      %p314 = scmp.lt.s32.totalorder %s25, 2
      // Predicated region
      $region37: #{tpu_custom_call.1} parent=5 // pred_check
        %p315 = pneg %p314
      $region38: #{tpu_custom_call.1} parent=5 // pred_check_branch
        %317 = sbr.rel (%p315) target = $region40
      $region39: #{tpu_custom_call.1} parent=5 // pred_region
        // Predicated region
        $region41: #{tpu_custom_call.1} parent=39 // pred_check
          %p318 = pneg %p45
        $region42: #{tpu_custom_call.1} parent=39 // pred_check_branch
          %320 = sbr.rel (%p318) target = $region44
        $region43: #{tpu_custom_call.1} parent=39 // pred_region
          %s321 = sand.u32 %s35, 1
          %s322 = scalar_lea.sflag [#allocation3], %s321
          %s323 = sand.u32 %s35, 1
          %s324 = smul.addr %s323, 192
          %s325 = scalar_lea.vmem [#allocation2], %s324
          %s326 = smul.u32 12, %s25
          %s328 = ssub.s32 3072, 3072
          %329 = vsyncadd %s322, %s328
          %s330 = smul.addr %s326, 2
          %s331 = smul.addr %s330, 128
          %s332 = scalar_lea.hbm %s0, %s331
          %s333 = sshll.u32 %s325, 4
          %s334 = int_to_ptr.vmem [resolvable:$true] %s333
          %339 = dma.hbm_to_vmem [thread:$0]  %s332, 3072, %s334, %s322, 128, 128, 8
        $region44: #{tpu_custom_call.1} parent=39 // pred_fallthru
          _
        // Predicated region
        $region45: #{tpu_custom_call.1} parent=39 // pred_check
          %p340 = pneg %p71
        $region46: #{tpu_custom_call.1} parent=39 // pred_check_branch
          %342 = sbr.rel (%p340) target = $region48
        $region47: #{tpu_custom_call.1} parent=39 // pred_region
          %s343 = sand.u32 %s25, 1
          %s344 = scalar_lea.sflag [#allocation6], %s343
          %s345 = sand.u32 %s61, 1
          %s346 = smul.addr %s345, 192
          %s347 = scalar_lea.vmem [#allocation5], %s346
          %s348 = smul.u32 12, %s25
          %s350 = ssub.s32 3072, 3072
          %351 = vsyncadd %s344, %s350
          %s352 = smul.addr %s348, 2
          %s353 = smul.addr %s352, 128
          %s354 = scalar_lea.hbm %s1, %s353
          %s355 = sshll.u32 %s347, 4
          %s356 = int_to_ptr.vmem [resolvable:$true] %s355
          %361 = dma.hbm_to_vmem [thread:$0]  %s354, 3072, %s356, %s344, 128, 128, 8
        $region48: #{tpu_custom_call.1} parent=39 // pred_fallthru
          _
        // Predicated region
        $region49: #{tpu_custom_call.1} parent=39 // pred_check
          %p362 = pneg %p97
        $region50: #{tpu_custom_call.1} parent=39 // pred_check_branch
          %364 = sbr.rel (%p362) target = $region52
        $region51: #{tpu_custom_call.1} parent=39 // pred_region
          %s365 = sand.u32 %s25, 1
          %s366 = scalar_lea.sflag [#allocation6], %s365
          %s367 = sand.u32 %s87, 1
          %s368 = smul.addr %s367, 192
          %s369 = scalar_lea.vmem [#allocation7], %s368
          %s370 = smul.u32 12, %s25
          %s372 = ssub.s32 3072, 3072
          %373 = vsyncadd %s366, %s372
          %s374 = smul.addr %s370, 2
          %s375 = smul.addr %s374, 128
          %s376 = scalar_lea.hbm %s2, %s375
          %s377 = sshll.u32 %s369, 4
          %s378 = int_to_ptr.vmem [resolvable:$true] %s377
          %383 = dma.hbm_to_vmem [thread:$0]  %s376, 3072, %s378, %s366, 128, 128, 8
        $region52: #{tpu_custom_call.1} parent=39 // pred_fallthru
          _
        // Predicated region
        $region53: #{tpu_custom_call.1} parent=39 // pred_check
          %p384 = pneg %p123
        $region54: #{tpu_custom_call.1} parent=39 // pred_check_branch
          %386 = sbr.rel (%p384) target = $region56
        $region55: #{tpu_custom_call.1} parent=39 // pred_region
          %s387 = smul.u32 12, %s25
          %p388 = scmp.lt.s32.totalorder %s387, 23
          %s389 = scalar_select %p388, %s387, 23
          %s390 = smul.addr %s389, 2
          %s391 = smul.addr %s390, 2
          %s392 = scalar_lea.vmem %s3, %s391
          %s393 = smul.u32 12, %s25
        $region56: #{tpu_custom_call.1} parent=39 // pred_fallthru
          _
      $region40: #{tpu_custom_call.1} parent=5 // pred_fallthru
        _
      %p394 = scmp.le.s32.totalorder 1, %s25
      %p395 = scmp.lt.s32.totalorder %s25, 3
      %p396 = pnand %p394, %p395
      %p397 = pneg %p396
      // Predicated region
      $region57: #{tpu_custom_call.1} parent=5 // pred_check
        _
      $region58: #{tpu_custom_call.1} parent=5 // pred_check_branch
        %399 = sbr.rel (%p396) target = $region60
      $region59: #{tpu_custom_call.1} parent=5 // pred_region
        %s400 = ssub.s32 %s25, 1
        %s401 = sand.u32 %s38, 1
        %s402 = scalar_lea.sflag [#allocation3], %s401
        %s403 = sand.u32 %s38, 1
        %s404 = smul.addr %s403, 192
        %s405 = scalar_lea.vmem [#allocation2], %s404
        // Predicated region
        $region61: #{tpu_custom_call.1} parent=59 // pred_check
          %p406 = pneg %p51
        $region62: #{tpu_custom_call.1} parent=59 // pred_check_branch
          %408 = sbr.rel (%p406) target = $region64
        $region63: #{tpu_custom_call.1} parent=59 // pred_region
          %409 = dma.done %s402, 3072
        $region64: #{tpu_custom_call.1} parent=59 // pred_fallthru
          _
        %s410 = sand.u32 %s30, 1
        %s411 = scalar_lea.sflag [#allocation6], %s410
        %s412 = sand.u32 %s64, 1
        %s413 = smul.addr %s412, 192
        %s414 = scalar_lea.vmem [#allocation5], %s413
        // Predicated region
        $region65: #{tpu_custom_call.1} parent=59 // pred_check
          %p415 = pneg %p77
        $region66: #{tpu_custom_call.1} parent=59 // pred_check_branch
          %417 = sbr.rel (%p415) target = $region68
        $region67: #{tpu_custom_call.1} parent=59 // pred_region
          %418 = dma.done %s411, 3072
        $region68: #{tpu_custom_call.1} parent=59 // pred_fallthru
          _
        %s419 = sand.u32 %s30, 1
        %s420 = scalar_lea.sflag [#allocation6], %s419
        %s421 = sand.u32 %s90, 1
        %s422 = smul.addr %s421, 192
        %s423 = scalar_lea.vmem [#allocation7], %s422
        // Predicated region
        $region69: #{tpu_custom_call.1} parent=59 // pred_check
          %p424 = pneg %p103
        $region70: #{tpu_custom_call.1} parent=59 // pred_check_branch
          %426 = sbr.rel (%p424) target = $region72
        $region71: #{tpu_custom_call.1} parent=59 // pred_region
          %427 = dma.done %s420, 3072
        $region72: #{tpu_custom_call.1} parent=59 // pred_fallthru
          _
        %s428 = sand.u32 %s38, 1
        %s429 = scalar_lea.sflag [#allocation3], %s428
        %s430 = sand.u32 %s38, 1
        %s431 = smul.addr %s430, 192
        %s432 = scalar_lea.vmem [#allocation2], %s431
        %p433 = pneg %p51
        %p434 = pneg %p48
        %s435 = sand.u32 %s30, 1
        %s436 = scalar_lea.sflag [#allocation6], %s435
        %s437 = sand.u32 %s64, 1
        %s438 = smul.addr %s437, 192
        %s439 = scalar_lea.vmem [#allocation5], %s438
        %p440 = pneg %p77
        %p441 = pneg %p74
        %s442 = sand.u32 %s30, 1
        %s443 = scalar_lea.sflag [#allocation6], %s442
        %s444 = sand.u32 %s90, 1
        %s445 = smul.addr %s444, 192
        %s446 = scalar_lea.vmem [#allocation7], %s445
        %p447 = pneg %p103
        %p448 = pneg %p100
        %s449 = smul.u32 12, %s30
        %p450 = scmp.lt.s32.totalorder %s449, 23
        %s451 = scalar_select %p450, %s449, 23
        %s452 = smul.addr %s451, 2
        %s453 = smul.addr %s452, 2
        %s454 = scalar_lea.vmem %s3, %s453
        %p455 = pneg %p129
        %p456 = pneg %p126
        %p457 = pneg %p150
        %p458 = pneg %p147
        %p459 = pneg %p171
        %p460 = pneg %p168
        %p461 = pneg %p192
        %p462 = pneg %p189
        %p463 = pneg %p213
        %p464 = pneg %p210
        %p465 = pneg %p234
        %p466 = pneg %p231
        %p467 = pneg %p255
        %p468 = pneg %p252
        %p469 = pneg %p281
        %p470 = pneg %p278
        %s471 = sand.u32 %s268, 1
        %s472 = scalar_lea.sflag [#allocation4], %s471
        %s473 = sand.u32 %s268, 1
        %s474 = smul.addr %s473, 192
        %s475 = scalar_lea.vmem [#allocation8], %s474
        %s476 = smul.u32 12, %s30
        %s477 = smul.u32 12, %s30
        %s478 = smul.u32 12, %s30
        %s479 = smul.u32 12, %s30
        %p480 = scmp.lt.s32.totalorder %s479, 23
        %s481 = scalar_select %p480, %s479, 23
        %s482 = smul.addr %s481, 2
        %s483 = smul.addr %s482, 2
        %s484 = scalar_lea.vmem %s3, %s483
        %s485 = smul.u32 12, %s30
        %s486 = smul.u32 12, %s30
        %v487 = vld [vmem:[%s405] sm:$0xff]
        %v488 = vld [vmem:[%s405 + $0x8] sm:$0xff]
        %v489 = vld [vmem:[%s405 + $0x10] sm:$0xff]
        %v490 = vld [vmem:[%s405 + $0x18] sm:$0xff]
        %v491 = vld [vmem:[%s405 + $0x20] sm:$0xff]
        %v492 = vld [vmem:[%s405 + $0x28] sm:$0xff]
        %v493 = vld [vmem:[%s405 + $0x30] sm:$0xff]
        %v494 = vld [vmem:[%s405 + $0x38] sm:$0xff]
        %v495 = vld [vmem:[%s405 + $0x40] sm:$0xff]
        %v496 = vld [vmem:[%s405 + $0x48] sm:$0xff]
        %v497 = vld [vmem:[%s405 + $0x50] sm:$0xff]
        %v498 = vld [vmem:[%s405 + $0x58] sm:$0xff]
        %v499 = vld [vmem:[%s405 + $0x60] sm:$0xff]
        %v500 = vld [vmem:[%s405 + $0x68] sm:$0xff]
        %v501 = vld [vmem:[%s405 + $0x70] sm:$0xff]
        %v502 = vld [vmem:[%s405 + $0x78] sm:$0xff]
        %v503 = vld [vmem:[%s405 + $0x80] sm:$0xff]
        %v504 = vld [vmem:[%s405 + $0x88] sm:$0xff]
        %v505 = vld [vmem:[%s405 + $0x90] sm:$0xff]
        %v506 = vld [vmem:[%s405 + $0x98] sm:$0xff]
        %v507 = vld [vmem:[%s405 + $0xa0] sm:$0xff]
        %v508 = vld [vmem:[%s405 + $0xa8] sm:$0xff]
        %v509 = vld [vmem:[%s405 + $0xb0] sm:$0xff]
        %v510 = vld [vmem:[%s405 + $0xb8] sm:$0xff]
        %v511 = vld [vmem:[%s414] sm:$0xff]
        %v512 = vld [vmem:[%s414 + $0x8] sm:$0xff]
        %v513 = vld [vmem:[%s414 + $0x10] sm:$0xff]
        %v514 = vld [vmem:[%s414 + $0x18] sm:$0xff]
        %v515 = vld [vmem:[%s414 + $0x20] sm:$0xff]
        %v516 = vld [vmem:[%s414 + $0x28] sm:$0xff]
        %v517 = vld [vmem:[%s414 + $0x30] sm:$0xff]
        %v518 = vld [vmem:[%s414 + $0x38] sm:$0xff]
        %v519 = vld [vmem:[%s414 + $0x40] sm:$0xff]
        %v520 = vld [vmem:[%s414 + $0x48] sm:$0xff]
        %v521 = vld [vmem:[%s414 + $0x50] sm:$0xff]
        %v522 = vld [vmem:[%s414 + $0x58] sm:$0xff]
        %v523 = vld [vmem:[%s414 + $0x60] sm:$0xff]
        %v524 = vld [vmem:[%s414 + $0x68] sm:$0xff]
        %v525 = vld [vmem:[%s414 + $0x70] sm:$0xff]
        %v526 = vld [vmem:[%s414 + $0x78] sm:$0xff]
        %v527 = vld [vmem:[%s414 + $0x80] sm:$0xff]
        %v528 = vld [vmem:[%s414 + $0x88] sm:$0xff]
        %v529 = vld [vmem:[%s414 + $0x90] sm:$0xff]
        %v530 = vld [vmem:[%s414 + $0x98] sm:$0xff]
        %v531 = vld [vmem:[%s414 + $0xa0] sm:$0xff]
        %v532 = vld [vmem:[%s414 + $0xa8] sm:$0xff]
        %v533 = vld [vmem:[%s414 + $0xb0] sm:$0xff]
        %v534 = vld [vmem:[%s414 + $0xb8] sm:$0xff]
        %v535 = vld [vmem:[%s423] sm:$0xff]
        %v536 = vld [vmem:[%s423 + $0x8] sm:$0xff]
        %v537 = vld [vmem:[%s423 + $0x10] sm:$0xff]
        %v538 = vld [vmem:[%s423 + $0x18] sm:$0xff]
        %v539 = vld [vmem:[%s423 + $0x20] sm:$0xff]
        %v540 = vld [vmem:[%s423 + $0x28] sm:$0xff]
        %v541 = vld [vmem:[%s423 + $0x30] sm:$0xff]
        %v542 = vld [vmem:[%s423 + $0x38] sm:$0xff]
        %v543 = vld [vmem:[%s423 + $0x40] sm:$0xff]
        %v544 = vld [vmem:[%s423 + $0x48] sm:$0xff]
        %v545 = vld [vmem:[%s423 + $0x50] sm:$0xff]
        %v546 = vld [vmem:[%s423 + $0x58] sm:$0xff]
        %v547 = vld [vmem:[%s423 + $0x60] sm:$0xff]
        %v548 = vld [vmem:[%s423 + $0x68] sm:$0xff]
        %v549 = vld [vmem:[%s423 + $0x70] sm:$0xff]
        %v550 = vld [vmem:[%s423 + $0x78] sm:$0xff]
        %v551 = vld [vmem:[%s423 + $0x80] sm:$0xff]
        %v552 = vld [vmem:[%s423 + $0x88] sm:$0xff]
        %v553 = vld [vmem:[%s423 + $0x90] sm:$0xff]
        %v554 = vld [vmem:[%s423 + $0x98] sm:$0xff]
        %v555 = vld [vmem:[%s423 + $0xa0] sm:$0xff]
        %v556 = vld [vmem:[%s423 + $0xa8] sm:$0xff]
        %v557 = vld [vmem:[%s423 + $0xb0] sm:$0xff]
        %v558 = vld [vmem:[%s423 + $0xb8] sm:$0xff]
        %v559 = vld [vmem:[%s4] sm:$0xff]
        %v560 = vld [vmem:[%s4 + $0x8] sm:$0xff]
        %v561 = vld [vmem:[%s4 + $0x10] sm:$0xff]
        %v562 = vld [vmem:[%s4 + $0x18] sm:$0xff]
        %v563 = vld [vmem:[%s4 + $0x20] sm:$0xff]
        %v564 = vld [vmem:[%s4 + $0x28] sm:$0xff]
        %v565 = vld [vmem:[%s4 + $0x30] sm:$0xff]
        %v566 = vld [vmem:[%s4 + $0x38] sm:$0xff]
        %v567 = vld [vmem:[%s5] sm:$0x1]
        %v569 = vlaneseq
        %v570 = vshrl.u32 %v569, 7
        %v571 = vsub.s32 0, %v570
        %v572 = vrot.slane %v567, %v571
        %vm574 = vcmask 523264
        %v576 = vsel %vm574, %v487, 0
        %v579 = vsel %vm574, %v488, 0
        %v582 = vsel %vm574, %v489, 0
        %v585 = vsel %vm574, %v490, 0
        %v588 = vsel %vm574, %v491, 0
        %v591 = vsel %vm574, %v492, 0
        %v594 = vsel %vm574, %v493, 0
        %v597 = vsel %vm574, %v494, 0
        %v600 = vsel %vm574, %v495, 0
        %v603 = vsel %vm574, %v496, 0
        %v606 = vsel %vm574, %v497, 0
        %v609 = vsel %vm574, %v498, 0
        %v612 = vsel %vm574, %v499, 0
        %v615 = vsel %vm574, %v500, 0
        %v618 = vsel %vm574, %v501, 0
        %v621 = vsel %vm574, %v502, 0
        %v624 = vsel %vm574, %v503, 0
        %v627 = vsel %vm574, %v504, 0
        %v630 = vsel %vm574, %v505, 0
        %v633 = vsel %vm574, %v506, 0
        %v636 = vsel %vm574, %v507, 0
        %v639 = vsel %vm574, %v508, 0
        %v642 = vsel %vm574, %v509, 0
        %v645 = vsel %vm574, %v510, 0
        %v648 = vsel %vm574, %v511, 0
        %v651 = vsel %vm574, %v512, 0
        %v654 = vsel %vm574, %v513, 0
        %v657 = vsel %vm574, %v514, 0
        %v660 = vsel %vm574, %v515, 0
        %v663 = vsel %vm574, %v516, 0
        %v666 = vsel %vm574, %v517, 0
        %v669 = vsel %vm574, %v518, 0
        %v672 = vsel %vm574, %v519, 0
        %v675 = vsel %vm574, %v520, 0
        %v678 = vsel %vm574, %v521, 0
        %v681 = vsel %vm574, %v522, 0
        %v684 = vsel %vm574, %v523, 0
        %v687 = vsel %vm574, %v524, 0
        %v690 = vsel %vm574, %v525, 0
        %v693 = vsel %vm574, %v526, 0
        %v696 = vsel %vm574, %v527, 0
        %v699 = vsel %vm574, %v528, 0
        %v702 = vsel %vm574, %v529, 0
        %v705 = vsel %vm574, %v530, 0
        %v708 = vsel %vm574, %v531, 0
        %v711 = vsel %vm574, %v532, 0
        %v714 = vsel %vm574, %v533, 0
        %v717 = vsel %vm574, %v534, 0
        %v720 = vsel %vm574, %v535, 0
        %v723 = vsel %vm574, %v536, 0
        %v726 = vsel %vm574, %v537, 0
        %v729 = vsel %vm574, %v538, 0
        %v732 = vsel %vm574, %v539, 0
        %v735 = vsel %vm574, %v540, 0
        %v738 = vsel %vm574, %v541, 0
        %v741 = vsel %vm574, %v542, 0
        %v744 = vsel %vm574, %v543, 0
        %v747 = vsel %vm574, %v544, 0
        %v750 = vsel %vm574, %v545, 0
        %v753 = vsel %vm574, %v546, 0
        %v756 = vsel %vm574, %v547, 0
        %v759 = vsel %vm574, %v548, 0
        %v762 = vsel %vm574, %v549, 0
        %v765 = vsel %vm574, %v550, 0
        %v768 = vsel %vm574, %v551, 0
        %v771 = vsel %vm574, %v552, 0
        %v774 = vsel %vm574, %v553, 0
        %v777 = vsel %vm574, %v554, 0
        %v780 = vsel %vm574, %v555, 0
        %v783 = vsel %vm574, %v556, 0
        %v786 = vsel %vm574, %v557, 0
        %v789 = vsel %vm574, %v558, 0
        %791 = vmatprep.subr.mxu0 0.0
        %792 = vmatpush1.msra.mxu0 0.0
        %793 = vmatprep.subr.mxu0 0.0
        %794 = vmatpush1.msra.mxu0 0.0
        %795 = vmatprep.subr.mxu0 0.0
        %796 = vmatpush1.msra.mxu0 0.0
        %797 = vmatprep.subr.mxu0 0.0
        %798 = vmatpush1.msra.mxu0 0.0
        %799 = vmatprep.subr.mxu0 0.0
        %800 = vmatpush1.msra.mxu0 0.0
        %801 = vmatprep.subr.mxu0 0.0
        %802 = vmatpush1.msra.mxu0 0.0
        %803 = vmatprep.subr.mxu0 0.0
        %804 = vmatpush1.msra.mxu0 0.0
        %805 = vmatprep.subr.mxu0 0.0
        %806 = vmatpush1.msra.mxu0 0.0
        %807 = vmatprep.subr.mxu0 0.0
        %808 = vmatpush1.msra.mxu0 %v566
        %809 = vmatprep.subr.mxu0 0.0
        %810 = vmatpush1.msra.mxu0 %v565
        %811 = vmatprep.subr.mxu0 0.0
        %812 = vmatpush1.msra.mxu0 %v564
        %813 = vmatprep.subr.mxu0 0.0
        %814 = vmatpush1.msra.mxu0 %v563
        %815 = vmatprep.subr.mxu0 0.0
        %816 = vmatpush1.msra.mxu0 %v562
        %817 = vmatprep.subr.mxu0 0.0
        %818 = vmatpush1.msra.mxu0 %v561
        %819 = vmatprep.subr.mxu0 0.0
        %820 = vmatpush1.msra.mxu0 %v560
        %821 = vmatprep.subr.mxu0 0.0
        %822 = vmatpush1.msra.mxu0 %v559
        %823 = vmatprep.subr.mxu0 0.0
        %824 = vmatpush2.msra.mxu0 0.0
        %825 = vmatprep.subr.mxu0 0.0
        %826 = vmatpush2.msra.mxu0 0.0
        %827 = vmatprep.subr.mxu0 0.0
        %828 = vmatpush2.msra.mxu0 0.0
        %829 = vmatprep.subr.mxu0 0.0
        %830 = vmatpush2.msra.mxu0 0.0
        %831 = vmatprep.subr.mxu0 0.0
        %832 = vmatpush2.msra.mxu0 0.0
        %833 = vmatprep.subr.mxu0 0.0
        %834 = vmatpush2.msra.mxu0 0.0
        %835 = vmatprep.subr.mxu0 0.0
        %836 = vmatpush2.msra.mxu0 0.0
        %837 = vmatprep.subr.mxu0 0.0
        %838 = vmatpush2.msra.mxu0 0.0
        %839 = vmatprep.subr.mxu0 0.0
        %840 = vmatpush2.msra.mxu0 0.0
        %841 = vmatprep.subr.mxu0 0.0
        %842 = vmatpush2.msra.mxu0 0.0
        %843 = vmatprep.subr.mxu0 0.0
        %844 = vmatpush2.msra.mxu0 0.0
        %845 = vmatprep.subr.mxu0 0.0
        %846 = vmatpush2.msra.mxu0 0.0
        %847 = vmatprep.subr.mxu0 0.0
        %848 = vmatpush2.msra.mxu0 0.0
        %849 = vmatprep.subr.mxu0 0.0
        %850 = vmatpush2.msra.mxu0 0.0
        %851 = vmatprep.subr.mxu0 0.0
        %852 = vmatpush2.msra.mxu0 0.0
        %853 = vmatprep.subr.mxu0 0.0
        %854 = vmatpush2.msra.mxu0 0.0
        %855 = vmatprep.mubr.f32.mxu0 0.0
        %856 = vmatmul.mubr.f32.gmra.mxu0 %v576
        %v857 = vpop.f32.mrf.mxu0
        %v858 = vadd.f32 %v572, %v857
        %v859 = vpop.f32.mrf.mxu0
        %860 = vmatprep.mubr.f32.mxu0 0.0
        %861 = vmatmul.mubr.f32.gmra.mxu0 %v579
        %v862 = vpop.f32.mrf.mxu0
        %v863 = vadd.f32 %v572, %v862
        %v864 = vpop.f32.mrf.mxu0
        %865 = vmatprep.mubr.f32.mxu0 0.0
        %866 = vmatmul.mubr.f32.gmra.mxu0 %v582
        %v867 = vpop.f32.mrf.mxu0
        %v868 = vadd.f32 %v572, %v867
        %v869 = vpop.f32.mrf.mxu0
        %870 = vmatprep.mubr.f32.mxu0 0.0
        %871 = vmatmul.mubr.f32.gmra.mxu0 %v585
        %v872 = vpop.f32.mrf.mxu0
        %v873 = vadd.f32 %v572, %v872
        %v874 = vpop.f32.mrf.mxu0
        %875 = vmatprep.mubr.f32.mxu0 0.0
        %876 = vmatmul.mubr.f32.gmra.mxu0 %v588
        %v877 = vpop.f32.mrf.mxu0
        %v878 = vadd.f32 %v572, %v877
        %v879 = vpop.f32.mrf.mxu0
        %880 = vmatprep.mubr.f32.mxu0 0.0
        %881 = vmatmul.mubr.f32.gmra.mxu0 %v591
        %v882 = vpop.f32.mrf.mxu0
        %v883 = vadd.f32 %v572, %v882
        %v884 = vpop.f32.mrf.mxu0
        %885 = vmatprep.mubr.f32.mxu0 0.0
        %886 = vmatmul.mubr.f32.gmra.mxu0 %v594
        %v887 = vpop.f32.mrf.mxu0
        %v888 = vadd.f32 %v572, %v887
        %v889 = vpop.f32.mrf.mxu0
        %890 = vmatprep.mubr.f32.mxu0 0.0
        %891 = vmatmul.mubr.f32.gmra.mxu0 %v597
        %v892 = vpop.f32.mrf.mxu0
        %v893 = vadd.f32 %v572, %v892
        %v894 = vpop.f32.mrf.mxu0
        %895 = vmatprep.mubr.f32.mxu0 0.0
        %896 = vmatmul.mubr.f32.gmra.mxu0 %v600
        %v897 = vpop.f32.mrf.mxu0
        %v898 = vadd.f32 %v572, %v897
        %v899 = vpop.f32.mrf.mxu0
        %900 = vmatprep.mubr.f32.mxu0 0.0
        %901 = vmatmul.mubr.f32.gmra.mxu0 %v603
        %v902 = vpop.f32.mrf.mxu0
        %v903 = vadd.f32 %v572, %v902
        %v904 = vpop.f32.mrf.mxu0
        %905 = vmatprep.mubr.f32.mxu0 0.0
        %906 = vmatmul.mubr.f32.gmra.mxu0 %v606
        %v907 = vpop.f32.mrf.mxu0
        %v908 = vadd.f32 %v572, %v907
        %v909 = vpop.f32.mrf.mxu0
        %910 = vmatprep.mubr.f32.mxu0 0.0
        %911 = vmatmul.mubr.f32.gmra.mxu0 %v609
        %v912 = vpop.f32.mrf.mxu0
        %v913 = vadd.f32 %v572, %v912
        %v914 = vpop.f32.mrf.mxu0
        %915 = vmatprep.mubr.f32.mxu0 0.0
        %916 = vmatmul.mubr.f32.gmra.mxu0 %v612
        %v917 = vpop.f32.mrf.mxu0
        %v918 = vadd.f32 %v572, %v917
        %v919 = vpop.f32.mrf.mxu0
        %920 = vmatprep.mubr.f32.mxu0 0.0
        %921 = vmatmul.mubr.f32.gmra.mxu0 %v615
        %v922 = vpop.f32.mrf.mxu0
        %v923 = vadd.f32 %v572, %v922
        %v924 = vpop.f32.mrf.mxu0
        %925 = vmatprep.mubr.f32.mxu0 0.0
        %926 = vmatmul.mubr.f32.gmra.mxu0 %v618
        %v927 = vpop.f32.mrf.mxu0
        %v928 = vadd.f32 %v572, %v927
        %v929 = vpop.f32.mrf.mxu0
        %930 = vmatprep.mubr.f32.mxu0 0.0
        %931 = vmatmul.mubr.f32.gmra.mxu0 %v621
        %v932 = vpop.f32.mrf.mxu0
        %v933 = vadd.f32 %v572, %v932
        %v934 = vpop.f32.mrf.mxu0
        %935 = vmatprep.mubr.f32.mxu0 0.0
        %936 = vmatmul.mubr.f32.gmra.mxu0 %v624
        %v937 = vpop.f32.mrf.mxu0
        %v938 = vadd.f32 %v572, %v937
        %v939 = vpop.f32.mrf.mxu0
        %940 = vmatprep.mubr.f32.mxu0 0.0
        %941 = vmatmul.mubr.f32.gmra.mxu0 %v627
        %v942 = vpop.f32.mrf.mxu0
        %v943 = vadd.f32 %v572, %v942
        %v944 = vpop.f32.mrf.mxu0
        %945 = vmatprep.mubr.f32.mxu0 0.0
        %946 = vmatmul.mubr.f32.gmra.mxu0 %v630
        %v947 = vpop.f32.mrf.mxu0
        %v948 = vadd.f32 %v572, %v947
        %v949 = vpop.f32.mrf.mxu0
        %950 = vmatprep.mubr.f32.mxu0 0.0
        %951 = vmatmul.mubr.f32.gmra.mxu0 %v633
        %v952 = vpop.f32.mrf.mxu0
        %v953 = vadd.f32 %v572, %v952
        %v954 = vpop.f32.mrf.mxu0
        %955 = vmatprep.mubr.f32.mxu0 0.0
        %956 = vmatmul.mubr.f32.gmra.mxu0 %v636
        %v957 = vpop.f32.mrf.mxu0
        %v958 = vadd.f32 %v572, %v957
        %v959 = vpop.f32.mrf.mxu0
        %960 = vmatprep.mubr.f32.mxu0 0.0
        %961 = vmatmul.mubr.f32.gmra.mxu0 %v639
        %v962 = vpop.f32.mrf.mxu0
        %v963 = vadd.f32 %v572, %v962
        %v964 = vpop.f32.mrf.mxu0
        %965 = vmatprep.mubr.f32.mxu0 0.0
        %966 = vmatmul.mubr.f32.gmra.mxu0 %v642
        %v967 = vpop.f32.mrf.mxu0
        %v968 = vadd.f32 %v572, %v967
        %v969 = vpop.f32.mrf.mxu0
        %970 = vmatprep.mubr.f32.mxu0 0.0
        %971 = vmatmul.mubr.f32.gmra.mxu0 %v645
        %v972 = vpop.f32.mrf.mxu0
        %v973 = vadd.f32 %v572, %v972
        %v974 = vpop.f32.mrf.mxu0
        %975 = vmatprep.mubr.f32.mxu0 0.0
        %976 = vmatmul.mubr.f32.gmra.mxu0 %v648
        %v977 = vpop.f32.mrf.mxu0
        %v978 = vadd.f32 %v572, %v977
        %v979 = vpop.f32.mrf.mxu0
        %980 = vmatprep.mubr.f32.mxu0 0.0
        %981 = vmatmul.mubr.f32.gmra.mxu0 %v651
        %v982 = vpop.f32.mrf.mxu0
        %v983 = vadd.f32 %v572, %v982
        %v984 = vpop.f32.mrf.mxu0
        %985 = vmatprep.mubr.f32.mxu0 0.0
        %986 = vmatmul.mubr.f32.gmra.mxu0 %v654
        %v987 = vpop.f32.mrf.mxu0
        %v988 = vadd.f32 %v572, %v987
        %v989 = vpop.f32.mrf.mxu0
        %990 = vmatprep.mubr.f32.mxu0 0.0
        %991 = vmatmul.mubr.f32.gmra.mxu0 %v657
        %v992 = vpop.f32.mrf.mxu0
        %v993 = vadd.f32 %v572, %v992
        %v994 = vpop.f32.mrf.mxu0
        %995 = vmatprep.mubr.f32.mxu0 0.0
        %996 = vmatmul.mubr.f32.gmra.mxu0 %v660
        %v997 = vpop.f32.mrf.mxu0
        %v998 = vadd.f32 %v572, %v997
        %v999 = vpop.f32.mrf.mxu0
        %1000 = vmatprep.mubr.f32.mxu0 0.0
        %1001 = vmatmul.mubr.f32.gmra.mxu0 %v663
        %v1002 = vpop.f32.mrf.mxu0
        %v1003 = vadd.f32 %v572, %v1002
        %v1004 = vpop.f32.mrf.mxu0
        %1005 = vmatprep.mubr.f32.mxu0 0.0
        %1006 = vmatmul.mubr.f32.gmra.mxu0 %v666
        %v1007 = vpop.f32.mrf.mxu0
        %v1008 = vadd.f32 %v572, %v1007
        %v1009 = vpop.f32.mrf.mxu0
        %1010 = vmatprep.mubr.f32.mxu0 0.0
        %1011 = vmatmul.mubr.f32.gmra.mxu0 %v669
        %v1012 = vpop.f32.mrf.mxu0
        %v1013 = vadd.f32 %v572, %v1012
        %v1014 = vpop.f32.mrf.mxu0
        %1015 = vmatprep.mubr.f32.mxu0 0.0
        %1016 = vmatmul.mubr.f32.gmra.mxu0 %v672
        %v1017 = vpop.f32.mrf.mxu0
        %v1018 = vadd.f32 %v572, %v1017
        %v1019 = vpop.f32.mrf.mxu0
        %1020 = vmatprep.mubr.f32.mxu0 0.0
        %1021 = vmatmul.mubr.f32.gmra.mxu0 %v675
        %v1022 = vpop.f32.mrf.mxu0
        %v1023 = vadd.f32 %v572, %v1022
        %v1024 = vpop.f32.mrf.mxu0
        %1025 = vmatprep.mubr.f32.mxu0 0.0
        %1026 = vmatmul.mubr.f32.gmra.mxu0 %v678
        %v1027 = vpop.f32.mrf.mxu0
        %v1028 = vadd.f32 %v572, %v1027
        %v1029 = vpop.f32.mrf.mxu0
        %1030 = vmatprep.mubr.f32.mxu0 0.0
        %1031 = vmatmul.mubr.f32.gmra.mxu0 %v681
        %v1032 = vpop.f32.mrf.mxu0
        %v1033 = vadd.f32 %v572, %v1032
        %v1034 = vpop.f32.mrf.mxu0
        %1035 = vmatprep.mubr.f32.mxu0 0.0
        %1036 = vmatmul.mubr.f32.gmra.mxu0 %v684
        %v1037 = vpop.f32.mrf.mxu0
        %v1038 = vadd.f32 %v572, %v1037
        %v1039 = vpop.f32.mrf.mxu0
        %1040 = vmatprep.mubr.f32.mxu0 0.0
        %1041 = vmatmul.mubr.f32.gmra.mxu0 %v687
        %v1042 = vpop.f32.mrf.mxu0
        %v1043 = vadd.f32 %v572, %v1042
        %v1044 = vpop.f32.mrf.mxu0
        %1045 = vmatprep.mubr.f32.mxu0 0.0
        %1046 = vmatmul.mubr.f32.gmra.mxu0 %v690
        %v1047 = vpop.f32.mrf.mxu0
        %v1048 = vadd.f32 %v572, %v1047
        %v1049 = vpop.f32.mrf.mxu0
        %1050 = vmatprep.mubr.f32.mxu0 0.0
        %1051 = vmatmul.mubr.f32.gmra.mxu0 %v693
        %v1052 = vpop.f32.mrf.mxu0
        %v1053 = vadd.f32 %v572, %v1052
        %v1054 = vpop.f32.mrf.mxu0
        %1055 = vmatprep.mubr.f32.mxu0 0.0
        %1056 = vmatmul.mubr.f32.gmra.mxu0 %v696
        %v1057 = vpop.f32.mrf.mxu0
        %v1058 = vadd.f32 %v572, %v1057
        %v1059 = vpop.f32.mrf.mxu0
        %1060 = vmatprep.mubr.f32.mxu0 0.0
        %1061 = vmatmul.mubr.f32.gmra.mxu0 %v699
        %v1062 = vpop.f32.mrf.mxu0
        %v1063 = vadd.f32 %v572, %v1062
        %v1064 = vpop.f32.mrf.mxu0
        %1065 = vmatprep.mubr.f32.mxu0 0.0
        %1066 = vmatmul.mubr.f32.gmra.mxu0 %v702
        %v1067 = vpop.f32.mrf.mxu0
        %v1068 = vadd.f32 %v572, %v1067
        %v1069 = vpop.f32.mrf.mxu0
        %1070 = vmatprep.mubr.f32.mxu0 0.0
        %1071 = vmatmul.mubr.f32.gmra.mxu0 %v705
        %v1072 = vpop.f32.mrf.mxu0
        %v1073 = vadd.f32 %v572, %v1072
        %v1074 = vpop.f32.mrf.mxu0
        %1075 = vmatprep.mubr.f32.mxu0 0.0
        %1076 = vmatmul.mubr.f32.gmra.mxu0 %v708
        %v1077 = vpop.f32.mrf.mxu0
        %v1078 = vadd.f32 %v572, %v1077
        %v1079 = vpop.f32.mrf.mxu0
        %1080 = vmatprep.mubr.f32.mxu0 0.0
        %1081 = vmatmul.mubr.f32.gmra.mxu0 %v711
        %v1082 = vpop.f32.mrf.mxu0
        %v1083 = vadd.f32 %v572, %v1082
        %v1084 = vpop.f32.mrf.mxu0
        %1085 = vmatprep.mubr.f32.mxu0 0.0
        %1086 = vmatmul.mubr.f32.gmra.mxu0 %v714
        %v1087 = vpop.f32.mrf.mxu0
        %v1088 = vadd.f32 %v572, %v1087
        %v1089 = vpop.f32.mrf.mxu0
        %1090 = vmatprep.mubr.f32.mxu0 0.0
        %1091 = vmatmul.mubr.f32.gmra.mxu0 %v717
        %v1092 = vpop.f32.mrf.mxu0
        %v1093 = vadd.f32 %v572, %v1092
        %v1094 = vpop.f32.mrf.mxu0
        %1095 = vmatprep.mubr.f32.mxu0 0.0
        %1096 = vmatmul.mubr.f32.gmra.mxu0 %v720
        %v1097 = vpop.f32.mrf.mxu0
        %v1098 = vadd.f32 %v572, %v1097
        %v1099 = vpop.f32.mrf.mxu0
        %1100 = vmatprep.mubr.f32.mxu0 0.0
        %1101 = vmatmul.mubr.f32.gmra.mxu0 %v723
        %v1102 = vpop.f32.mrf.mxu0
        %v1103 = vadd.f32 %v572, %v1102
        %v1104 = vpop.f32.mrf.mxu0
        %1105 = vmatprep.mubr.f32.mxu0 0.0
        %1106 = vmatmul.mubr.f32.gmra.mxu0 %v726
        %v1107 = vpop.f32.mrf.mxu0
        %v1108 = vadd.f32 %v572, %v1107
        %v1109 = vpop.f32.mrf.mxu0
        %1110 = vmatprep.mubr.f32.mxu0 0.0
        %1111 = vmatmul.mubr.f32.gmra.mxu0 %v729
        %v1112 = vpop.f32.mrf.mxu0
        %v1113 = vadd.f32 %v572, %v1112
        %v1114 = vpop.f32.mrf.mxu0
        %1115 = vmatprep.mubr.f32.mxu0 0.0
        %1116 = vmatmul.mubr.f32.gmra.mxu0 %v732
        %v1117 = vpop.f32.mrf.mxu0
        %v1118 = vadd.f32 %v572, %v1117
        %v1119 = vpop.f32.mrf.mxu0
        %1120 = vmatprep.mubr.f32.mxu0 0.0
        %1121 = vmatmul.mubr.f32.gmra.mxu0 %v735
        %v1122 = vpop.f32.mrf.mxu0
        %v1123 = vadd.f32 %v572, %v1122
        %v1124 = vpop.f32.mrf.mxu0
        %1125 = vmatprep.mubr.f32.mxu0 0.0
        %1126 = vmatmul.mubr.f32.gmra.mxu0 %v738
        %v1127 = vpop.f32.mrf.mxu0
        %v1128 = vadd.f32 %v572, %v1127
        %v1129 = vpop.f32.mrf.mxu0
        %1130 = vmatprep.mubr.f32.mxu0 0.0
        %1131 = vmatmul.mubr.f32.gmra.mxu0 %v741
        %v1132 = vpop.f32.mrf.mxu0
        %v1133 = vadd.f32 %v572, %v1132
        %v1134 = vpop.f32.mrf.mxu0
        %1135 = vmatprep.mubr.f32.mxu0 0.0
        %1136 = vmatmul.mubr.f32.gmra.mxu0 %v744
        %v1137 = vpop.f32.mrf.mxu0
        %v1138 = vadd.f32 %v572, %v1137
        %v1139 = vpop.f32.mrf.mxu0
        %1140 = vmatprep.mubr.f32.mxu0 0.0
        %1141 = vmatmul.mubr.f32.gmra.mxu0 %v747
        %v1142 = vpop.f32.mrf.mxu0
        %v1143 = vadd.f32 %v572, %v1142
        %v1144 = vpop.f32.mrf.mxu0
        %1145 = vmatprep.mubr.f32.mxu0 0.0
        %1146 = vmatmul.mubr.f32.gmra.mxu0 %v750
        %v1147 = vpop.f32.mrf.mxu0
        %v1148 = vadd.f32 %v572, %v1147
        %v1149 = vpop.f32.mrf.mxu0
        %1150 = vmatprep.mubr.f32.mxu0 0.0
        %1151 = vmatmul.mubr.f32.gmra.mxu0 %v753
        %v1152 = vpop.f32.mrf.mxu0
        %v1153 = vadd.f32 %v572, %v1152
        %v1154 = vpop.f32.mrf.mxu0
        %1155 = vmatprep.mubr.f32.mxu0 0.0
        %1156 = vmatmul.mubr.f32.gmra.mxu0 %v756
        %v1157 = vpop.f32.mrf.mxu0
        %v1158 = vadd.f32 %v572, %v1157
        %v1159 = vpop.f32.mrf.mxu0
        %1160 = vmatprep.mubr.f32.mxu0 0.0
        %1161 = vmatmul.mubr.f32.gmra.mxu0 %v759
        %v1162 = vpop.f32.mrf.mxu0
        %v1163 = vadd.f32 %v572, %v1162
        %v1164 = vpop.f32.mrf.mxu0
        %1165 = vmatprep.mubr.f32.mxu0 0.0
        %1166 = vmatmul.mubr.f32.gmra.mxu0 %v762
        %v1167 = vpop.f32.mrf.mxu0
        %v1168 = vadd.f32 %v572, %v1167
        %v1169 = vpop.f32.mrf.mxu0
        %1170 = vmatprep.mubr.f32.mxu0 0.0
        %1171 = vmatmul.mubr.f32.gmra.mxu0 %v765
        %v1172 = vpop.f32.mrf.mxu0
        %v1173 = vadd.f32 %v572, %v1172
        %v1174 = vpop.f32.mrf.mxu0
        %1175 = vmatprep.mubr.f32.mxu0 0.0
        %1176 = vmatmul.mubr.f32.gmra.mxu0 %v768
        %v1177 = vpop.f32.mrf.mxu0
        %v1178 = vadd.f32 %v572, %v1177
        %v1179 = vpop.f32.mrf.mxu0
        %1180 = vmatprep.mubr.f32.mxu0 0.0
        %1181 = vmatmul.mubr.f32.gmra.mxu0 %v771
        %v1182 = vpop.f32.mrf.mxu0
        %v1183 = vadd.f32 %v572, %v1182
        %v1184 = vpop.f32.mrf.mxu0
        %1185 = vmatprep.mubr.f32.mxu0 0.0
        %1186 = vmatmul.mubr.f32.gmra.mxu0 %v774
        %v1187 = vpop.f32.mrf.mxu0
        %v1188 = vadd.f32 %v572, %v1187
        %v1189 = vpop.f32.mrf.mxu0
        %1190 = vmatprep.mubr.f32.mxu0 0.0
        %1191 = vmatmul.mubr.f32.gmra.mxu0 %v777
        %v1192 = vpop.f32.mrf.mxu0
        %v1193 = vadd.f32 %v572, %v1192
        %v1194 = vpop.f32.mrf.mxu0
        %1195 = vmatprep.mubr.f32.mxu0 0.0
        %1196 = vmatmul.mubr.f32.gmra.mxu0 %v780
        %v1197 = vpop.f32.mrf.mxu0
        %v1198 = vadd.f32 %v572, %v1197
        %v1199 = vpop.f32.mrf.mxu0
        %1200 = vmatprep.mubr.f32.mxu0 0.0
        %1201 = vmatmul.mubr.f32.gmra.mxu0 %v783
        %v1202 = vpop.f32.mrf.mxu0
        %v1203 = vadd.f32 %v572, %v1202
        %v1204 = vpop.f32.mrf.mxu0
        %1205 = vmatprep.mubr.f32.mxu0 0.0
        %1206 = vmatmul.mubr.f32.gmra.mxu0 %v786
        %v1207 = vpop.f32.mrf.mxu0
        %v1208 = vadd.f32 %v572, %v1207
        %v1209 = vpop.f32.mrf.mxu0
        %1210 = vmatprep.mubr.f32.mxu0 0.0
        %1211 = vmatmul.mubr.f32.gmra.mxu0 %v789
        %v1212 = vpop.f32.mrf.mxu0
        %v1213 = vadd.f32 %v572, %v1212
        %v1214 = vpop.f32.mrf.mxu0
        %1215 = vdwg.mxu0
        %1218 = vrot.lane.b32.xlu0 %v978, 96
        %v1219 = vpop.permute.xlu0 %1218
        %1220 = vrot.lane.b32.xlu0 %v983, 96
        %v1221 = vpop.permute.xlu0 %1220
        %vm1222 = vcmask 261120
        %v1224 = vsel %vm1222, %v858, 0
        %v1227 = vsel %vm1222, %v863, 0
        %v1229 = vsel %vm1222, %v1219, 0
        %v1231 = vsel %vm1222, %v1221, 0
        %1233 = vmatprep.subr.mxu0 0.0
        %1234 = vmatpush1.xpose.msra.mxu0 0.0
        %1235 = vmatprep.subr.mxu0 0.0
        %1236 = vmatpush1.xpose.msra.mxu0 0.0
        %1237 = vmatprep.subr.mxu0 0.0
        %1238 = vmatpush1.xpose.msra.mxu0 0.0
        %1239 = vmatprep.subr.mxu0 0.0
        %1240 = vmatpush1.xpose.msra.mxu0 0.0
        %1241 = vmatprep.subr.mxu0 0.0
        %1242 = vmatpush1.xpose.msra.mxu0 0.0
        %1243 = vmatprep.subr.mxu0 0.0
        %1244 = vmatpush1.xpose.msra.mxu0 0.0
        %1245 = vmatprep.subr.mxu0 0.0
        %1246 = vmatpush1.xpose.msra.mxu0 0.0
        %1247 = vmatprep.subr.mxu0 0.0
        %1248 = vmatpush1.xpose.msra.mxu0 0.0
        %1249 = vmatprep.subr.mxu0 0.0
        %1250 = vmatpush1.xpose.msra.mxu0 0.0
        %1251 = vmatprep.subr.mxu0 0.0
        %1252 = vmatpush1.xpose.msra.mxu0 0.0
        %1253 = vmatprep.subr.mxu0 0.0
        %1254 = vmatpush1.xpose.msra.mxu0 0.0
        %1255 = vmatprep.subr.mxu0 0.0
        %1256 = vmatpush1.xpose.msra.mxu0 0.0
        %1257 = vmatprep.subr.mxu0 0.0
        %1258 = vmatpush1.xpose.msra.mxu0 0.0
        %1259 = vmatprep.subr.mxu0 0.0
        %1260 = vmatpush1.xpose.msra.mxu0 0.0
        %1261 = vmatprep.subr.mxu0 0.0
        %1262 = vmatpush1.xpose.msra.mxu0 %v1231
        %1263 = vmatprep.subr.mxu0 0.0
        %1264 = vmatpush1.xpose.msra.mxu0 %v1229
        %1265 = vmatprep.subr.mxu0 0.0
        %1266 = vmatpush2.xpose.msra.mxu0 0.0
        %1267 = vmatprep.subr.mxu0 0.0
        %1268 = vmatpush2.xpose.msra.mxu0 0.0
        %1269 = vmatprep.subr.mxu0 0.0
        %1270 = vmatpush2.xpose.msra.mxu0 0.0
        %1271 = vmatprep.subr.mxu0 0.0
        %1272 = vmatpush2.xpose.msra.mxu0 0.0
        %1273 = vmatprep.subr.mxu0 0.0
        %1274 = vmatpush2.xpose.msra.mxu0 0.0
        %1275 = vmatprep.subr.mxu0 0.0
        %1276 = vmatpush2.xpose.msra.mxu0 0.0
        %1277 = vmatprep.subr.mxu0 0.0
        %1278 = vmatpush2.xpose.msra.mxu0 0.0
        %1279 = vmatprep.subr.mxu0 0.0
        %1280 = vmatpush2.xpose.msra.mxu0 0.0
        %1281 = vmatprep.subr.mxu0 0.0
        %1282 = vmatpush2.xpose.msra.mxu0 0.0
        %1283 = vmatprep.subr.mxu0 0.0
        %1284 = vmatpush2.xpose.msra.mxu0 0.0
        %1285 = vmatprep.subr.mxu0 0.0
        %1286 = vmatpush2.xpose.msra.mxu0 0.0
        %1287 = vmatprep.subr.mxu0 0.0
        %1288 = vmatpush2.xpose.msra.mxu0 0.0
        %1289 = vmatprep.subr.mxu0 0.0
        %1290 = vmatpush2.xpose.msra.mxu0 0.0
        %1291 = vmatprep.subr.mxu0 0.0
        %1292 = vmatpush2.xpose.msra.mxu0 0.0
        %1293 = vmatprep.subr.mxu0 0.0
        %1294 = vmatpush2.xpose.msra.mxu0 0.0
        %1295 = vmatprep.subr.mxu0 0.0
        %1296 = vmatpush2.xpose.msra.mxu0 0.0
        %1297 = vmatprep.mubr.f32.mxu0 0.0
        %1298 = vmatmul.mubr.f32.gmra.mxu0 %v1224
        %v1299 = vpop.f32.mrf.mxu0
        %v1300 = vadd.f32 0.0, %v1299
        %v1301 = vpop.f32.mrf.mxu0
        %1302 = vmatprep.mubr.f32.mxu0 0.0
        %1303 = vmatmul.mubr.f32.gmra.mxu0 %v1227
        %v1304 = vpop.f32.mrf.mxu0
        %v1305 = vadd.f32 0.0, %v1304
        %v1306 = vpop.f32.mrf.mxu0
        %1307 = vdwg.mxu0
        %1310 = vrot.lane.b32.xlu0 %v988, 96
        %v1311 = vpop.permute.xlu0 %1310
        %1312 = vrot.lane.b32.xlu0 %v993, 96
        %v1313 = vpop.permute.xlu0 %1312
        %v1315 = vsel %vm1222, %v868, 0
        %v1318 = vsel %vm1222, %v873, 0
        %v1320 = vsel %vm1222, %v1311, 0
        %v1322 = vsel %vm1222, %v1313, 0
        %1324 = vmatprep.subr.mxu0 0.0
        %1325 = vmatpush1.xpose.msra.mxu0 0.0
        %1326 = vmatprep.subr.mxu0 0.0
        %1327 = vmatpush1.xpose.msra.mxu0 0.0
        %1328 = vmatprep.subr.mxu0 0.0
        %1329 = vmatpush1.xpose.msra.mxu0 0.0
        %1330 = vmatprep.subr.mxu0 0.0
        %1331 = vmatpush1.xpose.msra.mxu0 0.0
        %1332 = vmatprep.subr.mxu0 0.0
        %1333 = vmatpush1.xpose.msra.mxu0 0.0
        %1334 = vmatprep.subr.mxu0 0.0
        %1335 = vmatpush1.xpose.msra.mxu0 0.0
        %1336 = vmatprep.subr.mxu0 0.0
        %1337 = vmatpush1.xpose.msra.mxu0 0.0
        %1338 = vmatprep.subr.mxu0 0.0
        %1339 = vmatpush1.xpose.msra.mxu0 0.0
        %1340 = vmatprep.subr.mxu0 0.0
        %1341 = vmatpush1.xpose.msra.mxu0 0.0
        %1342 = vmatprep.subr.mxu0 0.0
        %1343 = vmatpush1.xpose.msra.mxu0 0.0
        %1344 = vmatprep.subr.mxu0 0.0
        %1345 = vmatpush1.xpose.msra.mxu0 0.0
        %1346 = vmatprep.subr.mxu0 0.0
        %1347 = vmatpush1.xpose.msra.mxu0 0.0
        %1348 = vmatprep.subr.mxu0 0.0
        %1349 = vmatpush1.xpose.msra.mxu0 0.0
        %1350 = vmatprep.subr.mxu0 0.0
        %1351 = vmatpush1.xpose.msra.mxu0 0.0
        %1352 = vmatprep.subr.mxu0 0.0
        %1353 = vmatpush1.xpose.msra.mxu0 %v1322
        %1354 = vmatprep.subr.mxu0 0.0
        %1355 = vmatpush1.xpose.msra.mxu0 %v1320
        %1356 = vmatprep.subr.mxu0 0.0
        %1357 = vmatpush2.xpose.msra.mxu0 0.0
        %1358 = vmatprep.subr.mxu0 0.0
        %1359 = vmatpush2.xpose.msra.mxu0 0.0
        %1360 = vmatprep.subr.mxu0 0.0
        %1361 = vmatpush2.xpose.msra.mxu0 0.0
        %1362 = vmatprep.subr.mxu0 0.0
        %1363 = vmatpush2.xpose.msra.mxu0 0.0
        %1364 = vmatprep.subr.mxu0 0.0
        %1365 = vmatpush2.xpose.msra.mxu0 0.0
        %1366 = vmatprep.subr.mxu0 0.0
        %1367 = vmatpush2.xpose.msra.mxu0 0.0
        %1368 = vmatprep.subr.mxu0 0.0
        %1369 = vmatpush2.xpose.msra.mxu0 0.0
        %1370 = vmatprep.subr.mxu0 0.0
        %1371 = vmatpush2.xpose.msra.mxu0 0.0
        %1372 = vmatprep.subr.mxu0 0.0
        %1373 = vmatpush2.xpose.msra.mxu0 0.0
        %1374 = vmatprep.subr.mxu0 0.0
        %1375 = vmatpush2.xpose.msra.mxu0 0.0
        %1376 = vmatprep.subr.mxu0 0.0
        %1377 = vmatpush2.xpose.msra.mxu0 0.0
        %1378 = vmatprep.subr.mxu0 0.0
        %1379 = vmatpush2.xpose.msra.mxu0 0.0
        %1380 = vmatprep.subr.mxu0 0.0
        %1381 = vmatpush2.xpose.msra.mxu0 0.0
        %1382 = vmatprep.subr.mxu0 0.0
        %1383 = vmatpush2.xpose.msra.mxu0 0.0
        %1384 = vmatprep.subr.mxu0 0.0
        %1385 = vmatpush2.xpose.msra.mxu0 0.0
        %1386 = vmatprep.subr.mxu0 0.0
        %1387 = vmatpush2.xpose.msra.mxu0 0.0
        %1388 = vmatprep.mubr.f32.mxu0 0.0
        %1389 = vmatmul.mubr.f32.gmra.mxu0 %v1315
        %v1390 = vpop.f32.mrf.mxu0
        %v1391 = vadd.f32 0.0, %v1390
        %v1392 = vpop.f32.mrf.mxu0
        %1393 = vmatprep.mubr.f32.mxu0 0.0
        %1394 = vmatmul.mubr.f32.gmra.mxu0 %v1318
        %v1395 = vpop.f32.mrf.mxu0
        %v1396 = vadd.f32 0.0, %v1395
        %v1397 = vpop.f32.mrf.mxu0
        %1398 = vdwg.mxu0
        %1401 = vrot.lane.b32.xlu0 %v998, 96
        %v1402 = vpop.permute.xlu0 %1401
        %1403 = vrot.lane.b32.xlu0 %v1003, 96
        %v1404 = vpop.permute.xlu0 %1403
        %v1406 = vsel %vm1222, %v878, 0
        %v1409 = vsel %vm1222, %v883, 0
        %v1411 = vsel %vm1222, %v1402, 0
        %v1413 = vsel %vm1222, %v1404, 0
        %1415 = vmatprep.subr.mxu0 0.0
        %1416 = vmatpush1.xpose.msra.mxu0 0.0
        %1417 = vmatprep.subr.mxu0 0.0
        %1418 = vmatpush1.xpose.msra.mxu0 0.0
        %1419 = vmatprep.subr.mxu0 0.0
        %1420 = vmatpush1.xpose.msra.mxu0 0.0
        %1421 = vmatprep.subr.mxu0 0.0
        %1422 = vmatpush1.xpose.msra.mxu0 0.0
        %1423 = vmatprep.subr.mxu0 0.0
        %1424 = vmatpush1.xpose.msra.mxu0 0.0
        %1425 = vmatprep.subr.mxu0 0.0
        %1426 = vmatpush1.xpose.msra.mxu0 0.0
        %1427 = vmatprep.subr.mxu0 0.0
        %1428 = vmatpush1.xpose.msra.mxu0 0.0
        %1429 = vmatprep.subr.mxu0 0.0
        %1430 = vmatpush1.xpose.msra.mxu0 0.0
        %1431 = vmatprep.subr.mxu0 0.0
        %1432 = vmatpush1.xpose.msra.mxu0 0.0
        %1433 = vmatprep.subr.mxu0 0.0
        %1434 = vmatpush1.xpose.msra.mxu0 0.0
        %1435 = vmatprep.subr.mxu0 0.0
        %1436 = vmatpush1.xpose.msra.mxu0 0.0
        %1437 = vmatprep.subr.mxu0 0.0
        %1438 = vmatpush1.xpose.msra.mxu0 0.0
        %1439 = vmatprep.subr.mxu0 0.0
        %1440 = vmatpush1.xpose.msra.mxu0 0.0
        %1441 = vmatprep.subr.mxu0 0.0
        %1442 = vmatpush1.xpose.msra.mxu0 0.0
        %1443 = vmatprep.subr.mxu0 0.0
        %1444 = vmatpush1.xpose.msra.mxu0 %v1413
        %1445 = vmatprep.subr.mxu0 0.0
        %1446 = vmatpush1.xpose.msra.mxu0 %v1411
        %1447 = vmatprep.subr.mxu0 0.0
        %1448 = vmatpush2.xpose.msra.mxu0 0.0
        %1449 = vmatprep.subr.mxu0 0.0
        %1450 = vmatpush2.xpose.msra.mxu0 0.0
        %1451 = vmatprep.subr.mxu0 0.0
        %1452 = vmatpush2.xpose.msra.mxu0 0.0
        %1453 = vmatprep.subr.mxu0 0.0
        %1454 = vmatpush2.xpose.msra.mxu0 0.0
        %1455 = vmatprep.subr.mxu0 0.0
        %1456 = vmatpush2.xpose.msra.mxu0 0.0
        %1457 = vmatprep.subr.mxu0 0.0
        %1458 = vmatpush2.xpose.msra.mxu0 0.0
        %1459 = vmatprep.subr.mxu0 0.0
        %1460 = vmatpush2.xpose.msra.mxu0 0.0
        %1461 = vmatprep.subr.mxu0 0.0
        %1462 = vmatpush2.xpose.msra.mxu0 0.0
        %1463 = vmatprep.subr.mxu0 0.0
        %1464 = vmatpush2.xpose.msra.mxu0 0.0
        %1465 = vmatprep.subr.mxu0 0.0
        %1466 = vmatpush2.xpose.msra.mxu0 0.0
        %1467 = vmatprep.subr.mxu0 0.0
        %1468 = vmatpush2.xpose.msra.mxu0 0.0
        %1469 = vmatprep.subr.mxu0 0.0
        %1470 = vmatpush2.xpose.msra.mxu0 0.0
        %1471 = vmatprep.subr.mxu0 0.0
        %1472 = vmatpush2.xpose.msra.mxu0 0.0
        %1473 = vmatprep.subr.mxu0 0.0
        %1474 = vmatpush2.xpose.msra.mxu0 0.0
        %1475 = vmatprep.subr.mxu0 0.0
        %1476 = vmatpush2.xpose.msra.mxu0 0.0
        %1477 = vmatprep.subr.mxu0 0.0
        %1478 = vmatpush2.xpose.msra.mxu0 0.0
        %1479 = vmatprep.mubr.f32.mxu0 0.0
        %1480 = vmatmul.mubr.f32.gmra.mxu0 %v1406
        %v1481 = vpop.f32.mrf.mxu0
        %v1482 = vadd.f32 0.0, %v1481
        %v1483 = vpop.f32.mrf.mxu0
        %1484 = vmatprep.mubr.f32.mxu0 0.0
        %1485 = vmatmul.mubr.f32.gmra.mxu0 %v1409
        %v1486 = vpop.f32.mrf.mxu0
        %v1487 = vadd.f32 0.0, %v1486
        %v1488 = vpop.f32.mrf.mxu0
        %1489 = vdwg.mxu0
        %1492 = vrot.lane.b32.xlu0 %v1008, 96
        %v1493 = vpop.permute.xlu0 %1492
        %1494 = vrot.lane.b32.xlu0 %v1013, 96
        %v1495 = vpop.permute.xlu0 %1494
        %v1497 = vsel %vm1222, %v888, 0
        %v1500 = vsel %vm1222, %v893, 0
        %v1502 = vsel %vm1222, %v1493, 0
        %v1504 = vsel %vm1222, %v1495, 0
        %1506 = vmatprep.subr.mxu0 0.0
        %1507 = vmatpush1.xpose.msra.mxu0 0.0
        %1508 = vmatprep.subr.mxu0 0.0
        %1509 = vmatpush1.xpose.msra.mxu0 0.0
        %1510 = vmatprep.subr.mxu0 0.0
        %1511 = vmatpush1.xpose.msra.mxu0 0.0
        %1512 = vmatprep.subr.mxu0 0.0
        %1513 = vmatpush1.xpose.msra.mxu0 0.0
        %1514 = vmatprep.subr.mxu0 0.0
        %1515 = vmatpush1.xpose.msra.mxu0 0.0
        %1516 = vmatprep.subr.mxu0 0.0
        %1517 = vmatpush1.xpose.msra.mxu0 0.0
        %1518 = vmatprep.subr.mxu0 0.0
        %1519 = vmatpush1.xpose.msra.mxu0 0.0
        %1520 = vmatprep.subr.mxu0 0.0
        %1521 = vmatpush1.xpose.msra.mxu0 0.0
        %1522 = vmatprep.subr.mxu0 0.0
        %1523 = vmatpush1.xpose.msra.mxu0 0.0
        %1524 = vmatprep.subr.mxu0 0.0
        %1525 = vmatpush1.xpose.msra.mxu0 0.0
        %1526 = vmatprep.subr.mxu0 0.0
        %1527 = vmatpush1.xpose.msra.mxu0 0.0
        %1528 = vmatprep.subr.mxu0 0.0
        %1529 = vmatpush1.xpose.msra.mxu0 0.0
        %1530 = vmatprep.subr.mxu0 0.0
        %1531 = vmatpush1.xpose.msra.mxu0 0.0
        %1532 = vmatprep.subr.mxu0 0.0
        %1533 = vmatpush1.xpose.msra.mxu0 0.0
        %1534 = vmatprep.subr.mxu0 0.0
        %1535 = vmatpush1.xpose.msra.mxu0 %v1504
        %1536 = vmatprep.subr.mxu0 0.0
        %1537 = vmatpush1.xpose.msra.mxu0 %v1502
        %1538 = vmatprep.subr.mxu0 0.0
        %1539 = vmatpush2.xpose.msra.mxu0 0.0
        %1540 = vmatprep.subr.mxu0 0.0
        %1541 = vmatpush2.xpose.msra.mxu0 0.0
        %1542 = vmatprep.subr.mxu0 0.0
        %1543 = vmatpush2.xpose.msra.mxu0 0.0
        %1544 = vmatprep.subr.mxu0 0.0
        %1545 = vmatpush2.xpose.msra.mxu0 0.0
        %1546 = vmatprep.subr.mxu0 0.0
        %1547 = vmatpush2.xpose.msra.mxu0 0.0
        %1548 = vmatprep.subr.mxu0 0.0
        %1549 = vmatpush2.xpose.msra.mxu0 0.0
        %1550 = vmatprep.subr.mxu0 0.0
        %1551 = vmatpush2.xpose.msra.mxu0 0.0
        %1552 = vmatprep.subr.mxu0 0.0
        %1553 = vmatpush2.xpose.msra.mxu0 0.0
        %1554 = vmatprep.subr.mxu0 0.0
        %1555 = vmatpush2.xpose.msra.mxu0 0.0
        %1556 = vmatprep.subr.mxu0 0.0
        %1557 = vmatpush2.xpose.msra.mxu0 0.0
        %1558 = vmatprep.subr.mxu0 0.0
        %1559 = vmatpush2.xpose.msra.mxu0 0.0
        %1560 = vmatprep.subr.mxu0 0.0
        %1561 = vmatpush2.xpose.msra.mxu0 0.0
        %1562 = vmatprep.subr.mxu0 0.0
        %1563 = vmatpush2.xpose.msra.mxu0 0.0
        %1564 = vmatprep.subr.mxu0 0.0
        %1565 = vmatpush2.xpose.msra.mxu0 0.0
        %1566 = vmatprep.subr.mxu0 0.0
        %1567 = vmatpush2.xpose.msra.mxu0 0.0
        %1568 = vmatprep.subr.mxu0 0.0
        %1569 = vmatpush2.xpose.msra.mxu0 0.0
        %1570 = vmatprep.mubr.f32.mxu0 0.0
        %1571 = vmatmul.mubr.f32.gmra.mxu0 %v1497
        %v1572 = vpop.f32.mrf.mxu0
        %v1573 = vadd.f32 0.0, %v1572
        %v1574 = vpop.f32.mrf.mxu0
        %1575 = vmatprep.mubr.f32.mxu0 0.0
        %1576 = vmatmul.mubr.f32.gmra.mxu0 %v1500
        %v1577 = vpop.f32.mrf.mxu0
        %v1578 = vadd.f32 0.0, %v1577
        %v1579 = vpop.f32.mrf.mxu0
        %1580 = vdwg.mxu0
        %1583 = vrot.lane.b32.xlu0 %v1018, 96
        %v1584 = vpop.permute.xlu0 %1583
        %1585 = vrot.lane.b32.xlu0 %v1023, 96
        %v1586 = vpop.permute.xlu0 %1585
        %v1588 = vsel %vm1222, %v898, 0
        %v1591 = vsel %vm1222, %v903, 0
        %v1593 = vsel %vm1222, %v1584, 0
        %v1595 = vsel %vm1222, %v1586, 0
        %1597 = vmatprep.subr.mxu0 0.0
        %1598 = vmatpush1.xpose.msra.mxu0 0.0
        %1599 = vmatprep.subr.mxu0 0.0
        %1600 = vmatpush1.xpose.msra.mxu0 0.0
        %1601 = vmatprep.subr.mxu0 0.0
        %1602 = vmatpush1.xpose.msra.mxu0 0.0
        %1603 = vmatprep.subr.mxu0 0.0
        %1604 = vmatpush1.xpose.msra.mxu0 0.0
        %1605 = vmatprep.subr.mxu0 0.0
        %1606 = vmatpush1.xpose.msra.mxu0 0.0
        %1607 = vmatprep.subr.mxu0 0.0
        %1608 = vmatpush1.xpose.msra.mxu0 0.0
        %1609 = vmatprep.subr.mxu0 0.0
        %1610 = vmatpush1.xpose.msra.mxu0 0.0
        %1611 = vmatprep.subr.mxu0 0.0
        %1612 = vmatpush1.xpose.msra.mxu0 0.0
        %1613 = vmatprep.subr.mxu0 0.0
        %1614 = vmatpush1.xpose.msra.mxu0 0.0
        %1615 = vmatprep.subr.mxu0 0.0
        %1616 = vmatpush1.xpose.msra.mxu0 0.0
        %1617 = vmatprep.subr.mxu0 0.0
        %1618 = vmatpush1.xpose.msra.mxu0 0.0
        %1619 = vmatprep.subr.mxu0 0.0
        %1620 = vmatpush1.xpose.msra.mxu0 0.0
        %1621 = vmatprep.subr.mxu0 0.0
        %1622 = vmatpush1.xpose.msra.mxu0 0.0
        %1623 = vmatprep.subr.mxu0 0.0
        %1624 = vmatpush1.xpose.msra.mxu0 0.0
        %1625 = vmatprep.subr.mxu0 0.0
        %1626 = vmatpush1.xpose.msra.mxu0 %v1595
        %1627 = vmatprep.subr.mxu0 0.0
        %1628 = vmatpush1.xpose.msra.mxu0 %v1593
        %1629 = vmatprep.subr.mxu0 0.0
        %1630 = vmatpush2.xpose.msra.mxu0 0.0
        %1631 = vmatprep.subr.mxu0 0.0
        %1632 = vmatpush2.xpose.msra.mxu0 0.0
        %1633 = vmatprep.subr.mxu0 0.0
        %1634 = vmatpush2.xpose.msra.mxu0 0.0
        %1635 = vmatprep.subr.mxu0 0.0
        %1636 = vmatpush2.xpose.msra.mxu0 0.0
        %1637 = vmatprep.subr.mxu0 0.0
        %1638 = vmatpush2.xpose.msra.mxu0 0.0
        %1639 = vmatprep.subr.mxu0 0.0
        %1640 = vmatpush2.xpose.msra.mxu0 0.0
        %1641 = vmatprep.subr.mxu0 0.0
        %1642 = vmatpush2.xpose.msra.mxu0 0.0
        %1643 = vmatprep.subr.mxu0 0.0
        %1644 = vmatpush2.xpose.msra.mxu0 0.0
        %1645 = vmatprep.subr.mxu0 0.0
        %1646 = vmatpush2.xpose.msra.mxu0 0.0
        %1647 = vmatprep.subr.mxu0 0.0
        %1648 = vmatpush2.xpose.msra.mxu0 0.0
        %1649 = vmatprep.subr.mxu0 0.0
        %1650 = vmatpush2.xpose.msra.mxu0 0.0
        %1651 = vmatprep.subr.mxu0 0.0
        %1652 = vmatpush2.xpose.msra.mxu0 0.0
        %1653 = vmatprep.subr.mxu0 0.0
        %1654 = vmatpush2.xpose.msra.mxu0 0.0
        %1655 = vmatprep.subr.mxu0 0.0
        %1656 = vmatpush2.xpose.msra.mxu0 0.0
        %1657 = vmatprep.subr.mxu0 0.0
        %1658 = vmatpush2.xpose.msra.mxu0 0.0
        %1659 = vmatprep.subr.mxu0 0.0
        %1660 = vmatpush2.xpose.msra.mxu0 0.0
        %1661 = vmatprep.mubr.f32.mxu0 0.0
        %1662 = vmatmul.mubr.f32.gmra.mxu0 %v1588
        %v1663 = vpop.f32.mrf.mxu0
        %v1664 = vadd.f32 0.0, %v1663
        %v1665 = vpop.f32.mrf.mxu0
        %1666 = vmatprep.mubr.f32.mxu0 0.0
        %1667 = vmatmul.mubr.f32.gmra.mxu0 %v1591
        %v1668 = vpop.f32.mrf.mxu0
        %v1669 = vadd.f32 0.0, %v1668
        %v1670 = vpop.f32.mrf.mxu0
        %1671 = vdwg.mxu0
        %1674 = vrot.lane.b32.xlu0 %v1028, 96
        %v1675 = vpop.permute.xlu0 %1674
        %1676 = vrot.lane.b32.xlu0 %v1033, 96
        %v1677 = vpop.permute.xlu0 %1676
        %v1679 = vsel %vm1222, %v908, 0
        %v1682 = vsel %vm1222, %v913, 0
        %v1684 = vsel %vm1222, %v1675, 0
        %v1686 = vsel %vm1222, %v1677, 0
        %1688 = vmatprep.subr.mxu0 0.0
        %1689 = vmatpush1.xpose.msra.mxu0 0.0
        %1690 = vmatprep.subr.mxu0 0.0
        %1691 = vmatpush1.xpose.msra.mxu0 0.0
        %1692 = vmatprep.subr.mxu0 0.0
        %1693 = vmatpush1.xpose.msra.mxu0 0.0
        %1694 = vmatprep.subr.mxu0 0.0
        %1695 = vmatpush1.xpose.msra.mxu0 0.0
        %1696 = vmatprep.subr.mxu0 0.0
        %1697 = vmatpush1.xpose.msra.mxu0 0.0
        %1698 = vmatprep.subr.mxu0 0.0
        %1699 = vmatpush1.xpose.msra.mxu0 0.0
        %1700 = vmatprep.subr.mxu0 0.0
        %1701 = vmatpush1.xpose.msra.mxu0 0.0
        %1702 = vmatprep.subr.mxu0 0.0
        %1703 = vmatpush1.xpose.msra.mxu0 0.0
        %1704 = vmatprep.subr.mxu0 0.0
        %1705 = vmatpush1.xpose.msra.mxu0 0.0
        %1706 = vmatprep.subr.mxu0 0.0
        %1707 = vmatpush1.xpose.msra.mxu0 0.0
        %1708 = vmatprep.subr.mxu0 0.0
        %1709 = vmatpush1.xpose.msra.mxu0 0.0
        %1710 = vmatprep.subr.mxu0 0.0
        %1711 = vmatpush1.xpose.msra.mxu0 0.0
        %1712 = vmatprep.subr.mxu0 0.0
        %1713 = vmatpush1.xpose.msra.mxu0 0.0
        %1714 = vmatprep.subr.mxu0 0.0
        %1715 = vmatpush1.xpose.msra.mxu0 0.0
        %1716 = vmatprep.subr.mxu0 0.0
        %1717 = vmatpush1.xpose.msra.mxu0 %v1686
        %1718 = vmatprep.subr.mxu0 0.0
        %1719 = vmatpush1.xpose.msra.mxu0 %v1684
        %1720 = vmatprep.subr.mxu0 0.0
        %1721 = vmatpush2.xpose.msra.mxu0 0.0
        %1722 = vmatprep.subr.mxu0 0.0
        %1723 = vmatpush2.xpose.msra.mxu0 0.0
        %1724 = vmatprep.subr.mxu0 0.0
        %1725 = vmatpush2.xpose.msra.mxu0 0.0
        %1726 = vmatprep.subr.mxu0 0.0
        %1727 = vmatpush2.xpose.msra.mxu0 0.0
        %1728 = vmatprep.subr.mxu0 0.0
        %1729 = vmatpush2.xpose.msra.mxu0 0.0
        %1730 = vmatprep.subr.mxu0 0.0
        %1731 = vmatpush2.xpose.msra.mxu0 0.0
        %1732 = vmatprep.subr.mxu0 0.0
        %1733 = vmatpush2.xpose.msra.mxu0 0.0
        %1734 = vmatprep.subr.mxu0 0.0
        %1735 = vmatpush2.xpose.msra.mxu0 0.0
        %1736 = vmatprep.subr.mxu0 0.0
        %1737 = vmatpush2.xpose.msra.mxu0 0.0
        %1738 = vmatprep.subr.mxu0 0.0
        %1739 = vmatpush2.xpose.msra.mxu0 0.0
        %1740 = vmatprep.subr.mxu0 0.0
        %1741 = vmatpush2.xpose.msra.mxu0 0.0
        %1742 = vmatprep.subr.mxu0 0.0
        %1743 = vmatpush2.xpose.msra.mxu0 0.0
        %1744 = vmatprep.subr.mxu0 0.0
        %1745 = vmatpush2.xpose.msra.mxu0 0.0
        %1746 = vmatprep.subr.mxu0 0.0
        %1747 = vmatpush2.xpose.msra.mxu0 0.0
        %1748 = vmatprep.subr.mxu0 0.0
        %1749 = vmatpush2.xpose.msra.mxu0 0.0
        %1750 = vmatprep.subr.mxu0 0.0
        %1751 = vmatpush2.xpose.msra.mxu0 0.0
        %1752 = vmatprep.mubr.f32.mxu0 0.0
        %1753 = vmatmul.mubr.f32.gmra.mxu0 %v1679
        %v1754 = vpop.f32.mrf.mxu0
        %v1755 = vadd.f32 0.0, %v1754
        %v1756 = vpop.f32.mrf.mxu0
        %1757 = vmatprep.mubr.f32.mxu0 0.0
        %1758 = vmatmul.mubr.f32.gmra.mxu0 %v1682
        %v1759 = vpop.f32.mrf.mxu0
        %v1760 = vadd.f32 0.0, %v1759
        %v1761 = vpop.f32.mrf.mxu0
        %1762 = vdwg.mxu0
        %1765 = vrot.lane.b32.xlu0 %v1038, 96
        %v1766 = vpop.permute.xlu0 %1765
        %1767 = vrot.lane.b32.xlu0 %v1043, 96
        %v1768 = vpop.permute.xlu0 %1767
        %v1770 = vsel %vm1222, %v918, 0
        %v1773 = vsel %vm1222, %v923, 0
        %v1775 = vsel %vm1222, %v1766, 0
        %v1777 = vsel %vm1222, %v1768, 0
        %1779 = vmatprep.subr.mxu0 0.0
        %1780 = vmatpush1.xpose.msra.mxu0 0.0
        %1781 = vmatprep.subr.mxu0 0.0
        %1782 = vmatpush1.xpose.msra.mxu0 0.0
        %1783 = vmatprep.subr.mxu0 0.0
        %1784 = vmatpush1.xpose.msra.mxu0 0.0
        %1785 = vmatprep.subr.mxu0 0.0
        %1786 = vmatpush1.xpose.msra.mxu0 0.0
        %1787 = vmatprep.subr.mxu0 0.0
        %1788 = vmatpush1.xpose.msra.mxu0 0.0
        %1789 = vmatprep.subr.mxu0 0.0
        %1790 = vmatpush1.xpose.msra.mxu0 0.0
        %1791 = vmatprep.subr.mxu0 0.0
        %1792 = vmatpush1.xpose.msra.mxu0 0.0
        %1793 = vmatprep.subr.mxu0 0.0
        %1794 = vmatpush1.xpose.msra.mxu0 0.0
        %1795 = vmatprep.subr.mxu0 0.0
        %1796 = vmatpush1.xpose.msra.mxu0 0.0
        %1797 = vmatprep.subr.mxu0 0.0
        %1798 = vmatpush1.xpose.msra.mxu0 0.0
        %1799 = vmatprep.subr.mxu0 0.0
        %1800 = vmatpush1.xpose.msra.mxu0 0.0
        %1801 = vmatprep.subr.mxu0 0.0
        %1802 = vmatpush1.xpose.msra.mxu0 0.0
        %1803 = vmatprep.subr.mxu0 0.0
        %1804 = vmatpush1.xpose.msra.mxu0 0.0
        %1805 = vmatprep.subr.mxu0 0.0
        %1806 = vmatpush1.xpose.msra.mxu0 0.0
        %1807 = vmatprep.subr.mxu0 0.0
        %1808 = vmatpush1.xpose.msra.mxu0 %v1777
        %1809 = vmatprep.subr.mxu0 0.0
        %1810 = vmatpush1.xpose.msra.mxu0 %v1775
        %1811 = vmatprep.subr.mxu0 0.0
        %1812 = vmatpush2.xpose.msra.mxu0 0.0
        %1813 = vmatprep.subr.mxu0 0.0
        %1814 = vmatpush2.xpose.msra.mxu0 0.0
        %1815 = vmatprep.subr.mxu0 0.0
        %1816 = vmatpush2.xpose.msra.mxu0 0.0
        %1817 = vmatprep.subr.mxu0 0.0
        %1818 = vmatpush2.xpose.msra.mxu0 0.0
        %1819 = vmatprep.subr.mxu0 0.0
        %1820 = vmatpush2.xpose.msra.mxu0 0.0
        %1821 = vmatprep.subr.mxu0 0.0
        %1822 = vmatpush2.xpose.msra.mxu0 0.0
        %1823 = vmatprep.subr.mxu0 0.0
        %1824 = vmatpush2.xpose.msra.mxu0 0.0
        %1825 = vmatprep.subr.mxu0 0.0
        %1826 = vmatpush2.xpose.msra.mxu0 0.0
        %1827 = vmatprep.subr.mxu0 0.0
        %1828 = vmatpush2.xpose.msra.mxu0 0.0
        %1829 = vmatprep.subr.mxu0 0.0
        %1830 = vmatpush2.xpose.msra.mxu0 0.0
        %1831 = vmatprep.subr.mxu0 0.0
        %1832 = vmatpush2.xpose.msra.mxu0 0.0
        %1833 = vmatprep.subr.mxu0 0.0
        %1834 = vmatpush2.xpose.msra.mxu0 0.0
        %1835 = vmatprep.subr.mxu0 0.0
        %1836 = vmatpush2.xpose.msra.mxu0 0.0
        %1837 = vmatprep.subr.mxu0 0.0
        %1838 = vmatpush2.xpose.msra.mxu0 0.0
        %1839 = vmatprep.subr.mxu0 0.0
        %1840 = vmatpush2.xpose.msra.mxu0 0.0
        %1841 = vmatprep.subr.mxu0 0.0
        %1842 = vmatpush2.xpose.msra.mxu0 0.0
        %1843 = vmatprep.mubr.f32.mxu0 0.0
        %1844 = vmatmul.mubr.f32.gmra.mxu0 %v1770
        %v1845 = vpop.f32.mrf.mxu0
        %v1846 = vadd.f32 0.0, %v1845
        %v1847 = vpop.f32.mrf.mxu0
        %1848 = vmatprep.mubr.f32.mxu0 0.0
        %1849 = vmatmul.mubr.f32.gmra.mxu0 %v1773
        %v1850 = vpop.f32.mrf.mxu0
        %v1851 = vadd.f32 0.0, %v1850
        %v1852 = vpop.f32.mrf.mxu0
        %1853 = vdwg.mxu0
        %1856 = vrot.lane.b32.xlu0 %v1048, 96
        %v1857 = vpop.permute.xlu0 %1856
        %1858 = vrot.lane.b32.xlu0 %v1053, 96
        %v1859 = vpop.permute.xlu0 %1858
        %v1861 = vsel %vm1222, %v928, 0
        %v1864 = vsel %vm1222, %v933, 0
        %v1866 = vsel %vm1222, %v1857, 0
        %v1868 = vsel %vm1222, %v1859, 0
        %1870 = vmatprep.subr.mxu0 0.0
        %1871 = vmatpush1.xpose.msra.mxu0 0.0
        %1872 = vmatprep.subr.mxu0 0.0
        %1873 = vmatpush1.xpose.msra.mxu0 0.0
        %1874 = vmatprep.subr.mxu0 0.0
        %1875 = vmatpush1.xpose.msra.mxu0 0.0
        %1876 = vmatprep.subr.mxu0 0.0
        %1877 = vmatpush1.xpose.msra.mxu0 0.0
        %1878 = vmatprep.subr.mxu0 0.0
        %1879 = vmatpush1.xpose.msra.mxu0 0.0
        %1880 = vmatprep.subr.mxu0 0.0
        %1881 = vmatpush1.xpose.msra.mxu0 0.0
        %1882 = vmatprep.subr.mxu0 0.0
        %1883 = vmatpush1.xpose.msra.mxu0 0.0
        %1884 = vmatprep.subr.mxu0 0.0
        %1885 = vmatpush1.xpose.msra.mxu0 0.0
        %1886 = vmatprep.subr.mxu0 0.0
        %1887 = vmatpush1.xpose.msra.mxu0 0.0
        %1888 = vmatprep.subr.mxu0 0.0
        %1889 = vmatpush1.xpose.msra.mxu0 0.0
        %1890 = vmatprep.subr.mxu0 0.0
        %1891 = vmatpush1.xpose.msra.mxu0 0.0
        %1892 = vmatprep.subr.mxu0 0.0
        %1893 = vmatpush1.xpose.msra.mxu0 0.0
        %1894 = vmatprep.subr.mxu0 0.0
        %1895 = vmatpush1.xpose.msra.mxu0 0.0
        %1896 = vmatprep.subr.mxu0 0.0
        %1897 = vmatpush1.xpose.msra.mxu0 0.0
        %1898 = vmatprep.subr.mxu0 0.0
        %1899 = vmatpush1.xpose.msra.mxu0 %v1868
        %1900 = vmatprep.subr.mxu0 0.0
        %1901 = vmatpush1.xpose.msra.mxu0 %v1866
        %1902 = vmatprep.subr.mxu0 0.0
        %1903 = vmatpush2.xpose.msra.mxu0 0.0
        %1904 = vmatprep.subr.mxu0 0.0
        %1905 = vmatpush2.xpose.msra.mxu0 0.0
        %1906 = vmatprep.subr.mxu0 0.0
        %1907 = vmatpush2.xpose.msra.mxu0 0.0
        %1908 = vmatprep.subr.mxu0 0.0
        %1909 = vmatpush2.xpose.msra.mxu0 0.0
        %1910 = vmatprep.subr.mxu0 0.0
        %1911 = vmatpush2.xpose.msra.mxu0 0.0
        %1912 = vmatprep.subr.mxu0 0.0
        %1913 = vmatpush2.xpose.msra.mxu0 0.0
        %1914 = vmatprep.subr.mxu0 0.0
        %1915 = vmatpush2.xpose.msra.mxu0 0.0
        %1916 = vmatprep.subr.mxu0 0.0
        %1917 = vmatpush2.xpose.msra.mxu0 0.0
        %1918 = vmatprep.subr.mxu0 0.0
        %1919 = vmatpush2.xpose.msra.mxu0 0.0
        %1920 = vmatprep.subr.mxu0 0.0
        %1921 = vmatpush2.xpose.msra.mxu0 0.0
        %1922 = vmatprep.subr.mxu0 0.0
        %1923 = vmatpush2.xpose.msra.mxu0 0.0
        %1924 = vmatprep.subr.mxu0 0.0
        %1925 = vmatpush2.xpose.msra.mxu0 0.0
        %1926 = vmatprep.subr.mxu0 0.0
        %1927 = vmatpush2.xpose.msra.mxu0 0.0
        %1928 = vmatprep.subr.mxu0 0.0
        %1929 = vmatpush2.xpose.msra.mxu0 0.0
        %1930 = vmatprep.subr.mxu0 0.0
        %1931 = vmatpush2.xpose.msra.mxu0 0.0
        %1932 = vmatprep.subr.mxu0 0.0
        %1933 = vmatpush2.xpose.msra.mxu0 0.0
        %1934 = vmatprep.mubr.f32.mxu0 0.0
        %1935 = vmatmul.mubr.f32.gmra.mxu0 %v1861
        %v1936 = vpop.f32.mrf.mxu0
        %v1937 = vadd.f32 0.0, %v1936
        %v1938 = vpop.f32.mrf.mxu0
        %1939 = vmatprep.mubr.f32.mxu0 0.0
        %1940 = vmatmul.mubr.f32.gmra.mxu0 %v1864
        %v1941 = vpop.f32.mrf.mxu0
        %v1942 = vadd.f32 0.0, %v1941
        %v1943 = vpop.f32.mrf.mxu0
        %1944 = vdwg.mxu0
        %1947 = vrot.lane.b32.xlu0 %v1058, 96
        %v1948 = vpop.permute.xlu0 %1947
        %1949 = vrot.lane.b32.xlu0 %v1063, 96
        %v1950 = vpop.permute.xlu0 %1949
        %v1952 = vsel %vm1222, %v938, 0
        %v1955 = vsel %vm1222, %v943, 0
        %v1957 = vsel %vm1222, %v1948, 0
        %v1959 = vsel %vm1222, %v1950, 0
        %1961 = vmatprep.subr.mxu0 0.0
        %1962 = vmatpush1.xpose.msra.mxu0 0.0
        %1963 = vmatprep.subr.mxu0 0.0
        %1964 = vmatpush1.xpose.msra.mxu0 0.0
        %1965 = vmatprep.subr.mxu0 0.0
        %1966 = vmatpush1.xpose.msra.mxu0 0.0
        %1967 = vmatprep.subr.mxu0 0.0
        %1968 = vmatpush1.xpose.msra.mxu0 0.0
        %1969 = vmatprep.subr.mxu0 0.0
        %1970 = vmatpush1.xpose.msra.mxu0 0.0
        %1971 = vmatprep.subr.mxu0 0.0
        %1972 = vmatpush1.xpose.msra.mxu0 0.0
        %1973 = vmatprep.subr.mxu0 0.0
        %1974 = vmatpush1.xpose.msra.mxu0 0.0
        %1975 = vmatprep.subr.mxu0 0.0
        %1976 = vmatpush1.xpose.msra.mxu0 0.0
        %1977 = vmatprep.subr.mxu0 0.0
        %1978 = vmatpush1.xpose.msra.mxu0 0.0
        %1979 = vmatprep.subr.mxu0 0.0
        %1980 = vmatpush1.xpose.msra.mxu0 0.0
        %1981 = vmatprep.subr.mxu0 0.0
        %1982 = vmatpush1.xpose.msra.mxu0 0.0
        %1983 = vmatprep.subr.mxu0 0.0
        %1984 = vmatpush1.xpose.msra.mxu0 0.0
        %1985 = vmatprep.subr.mxu0 0.0
        %1986 = vmatpush1.xpose.msra.mxu0 0.0
        %1987 = vmatprep.subr.mxu0 0.0
        %1988 = vmatpush1.xpose.msra.mxu0 0.0
        %1989 = vmatprep.subr.mxu0 0.0
        %1990 = vmatpush1.xpose.msra.mxu0 %v1959
        %1991 = vmatprep.subr.mxu0 0.0
        %1992 = vmatpush1.xpose.msra.mxu0 %v1957
        %1993 = vmatprep.subr.mxu0 0.0
        %1994 = vmatpush2.xpose.msra.mxu0 0.0
        %1995 = vmatprep.subr.mxu0 0.0
        %1996 = vmatpush2.xpose.msra.mxu0 0.0
        %1997 = vmatprep.subr.mxu0 0.0
        %1998 = vmatpush2.xpose.msra.mxu0 0.0
        %1999 = vmatprep.subr.mxu0 0.0
        %2000 = vmatpush2.xpose.msra.mxu0 0.0
        %2001 = vmatprep.subr.mxu0 0.0
        %2002 = vmatpush2.xpose.msra.mxu0 0.0
        %2003 = vmatprep.subr.mxu0 0.0
        %2004 = vmatpush2.xpose.msra.mxu0 0.0
        %2005 = vmatprep.subr.mxu0 0.0
        %2006 = vmatpush2.xpose.msra.mxu0 0.0
        %2007 = vmatprep.subr.mxu0 0.0
        %2008 = vmatpush2.xpose.msra.mxu0 0.0
        %2009 = vmatprep.subr.mxu0 0.0
        %2010 = vmatpush2.xpose.msra.mxu0 0.0
        %2011 = vmatprep.subr.mxu0 0.0
        %2012 = vmatpush2.xpose.msra.mxu0 0.0
        %2013 = vmatprep.subr.mxu0 0.0
        %2014 = vmatpush2.xpose.msra.mxu0 0.0
        %2015 = vmatprep.subr.mxu0 0.0
        %2016 = vmatpush2.xpose.msra.mxu0 0.0
        %2017 = vmatprep.subr.mxu0 0.0
        %2018 = vmatpush2.xpose.msra.mxu0 0.0
        %2019 = vmatprep.subr.mxu0 0.0
        %2020 = vmatpush2.xpose.msra.mxu0 0.0
        %2021 = vmatprep.subr.mxu0 0.0
        %2022 = vmatpush2.xpose.msra.mxu0 0.0
        %2023 = vmatprep.subr.mxu0 0.0
        %2024 = vmatpush2.xpose.msra.mxu0 0.0
        %2025 = vmatprep.mubr.f32.mxu0 0.0
        %2026 = vmatmul.mubr.f32.gmra.mxu0 %v1952
        %v2027 = vpop.f32.mrf.mxu0
        %v2028 = vadd.f32 0.0, %v2027
        %v2029 = vpop.f32.mrf.mxu0
        %2030 = vmatprep.mubr.f32.mxu0 0.0
        %2031 = vmatmul.mubr.f32.gmra.mxu0 %v1955
        %v2032 = vpop.f32.mrf.mxu0
        %v2033 = vadd.f32 0.0, %v2032
        %v2034 = vpop.f32.mrf.mxu0
        %2035 = vdwg.mxu0
        %2038 = vrot.lane.b32.xlu0 %v1068, 96
        %v2039 = vpop.permute.xlu0 %2038
        %2040 = vrot.lane.b32.xlu0 %v1073, 96
        %v2041 = vpop.permute.xlu0 %2040
        %v2043 = vsel %vm1222, %v948, 0
        %v2046 = vsel %vm1222, %v953, 0
        %v2048 = vsel %vm1222, %v2039, 0
        %v2050 = vsel %vm1222, %v2041, 0
        %2052 = vmatprep.subr.mxu0 0.0
        %2053 = vmatpush1.xpose.msra.mxu0 0.0
        %2054 = vmatprep.subr.mxu0 0.0
        %2055 = vmatpush1.xpose.msra.mxu0 0.0
        %2056 = vmatprep.subr.mxu0 0.0
        %2057 = vmatpush1.xpose.msra.mxu0 0.0
        %2058 = vmatprep.subr.mxu0 0.0
        %2059 = vmatpush1.xpose.msra.mxu0 0.0
        %2060 = vmatprep.subr.mxu0 0.0
        %2061 = vmatpush1.xpose.msra.mxu0 0.0
        %2062 = vmatprep.subr.mxu0 0.0
        %2063 = vmatpush1.xpose.msra.mxu0 0.0
        %2064 = vmatprep.subr.mxu0 0.0
        %2065 = vmatpush1.xpose.msra.mxu0 0.0
        %2066 = vmatprep.subr.mxu0 0.0
        %2067 = vmatpush1.xpose.msra.mxu0 0.0
        %2068 = vmatprep.subr.mxu0 0.0
        %2069 = vmatpush1.xpose.msra.mxu0 0.0
        %2070 = vmatprep.subr.mxu0 0.0
        %2071 = vmatpush1.xpose.msra.mxu0 0.0
        %2072 = vmatprep.subr.mxu0 0.0
        %2073 = vmatpush1.xpose.msra.mxu0 0.0
        %2074 = vmatprep.subr.mxu0 0.0
        %2075 = vmatpush1.xpose.msra.mxu0 0.0
        %2076 = vmatprep.subr.mxu0 0.0
        %2077 = vmatpush1.xpose.msra.mxu0 0.0
        %2078 = vmatprep.subr.mxu0 0.0
        %2079 = vmatpush1.xpose.msra.mxu0 0.0
        %2080 = vmatprep.subr.mxu0 0.0
        %2081 = vmatpush1.xpose.msra.mxu0 %v2050
        %2082 = vmatprep.subr.mxu0 0.0
        %2083 = vmatpush1.xpose.msra.mxu0 %v2048
        %2084 = vmatprep.subr.mxu0 0.0
        %2085 = vmatpush2.xpose.msra.mxu0 0.0
        %2086 = vmatprep.subr.mxu0 0.0
        %2087 = vmatpush2.xpose.msra.mxu0 0.0
        %2088 = vmatprep.subr.mxu0 0.0
        %2089 = vmatpush2.xpose.msra.mxu0 0.0
        %2090 = vmatprep.subr.mxu0 0.0
        %2091 = vmatpush2.xpose.msra.mxu0 0.0
        %2092 = vmatprep.subr.mxu0 0.0
        %2093 = vmatpush2.xpose.msra.mxu0 0.0
        %2094 = vmatprep.subr.mxu0 0.0
        %2095 = vmatpush2.xpose.msra.mxu0 0.0
        %2096 = vmatprep.subr.mxu0 0.0
        %2097 = vmatpush2.xpose.msra.mxu0 0.0
        %2098 = vmatprep.subr.mxu0 0.0
        %2099 = vmatpush2.xpose.msra.mxu0 0.0
        %2100 = vmatprep.subr.mxu0 0.0
        %2101 = vmatpush2.xpose.msra.mxu0 0.0
        %2102 = vmatprep.subr.mxu0 0.0
        %2103 = vmatpush2.xpose.msra.mxu0 0.0
        %2104 = vmatprep.subr.mxu0 0.0
        %2105 = vmatpush2.xpose.msra.mxu0 0.0
        %2106 = vmatprep.subr.mxu0 0.0
        %2107 = vmatpush2.xpose.msra.mxu0 0.0
        %2108 = vmatprep.subr.mxu0 0.0
        %2109 = vmatpush2.xpose.msra.mxu0 0.0
        %2110 = vmatprep.subr.mxu0 0.0
        %2111 = vmatpush2.xpose.msra.mxu0 0.0
        %2112 = vmatprep.subr.mxu0 0.0
        %2113 = vmatpush2.xpose.msra.mxu0 0.0
        %2114 = vmatprep.subr.mxu0 0.0
        %2115 = vmatpush2.xpose.msra.mxu0 0.0
        %2116 = vmatprep.mubr.f32.mxu0 0.0
        %2117 = vmatmul.mubr.f32.gmra.mxu0 %v2043
        %v2118 = vpop.f32.mrf.mxu0
        %v2119 = vadd.f32 0.0, %v2118
        %v2120 = vpop.f32.mrf.mxu0
        %2121 = vmatprep.mubr.f32.mxu0 0.0
        %2122 = vmatmul.mubr.f32.gmra.mxu0 %v2046
        %v2123 = vpop.f32.mrf.mxu0
        %v2124 = vadd.f32 0.0, %v2123
        %v2125 = vpop.f32.mrf.mxu0
        %2126 = vdwg.mxu0
        %2129 = vrot.lane.b32.xlu0 %v1078, 96
        %v2130 = vpop.permute.xlu0 %2129
        %2131 = vrot.lane.b32.xlu0 %v1083, 96
        %v2132 = vpop.permute.xlu0 %2131
        %v2134 = vsel %vm1222, %v958, 0
        %v2137 = vsel %vm1222, %v963, 0
        %v2139 = vsel %vm1222, %v2130, 0
        %v2141 = vsel %vm1222, %v2132, 0
        %2143 = vmatprep.subr.mxu0 0.0
        %2144 = vmatpush1.xpose.msra.mxu0 0.0
        %2145 = vmatprep.subr.mxu0 0.0
        %2146 = vmatpush1.xpose.msra.mxu0 0.0
        %2147 = vmatprep.subr.mxu0 0.0
        %2148 = vmatpush1.xpose.msra.mxu0 0.0
        %2149 = vmatprep.subr.mxu0 0.0
        %2150 = vmatpush1.xpose.msra.mxu0 0.0
        %2151 = vmatprep.subr.mxu0 0.0
        %2152 = vmatpush1.xpose.msra.mxu0 0.0
        %2153 = vmatprep.subr.mxu0 0.0
        %2154 = vmatpush1.xpose.msra.mxu0 0.0
        %2155 = vmatprep.subr.mxu0 0.0
        %2156 = vmatpush1.xpose.msra.mxu0 0.0
        %2157 = vmatprep.subr.mxu0 0.0
        %2158 = vmatpush1.xpose.msra.mxu0 0.0
        %2159 = vmatprep.subr.mxu0 0.0
        %2160 = vmatpush1.xpose.msra.mxu0 0.0
        %2161 = vmatprep.subr.mxu0 0.0
        %2162 = vmatpush1.xpose.msra.mxu0 0.0
        %2163 = vmatprep.subr.mxu0 0.0
        %2164 = vmatpush1.xpose.msra.mxu0 0.0
        %2165 = vmatprep.subr.mxu0 0.0
        %2166 = vmatpush1.xpose.msra.mxu0 0.0
        %2167 = vmatprep.subr.mxu0 0.0
        %2168 = vmatpush1.xpose.msra.mxu0 0.0
        %2169 = vmatprep.subr.mxu0 0.0
        %2170 = vmatpush1.xpose.msra.mxu0 0.0
        %2171 = vmatprep.subr.mxu0 0.0
        %2172 = vmatpush1.xpose.msra.mxu0 %v2141
        %2173 = vmatprep.subr.mxu0 0.0
        %2174 = vmatpush1.xpose.msra.mxu0 %v2139
        %2175 = vmatprep.subr.mxu0 0.0
        %2176 = vmatpush2.xpose.msra.mxu0 0.0
        %2177 = vmatprep.subr.mxu0 0.0
        %2178 = vmatpush2.xpose.msra.mxu0 0.0
        %2179 = vmatprep.subr.mxu0 0.0
        %2180 = vmatpush2.xpose.msra.mxu0 0.0
        %2181 = vmatprep.subr.mxu0 0.0
        %2182 = vmatpush2.xpose.msra.mxu0 0.0
        %2183 = vmatprep.subr.mxu0 0.0
        %2184 = vmatpush2.xpose.msra.mxu0 0.0
        %2185 = vmatprep.subr.mxu0 0.0
        %2186 = vmatpush2.xpose.msra.mxu0 0.0
        %2187 = vmatprep.subr.mxu0 0.0
        %2188 = vmatpush2.xpose.msra.mxu0 0.0
        %2189 = vmatprep.subr.mxu0 0.0
        %2190 = vmatpush2.xpose.msra.mxu0 0.0
        %2191 = vmatprep.subr.mxu0 0.0
        %2192 = vmatpush2.xpose.msra.mxu0 0.0
        %2193 = vmatprep.subr.mxu0 0.0
        %2194 = vmatpush2.xpose.msra.mxu0 0.0
        %2195 = vmatprep.subr.mxu0 0.0
        %2196 = vmatpush2.xpose.msra.mxu0 0.0
        %2197 = vmatprep.subr.mxu0 0.0
        %2198 = vmatpush2.xpose.msra.mxu0 0.0
        %2199 = vmatprep.subr.mxu0 0.0
        %2200 = vmatpush2.xpose.msra.mxu0 0.0
        %2201 = vmatprep.subr.mxu0 0.0
        %2202 = vmatpush2.xpose.msra.mxu0 0.0
        %2203 = vmatprep.subr.mxu0 0.0
        %2204 = vmatpush2.xpose.msra.mxu0 0.0
        %2205 = vmatprep.subr.mxu0 0.0
        %2206 = vmatpush2.xpose.msra.mxu0 0.0
        %2207 = vmatprep.mubr.f32.mxu0 0.0
        %2208 = vmatmul.mubr.f32.gmra.mxu0 %v2134
        %v2209 = vpop.f32.mrf.mxu0
        %v2210 = vadd.f32 0.0, %v2209
        %v2211 = vpop.f32.mrf.mxu0
        %2212 = vmatprep.mubr.f32.mxu0 0.0
        %2213 = vmatmul.mubr.f32.gmra.mxu0 %v2137
        %v2214 = vpop.f32.mrf.mxu0
        %v2215 = vadd.f32 0.0, %v2214
        %v2216 = vpop.f32.mrf.mxu0
        %2217 = vdwg.mxu0
        %2220 = vrot.lane.b32.xlu0 %v1088, 96
        %v2221 = vpop.permute.xlu0 %2220
        %2222 = vrot.lane.b32.xlu0 %v1093, 96
        %v2223 = vpop.permute.xlu0 %2222
        %v2225 = vsel %vm1222, %v968, 0
        %v2228 = vsel %vm1222, %v973, 0
        %v2230 = vsel %vm1222, %v2221, 0
        %v2232 = vsel %vm1222, %v2223, 0
        %2234 = vmatprep.subr.mxu0 0.0
        %2235 = vmatpush1.xpose.msra.mxu0 0.0
        %2236 = vmatprep.subr.mxu0 0.0
        %2237 = vmatpush1.xpose.msra.mxu0 0.0
        %2238 = vmatprep.subr.mxu0 0.0
        %2239 = vmatpush1.xpose.msra.mxu0 0.0
        %2240 = vmatprep.subr.mxu0 0.0
        %2241 = vmatpush1.xpose.msra.mxu0 0.0
        %2242 = vmatprep.subr.mxu0 0.0
        %2243 = vmatpush1.xpose.msra.mxu0 0.0
        %2244 = vmatprep.subr.mxu0 0.0
        %2245 = vmatpush1.xpose.msra.mxu0 0.0
        %2246 = vmatprep.subr.mxu0 0.0
        %2247 = vmatpush1.xpose.msra.mxu0 0.0
        %2248 = vmatprep.subr.mxu0 0.0
        %2249 = vmatpush1.xpose.msra.mxu0 0.0
        %2250 = vmatprep.subr.mxu0 0.0
        %2251 = vmatpush1.xpose.msra.mxu0 0.0
        %2252 = vmatprep.subr.mxu0 0.0
        %2253 = vmatpush1.xpose.msra.mxu0 0.0
        %2254 = vmatprep.subr.mxu0 0.0
        %2255 = vmatpush1.xpose.msra.mxu0 0.0
        %2256 = vmatprep.subr.mxu0 0.0
        %2257 = vmatpush1.xpose.msra.mxu0 0.0
        %2258 = vmatprep.subr.mxu0 0.0
        %2259 = vmatpush1.xpose.msra.mxu0 0.0
        %2260 = vmatprep.subr.mxu0 0.0
        %2261 = vmatpush1.xpose.msra.mxu0 0.0
        %2262 = vmatprep.subr.mxu0 0.0
        %2263 = vmatpush1.xpose.msra.mxu0 %v2232
        %2264 = vmatprep.subr.mxu0 0.0
        %2265 = vmatpush1.xpose.msra.mxu0 %v2230
        %2266 = vmatprep.subr.mxu0 0.0
        %2267 = vmatpush2.xpose.msra.mxu0 0.0
        %2268 = vmatprep.subr.mxu0 0.0
        %2269 = vmatpush2.xpose.msra.mxu0 0.0
        %2270 = vmatprep.subr.mxu0 0.0
        %2271 = vmatpush2.xpose.msra.mxu0 0.0
        %2272 = vmatprep.subr.mxu0 0.0
        %2273 = vmatpush2.xpose.msra.mxu0 0.0
        %2274 = vmatprep.subr.mxu0 0.0
        %2275 = vmatpush2.xpose.msra.mxu0 0.0
        %2276 = vmatprep.subr.mxu0 0.0
        %2277 = vmatpush2.xpose.msra.mxu0 0.0
        %2278 = vmatprep.subr.mxu0 0.0
        %2279 = vmatpush2.xpose.msra.mxu0 0.0
        %2280 = vmatprep.subr.mxu0 0.0
        %2281 = vmatpush2.xpose.msra.mxu0 0.0
        %2282 = vmatprep.subr.mxu0 0.0
        %2283 = vmatpush2.xpose.msra.mxu0 0.0
        %2284 = vmatprep.subr.mxu0 0.0
        %2285 = vmatpush2.xpose.msra.mxu0 0.0
        %2286 = vmatprep.subr.mxu0 0.0
        %2287 = vmatpush2.xpose.msra.mxu0 0.0
        %2288 = vmatprep.subr.mxu0 0.0
        %2289 = vmatpush2.xpose.msra.mxu0 0.0
        %2290 = vmatprep.subr.mxu0 0.0
        %2291 = vmatpush2.xpose.msra.mxu0 0.0
        %2292 = vmatprep.subr.mxu0 0.0
        %2293 = vmatpush2.xpose.msra.mxu0 0.0
        %2294 = vmatprep.subr.mxu0 0.0
        %2295 = vmatpush2.xpose.msra.mxu0 0.0
        %2296 = vmatprep.subr.mxu0 0.0
        %2297 = vmatpush2.xpose.msra.mxu0 0.0
        %2298 = vmatprep.mubr.f32.mxu0 0.0
        %2299 = vmatmul.mubr.f32.gmra.mxu0 %v2225
        %v2300 = vpop.f32.mrf.mxu0
        %v2301 = vadd.f32 0.0, %v2300
        %v2302 = vpop.f32.mrf.mxu0
        %2303 = vmatprep.mubr.f32.mxu0 0.0
        %2304 = vmatmul.mubr.f32.gmra.mxu0 %v2228
        %v2305 = vpop.f32.mrf.mxu0
        %v2306 = vadd.f32 0.0, %v2305
        %v2307 = vpop.f32.mrf.mxu0
        %2308 = vdwg.mxu0
        %v2309 = vmul.f32 %v1300, 0.17677669
        %v2310 = vmul.f32 %v1305, 0.17677669
        %v2311 = vmul.f32 %v1391, 0.17677669
        %v2312 = vmul.f32 %v1396, 0.17677669
        %v2313 = vmul.f32 %v1482, 0.17677669
        %v2314 = vmul.f32 %v1487, 0.17677669
        %v2315 = vmul.f32 %v1573, 0.17677669
        %v2316 = vmul.f32 %v1578, 0.17677669
        %v2317 = vmul.f32 %v1664, 0.17677669
        %v2318 = vmul.f32 %v1669, 0.17677669
        %v2319 = vmul.f32 %v1755, 0.17677669
        %v2320 = vmul.f32 %v1760, 0.17677669
        %v2321 = vmul.f32 %v1846, 0.17677669
        %v2322 = vmul.f32 %v1851, 0.17677669
        %v2323 = vmul.f32 %v1937, 0.17677669
        %v2324 = vmul.f32 %v1942, 0.17677669
        %v2325 = vmul.f32 %v2028, 0.17677669
        %v2326 = vmul.f32 %v2033, 0.17677669
        %v2327 = vmul.f32 %v2119, 0.17677669
        %v2328 = vmul.f32 %v2124, 0.17677669
        %v2329 = vmul.f32 %v2210, 0.17677669
        %v2330 = vmul.f32 %v2215, 0.17677669
        %v2331 = vmul.f32 %v2301, 0.17677669
        %v2332 = vmul.f32 %v2306, 0.17677669
        %v2333 = vld [vmem:[%s484] sm:$0x3]
        %v2334 = vld [vmem:[%s484 + $0x2] sm:$0x3]
        %v2335 = vld [vmem:[%s484 + $0x4] sm:$0x3]
        %v2336 = vld [vmem:[%s484 + $0x6] sm:$0x3]
        %v2337 = vld [vmem:[%s484 + $0x8] sm:$0x3]
        %v2338 = vld [vmem:[%s484 + $0xa] sm:$0x3]
        %v2339 = vld [vmem:[%s484 + $0xc] sm:$0x3]
        %v2340 = vld [vmem:[%s484 + $0xe] sm:$0x3]
        %v2341 = vld [vmem:[%s484 + $0x10] sm:$0x3]
        %v2342 = vld [vmem:[%s484 + $0x12] sm:$0x3]
        %v2343 = vld [vmem:[%s484 + $0x14] sm:$0x3]
        %v2344 = vld [vmem:[%s484 + $0x16] sm:$0x3]
        %v2345 = vld [vmem:[%s484 + $0x18] sm:$0x3]
        %v2346 = vld [vmem:[%s484 + $0x1a] sm:$0x3]
        %v2347 = vld [vmem:[%s484 + $0x1c] sm:$0x3]
        %v2348 = vld [vmem:[%s484 + $0x1e] sm:$0x3]
        %v2349 = vld [vmem:[%s484 + $0x20] sm:$0x3]
        %v2350 = vld [vmem:[%s484 + $0x22] sm:$0x3]
        %v2351 = vld [vmem:[%s484 + $0x24] sm:$0x3]
        %v2352 = vld [vmem:[%s484 + $0x26] sm:$0x3]
        %v2353 = vld [vmem:[%s484 + $0x28] sm:$0x3]
        %v2354 = vld [vmem:[%s484 + $0x2a] sm:$0x3]
        %v2355 = vld [vmem:[%s484 + $0x2c] sm:$0x3]
        %v2356 = vld [vmem:[%s484 + $0x2e] sm:$0x3]
        %v2357 = vunpack.c.0.s8 %v2333
        %v2358 = vunpack.c.0.s8 %v2334
        %v2359 = vunpack.c.0.s8 %v2335
        %v2360 = vunpack.c.0.s8 %v2336
        %v2361 = vunpack.c.0.s8 %v2337
        %v2362 = vunpack.c.0.s8 %v2338
        %v2363 = vunpack.c.0.s8 %v2339
        %v2364 = vunpack.c.0.s8 %v2340
        %v2365 = vunpack.c.0.s8 %v2341
        %v2366 = vunpack.c.0.s8 %v2342
        %v2367 = vunpack.c.0.s8 %v2343
        %v2368 = vunpack.c.0.s8 %v2344
        %v2369 = vunpack.c.0.s8 %v2345
        %v2370 = vunpack.c.0.s8 %v2346
        %v2371 = vunpack.c.0.s8 %v2347
        %v2372 = vunpack.c.0.s8 %v2348
        %v2373 = vunpack.c.0.s8 %v2349
        %v2374 = vunpack.c.0.s8 %v2350
        %v2375 = vunpack.c.0.s8 %v2351
        %v2376 = vunpack.c.0.s8 %v2352
        %v2377 = vunpack.c.0.s8 %v2353
        %v2378 = vunpack.c.0.s8 %v2354
        %v2379 = vunpack.c.0.s8 %v2355
        %v2380 = vunpack.c.0.s8 %v2356
        %v2381 = vcvt.s32.f32 %v2357
        %v2382 = vcvt.s32.f32 %v2358
        %v2383 = vcvt.s32.f32 %v2359
        %v2384 = vcvt.s32.f32 %v2360
        %v2385 = vcvt.s32.f32 %v2361
        %v2386 = vcvt.s32.f32 %v2362
        %v2387 = vcvt.s32.f32 %v2363
        %v2388 = vcvt.s32.f32 %v2364
        %v2389 = vcvt.s32.f32 %v2365
        %v2390 = vcvt.s32.f32 %v2366
        %v2391 = vcvt.s32.f32 %v2367
        %v2392 = vcvt.s32.f32 %v2368
        %v2393 = vcvt.s32.f32 %v2369
        %v2394 = vcvt.s32.f32 %v2370
        %v2395 = vcvt.s32.f32 %v2371
        %v2396 = vcvt.s32.f32 %v2372
        %v2397 = vcvt.s32.f32 %v2373
        %v2398 = vcvt.s32.f32 %v2374
        %v2399 = vcvt.s32.f32 %v2375
        %v2400 = vcvt.s32.f32 %v2376
        %v2401 = vcvt.s32.f32 %v2377
        %v2402 = vcvt.s32.f32 %v2378
        %v2403 = vcvt.s32.f32 %v2379
        %v2404 = vcvt.s32.f32 %v2380
        %vm2405 = vcmp.gt.f32.partialorder %v2381, 0.0
        %vm2406 = vcmp.gt.f32.partialorder %v2382, 0.0
        %vm2407 = vcmp.gt.f32.partialorder %v2383, 0.0
        %vm2408 = vcmp.gt.f32.partialorder %v2384, 0.0
        %vm2409 = vcmp.gt.f32.partialorder %v2385, 0.0
        %vm2410 = vcmp.gt.f32.partialorder %v2386, 0.0
        %vm2411 = vcmp.gt.f32.partialorder %v2387, 0.0
        %vm2412 = vcmp.gt.f32.partialorder %v2388, 0.0
        %vm2413 = vcmp.gt.f32.partialorder %v2389, 0.0
        %vm2414 = vcmp.gt.f32.partialorder %v2390, 0.0
        %vm2415 = vcmp.gt.f32.partialorder %v2391, 0.0
        %vm2416 = vcmp.gt.f32.partialorder %v2392, 0.0
        %vm2417 = vcmp.gt.f32.partialorder %v2393, 0.0
        %vm2418 = vcmp.gt.f32.partialorder %v2394, 0.0
        %vm2419 = vcmp.gt.f32.partialorder %v2395, 0.0
        %vm2420 = vcmp.gt.f32.partialorder %v2396, 0.0
        %vm2421 = vcmp.gt.f32.partialorder %v2397, 0.0
        %vm2422 = vcmp.gt.f32.partialorder %v2398, 0.0
        %vm2423 = vcmp.gt.f32.partialorder %v2399, 0.0
        %vm2424 = vcmp.gt.f32.partialorder %v2400, 0.0
        %vm2425 = vcmp.gt.f32.partialorder %v2401, 0.0
        %vm2426 = vcmp.gt.f32.partialorder %v2402, 0.0
        %vm2427 = vcmp.gt.f32.partialorder %v2403, 0.0
        %vm2428 = vcmp.gt.f32.partialorder %v2404, 0.0
        %v2429 = vsel %vm2405, -1e+09, %v2309
        %v2430 = vsel %vm2406, -1e+09, %v2310
        %v2431 = vsel %vm2407, -1e+09, %v2311
        %v2432 = vsel %vm2408, -1e+09, %v2312
        %v2433 = vsel %vm2409, -1e+09, %v2313
        %v2434 = vsel %vm2410, -1e+09, %v2314
        %v2435 = vsel %vm2411, -1e+09, %v2315
        %v2436 = vsel %vm2412, -1e+09, %v2316
        %v2437 = vsel %vm2413, -1e+09, %v2317
        %v2438 = vsel %vm2414, -1e+09, %v2318
        %v2439 = vsel %vm2415, -1e+09, %v2319
        %v2440 = vsel %vm2416, -1e+09, %v2320
        %v2441 = vsel %vm2417, -1e+09, %v2321
        %v2442 = vsel %vm2418, -1e+09, %v2322
        %v2443 = vsel %vm2419, -1e+09, %v2323
        %v2444 = vsel %vm2420, -1e+09, %v2324
        %v2445 = vsel %vm2421, -1e+09, %v2325
        %v2446 = vsel %vm2422, -1e+09, %v2326
        %v2447 = vsel %vm2423, -1e+09, %v2327
        %v2448 = vsel %vm2424, -1e+09, %v2328
        %v2449 = vsel %vm2425, -1e+09, %v2329
        %v2450 = vsel %vm2426, -1e+09, %v2330
        %v2451 = vsel %vm2427, -1e+09, %v2331
        %v2452 = vsel %vm2428, -1e+09, %v2332
        %vm2453 = vcmask 130048
        %v2454 = vsel %vm2453, %v2429, -inf
        %2455 = vmax.xlane.f32.xlu0 %v2454
        %v2456 = vpop.xlane.xlu0 %2455
        %v2457 = vsel %vm2453, %v2430, -inf
        %2458 = vmax.xlane.f32.xlu0 %v2457
        %v2459 = vpop.xlane.xlu0 %2458
        %v2460 = vsel %vm2453, %v2431, -inf
        %2461 = vmax.xlane.f32.xlu0 %v2460
        %v2462 = vpop.xlane.xlu0 %2461
        %v2463 = vsel %vm2453, %v2432, -inf
        %2464 = vmax.xlane.f32.xlu0 %v2463
        %v2465 = vpop.xlane.xlu0 %2464
        %v2466 = vsel %vm2453, %v2433, -inf
        %2467 = vmax.xlane.f32.xlu0 %v2466
        %v2468 = vpop.xlane.xlu0 %2467
        %v2469 = vsel %vm2453, %v2434, -inf
        %2470 = vmax.xlane.f32.xlu0 %v2469
        %v2471 = vpop.xlane.xlu0 %2470
        %v2472 = vsel %vm2453, %v2435, -inf
        %2473 = vmax.xlane.f32.xlu0 %v2472
        %v2474 = vpop.xlane.xlu0 %2473
        %v2475 = vsel %vm2453, %v2436, -inf
        %2476 = vmax.xlane.f32.xlu0 %v2475
        %v2477 = vpop.xlane.xlu0 %2476
        %v2478 = vsel %vm2453, %v2437, -inf
        %2479 = vmax.xlane.f32.xlu0 %v2478
        %v2480 = vpop.xlane.xlu0 %2479
        %v2481 = vsel %vm2453, %v2438, -inf
        %2482 = vmax.xlane.f32.xlu0 %v2481
        %v2483 = vpop.xlane.xlu0 %2482
        %v2484 = vsel %vm2453, %v2439, -inf
        %2485 = vmax.xlane.f32.xlu0 %v2484
        %v2486 = vpop.xlane.xlu0 %2485
        %v2487 = vsel %vm2453, %v2440, -inf
        %2488 = vmax.xlane.f32.xlu0 %v2487
        %v2489 = vpop.xlane.xlu0 %2488
        %v2490 = vsel %vm2453, %v2441, -inf
        %2491 = vmax.xlane.f32.xlu0 %v2490
        %v2492 = vpop.xlane.xlu0 %2491
        %v2493 = vsel %vm2453, %v2442, -inf
        %2494 = vmax.xlane.f32.xlu0 %v2493
        %v2495 = vpop.xlane.xlu0 %2494
        %v2496 = vsel %vm2453, %v2443, -inf
        %2497 = vmax.xlane.f32.xlu0 %v2496
        %v2498 = vpop.xlane.xlu0 %2497
        %v2499 = vsel %vm2453, %v2444, -inf
        %2500 = vmax.xlane.f32.xlu0 %v2499
        %v2501 = vpop.xlane.xlu0 %2500
        %v2502 = vsel %vm2453, %v2445, -inf
        %2503 = vmax.xlane.f32.xlu0 %v2502
        %v2504 = vpop.xlane.xlu0 %2503
        %v2505 = vsel %vm2453, %v2446, -inf
        %2506 = vmax.xlane.f32.xlu0 %v2505
        %v2507 = vpop.xlane.xlu0 %2506
        %v2508 = vsel %vm2453, %v2447, -inf
        %2509 = vmax.xlane.f32.xlu0 %v2508
        %v2510 = vpop.xlane.xlu0 %2509
        %v2511 = vsel %vm2453, %v2448, -inf
        %2512 = vmax.xlane.f32.xlu0 %v2511
        %v2513 = vpop.xlane.xlu0 %2512
        %v2514 = vsel %vm2453, %v2449, -inf
        %2515 = vmax.xlane.f32.xlu0 %v2514
        %v2516 = vpop.xlane.xlu0 %2515
        %v2517 = vsel %vm2453, %v2450, -inf
        %2518 = vmax.xlane.f32.xlu0 %v2517
        %v2519 = vpop.xlane.xlu0 %2518
        %v2520 = vsel %vm2453, %v2451, -inf
        %2521 = vmax.xlane.f32.xlu0 %v2520
        %v2522 = vpop.xlane.xlu0 %2521
        %v2523 = vsel %vm2453, %v2452, -inf
        %2524 = vmax.xlane.f32.xlu0 %v2523
        %v2525 = vpop.xlane.xlu0 %2524
        %v2526 = vsub.f32 %v2429, %v2456
        %v2527 = vsub.f32 %v2430, %v2459
        %v2528 = vsub.f32 %v2431, %v2462
        %v2529 = vsub.f32 %v2432, %v2465
        %v2530 = vsub.f32 %v2433, %v2468
        %v2531 = vsub.f32 %v2434, %v2471
        %v2532 = vsub.f32 %v2435, %v2474
        %v2533 = vsub.f32 %v2436, %v2477
        %v2534 = vsub.f32 %v2437, %v2480
        %v2535 = vsub.f32 %v2438, %v2483
        %v2536 = vsub.f32 %v2439, %v2486
        %v2537 = vsub.f32 %v2440, %v2489
        %v2538 = vsub.f32 %v2441, %v2492
        %v2539 = vsub.f32 %v2442, %v2495
        %v2540 = vsub.f32 %v2443, %v2498
        %v2541 = vsub.f32 %v2444, %v2501
        %v2542 = vsub.f32 %v2445, %v2504
        %v2543 = vsub.f32 %v2446, %v2507
        %v2544 = vsub.f32 %v2447, %v2510
        %v2545 = vsub.f32 %v2448, %v2513
        %v2546 = vsub.f32 %v2449, %v2516
        %v2547 = vsub.f32 %v2450, %v2519
        %v2548 = vsub.f32 %v2451, %v2522
        %v2549 = vsub.f32 %v2452, %v2525
        %v2550 = vmul.f32 %v2526, 1.442695
        %v2551 = vpow.pop %v2550
        %v2552 = vmul.f32 %v2527, 1.442695
        %v2553 = vpow.pop %v2552
        %v2554 = vmul.f32 %v2528, 1.442695
        %v2555 = vpow.pop %v2554
        %v2556 = vmul.f32 %v2529, 1.442695
        %v2557 = vpow.pop %v2556
        %v2558 = vmul.f32 %v2530, 1.442695
        %v2559 = vpow.pop %v2558
        %v2560 = vmul.f32 %v2531, 1.442695
        %v2561 = vpow.pop %v2560
        %v2562 = vmul.f32 %v2532, 1.442695
        %v2563 = vpow.pop %v2562
        %v2564 = vmul.f32 %v2533, 1.442695
        %v2565 = vpow.pop %v2564
        %v2566 = vmul.f32 %v2534, 1.442695
        %v2567 = vpow.pop %v2566
        %v2568 = vmul.f32 %v2535, 1.442695
        %v2569 = vpow.pop %v2568
        %v2570 = vmul.f32 %v2536, 1.442695
        %v2571 = vpow.pop %v2570
        %v2572 = vmul.f32 %v2537, 1.442695
        %v2573 = vpow.pop %v2572
        %v2574 = vmul.f32 %v2538, 1.442695
        %v2575 = vpow.pop %v2574
        %v2576 = vmul.f32 %v2539, 1.442695
        %v2577 = vpow.pop %v2576
        %v2578 = vmul.f32 %v2540, 1.442695
        %v2579 = vpow.pop %v2578
        %v2580 = vmul.f32 %v2541, 1.442695
        %v2581 = vpow.pop %v2580
        %v2582 = vmul.f32 %v2542, 1.442695
        %v2583 = vpow.pop %v2582
        %v2584 = vmul.f32 %v2543, 1.442695
        %v2585 = vpow.pop %v2584
        %v2586 = vmul.f32 %v2544, 1.442695
        %v2587 = vpow.pop %v2586
        %v2588 = vmul.f32 %v2545, 1.442695
        %v2589 = vpow.pop %v2588
        %v2590 = vmul.f32 %v2546, 1.442695
        %v2591 = vpow.pop %v2590
        %v2592 = vmul.f32 %v2547, 1.442695
        %v2593 = vpow.pop %v2592
        %v2594 = vmul.f32 %v2548, 1.442695
        %v2595 = vpow.pop %v2594
        %v2596 = vmul.f32 %v2549, 1.442695
        %v2597 = vpow.pop %v2596
        %v2598 = vsel %vm2453, %v2551, 0.0
        %2599 = vadd.xlane.f32.xlu0 %v2598
        %v2600 = vpop.xlane.xlu0 %2599
        %v2601 = vsel %vm2453, %v2553, 0.0
        %2602 = vadd.xlane.f32.xlu0 %v2601
        %v2603 = vpop.xlane.xlu0 %2602
        %v2604 = vsel %vm2453, %v2555, 0.0
        %2605 = vadd.xlane.f32.xlu0 %v2604
        %v2606 = vpop.xlane.xlu0 %2605
        %v2607 = vsel %vm2453, %v2557, 0.0
        %2608 = vadd.xlane.f32.xlu0 %v2607
        %v2609 = vpop.xlane.xlu0 %2608
        %v2610 = vsel %vm2453, %v2559, 0.0
        %2611 = vadd.xlane.f32.xlu0 %v2610
        %v2612 = vpop.xlane.xlu0 %2611
        %v2613 = vsel %vm2453, %v2561, 0.0
        %2614 = vadd.xlane.f32.xlu0 %v2613
        %v2615 = vpop.xlane.xlu0 %2614
        %v2616 = vsel %vm2453, %v2563, 0.0
        %2617 = vadd.xlane.f32.xlu0 %v2616
        %v2618 = vpop.xlane.xlu0 %2617
        %v2619 = vsel %vm2453, %v2565, 0.0
        %2620 = vadd.xlane.f32.xlu0 %v2619
        %v2621 = vpop.xlane.xlu0 %2620
        %v2622 = vsel %vm2453, %v2567, 0.0
        %2623 = vadd.xlane.f32.xlu0 %v2622
        %v2624 = vpop.xlane.xlu0 %2623
        %v2625 = vsel %vm2453, %v2569, 0.0
        %2626 = vadd.xlane.f32.xlu0 %v2625
        %v2627 = vpop.xlane.xlu0 %2626
        %v2628 = vsel %vm2453, %v2571, 0.0
        %2629 = vadd.xlane.f32.xlu0 %v2628
        %v2630 = vpop.xlane.xlu0 %2629
        %v2631 = vsel %vm2453, %v2573, 0.0
        %2632 = vadd.xlane.f32.xlu0 %v2631
        %v2633 = vpop.xlane.xlu0 %2632
        %v2634 = vsel %vm2453, %v2575, 0.0
        %2635 = vadd.xlane.f32.xlu0 %v2634
        %v2636 = vpop.xlane.xlu0 %2635
        %v2637 = vsel %vm2453, %v2577, 0.0
        %2638 = vadd.xlane.f32.xlu0 %v2637
        %v2639 = vpop.xlane.xlu0 %2638
        %v2640 = vsel %vm2453, %v2579, 0.0
        %2641 = vadd.xlane.f32.xlu0 %v2640
        %v2642 = vpop.xlane.xlu0 %2641
        %v2643 = vsel %vm2453, %v2581, 0.0
        %2644 = vadd.xlane.f32.xlu0 %v2643
        %v2645 = vpop.xlane.xlu0 %2644
        %v2646 = vsel %vm2453, %v2583, 0.0
        %2647 = vadd.xlane.f32.xlu0 %v2646
        %v2648 = vpop.xlane.xlu0 %2647
        %v2649 = vsel %vm2453, %v2585, 0.0
        %2650 = vadd.xlane.f32.xlu0 %v2649
        %v2651 = vpop.xlane.xlu0 %2650
        %v2652 = vsel %vm2453, %v2587, 0.0
        %2653 = vadd.xlane.f32.xlu0 %v2652
        %v2654 = vpop.xlane.xlu0 %2653
        %v2655 = vsel %vm2453, %v2589, 0.0
        %2656 = vadd.xlane.f32.xlu0 %v2655
        %v2657 = vpop.xlane.xlu0 %2656
        %v2658 = vsel %vm2453, %v2591, 0.0
        %2659 = vadd.xlane.f32.xlu0 %v2658
        %v2660 = vpop.xlane.xlu0 %2659
        %v2661 = vsel %vm2453, %v2593, 0.0
        %2662 = vadd.xlane.f32.xlu0 %v2661
        %v2663 = vpop.xlane.xlu0 %2662
        %v2664 = vsel %vm2453, %v2595, 0.0
        %2665 = vadd.xlane.f32.xlu0 %v2664
        %v2666 = vpop.xlane.xlu0 %2665
        %v2667 = vsel %vm2453, %v2597, 0.0
        %2668 = vadd.xlane.f32.xlu0 %v2667
        %v2669 = vpop.xlane.xlu0 %2668
        %v2670 = vrcp.pop %v2600
        %v2671 = vrcp.pop %v2603
        %v2672 = vrcp.pop %v2606
        %v2673 = vrcp.pop %v2609
        %v2674 = vrcp.pop %v2612
        %v2675 = vrcp.pop %v2615
        %v2676 = vrcp.pop %v2618
        %v2677 = vrcp.pop %v2621
        %v2678 = vrcp.pop %v2624
        %v2679 = vrcp.pop %v2627
        %v2680 = vrcp.pop %v2630
        %v2681 = vrcp.pop %v2633
        %v2682 = vrcp.pop %v2636
        %v2683 = vrcp.pop %v2639
        %v2684 = vrcp.pop %v2642
        %v2685 = vrcp.pop %v2645
        %v2686 = vrcp.pop %v2648
        %v2687 = vrcp.pop %v2651
        %v2688 = vrcp.pop %v2654
        %v2689 = vrcp.pop %v2657
        %v2690 = vrcp.pop %v2660
        %v2691 = vrcp.pop %v2663
        %v2692 = vrcp.pop %v2666
        %v2693 = vrcp.pop %v2669
        %v2694 = vmul.f32 %v2551, %v2670
        %v2695 = vmul.f32 %v2553, %v2671
        %v2696 = vmul.f32 %v2555, %v2672
        %v2697 = vmul.f32 %v2557, %v2673
        %v2698 = vmul.f32 %v2559, %v2674
        %v2699 = vmul.f32 %v2561, %v2675
        %v2700 = vmul.f32 %v2563, %v2676
        %v2701 = vmul.f32 %v2565, %v2677
        %v2702 = vmul.f32 %v2567, %v2678
        %v2703 = vmul.f32 %v2569, %v2679
        %v2704 = vmul.f32 %v2571, %v2680
        %v2705 = vmul.f32 %v2573, %v2681
        %v2706 = vmul.f32 %v2575, %v2682
        %v2707 = vmul.f32 %v2577, %v2683
        %v2708 = vmul.f32 %v2579, %v2684
        %v2709 = vmul.f32 %v2581, %v2685
        %v2710 = vmul.f32 %v2583, %v2686
        %v2711 = vmul.f32 %v2585, %v2687
        %v2712 = vmul.f32 %v2587, %v2688
        %v2713 = vmul.f32 %v2589, %v2689
        %v2714 = vmul.f32 %v2591, %v2690
        %v2715 = vmul.f32 %v2593, %v2691
        %v2716 = vmul.f32 %v2595, %v2692
        %v2717 = vmul.f32 %v2597, %v2693
        %2720 = vrot.lane.b32.xlu0 %v1098, 64
        %v2721 = vpop.permute.xlu0 %2720
        %2722 = vrot.lane.b32.xlu0 %v1103, 64
        %v2723 = vpop.permute.xlu0 %2722
        %v2727 = vsel %vm2453, %v2694, 0
        %v2730 = vsel %vm2453, %v2695, 0
        %2732 = vmatprep.subr.mxu0 0.0
        %2733 = vmatpush1.msra.mxu0 0.0
        %2734 = vmatprep.subr.mxu0 0.0
        %2735 = vmatpush1.msra.mxu0 0.0
        %2736 = vmatprep.subr.mxu0 0.0
        %2737 = vmatpush1.msra.mxu0 0.0
        %2738 = vmatprep.subr.mxu0 0.0
        %2739 = vmatpush1.msra.mxu0 0.0
        %2740 = vmatprep.subr.mxu0 0.0
        %2741 = vmatpush1.msra.mxu0 0.0
        %2742 = vmatprep.subr.mxu0 0.0
        %2743 = vmatpush1.msra.mxu0 0.0
        %2744 = vmatprep.subr.mxu0 0.0
        %2745 = vmatpush1.msra.mxu0 0.0
        %2746 = vmatprep.subr.mxu0 0.0
        %2747 = vmatpush1.msra.mxu0 0.0
        %2748 = vmatprep.subr.mxu0 0.0
        %2749 = vmatpush1.msra.mxu0 0.0
        %2750 = vmatprep.subr.mxu0 0.0
        %2751 = vmatpush1.msra.mxu0 0.0
        %2752 = vmatprep.subr.mxu0 0.0
        %2753 = vmatpush1.msra.mxu0 0.0
        %2754 = vmatprep.subr.mxu0 0.0
        %2755 = vmatpush1.msra.mxu0 0.0
        %2756 = vmatprep.subr.mxu0 0.0
        %2757 = vmatpush1.msra.mxu0 0.0
        %2758 = vmatprep.subr.mxu0 0.0
        %2759 = vmatpush1.msra.mxu0 0.0
        %2760 = vmatprep.subr.mxu0 0.0
        %2761 = vmatpush1.msra.mxu0 %v2723
        %2762 = vmatprep.subr.mxu0 0.0
        %2763 = vmatpush1.msra.mxu0 %v2721
        %2764 = vmatprep.subr.mxu0 0.0
        %2765 = vmatpush2.msra.mxu0 0.0
        %2766 = vmatprep.subr.mxu0 0.0
        %2767 = vmatpush2.msra.mxu0 0.0
        %2768 = vmatprep.subr.mxu0 0.0
        %2769 = vmatpush2.msra.mxu0 0.0
        %2770 = vmatprep.subr.mxu0 0.0
        %2771 = vmatpush2.msra.mxu0 0.0
        %2772 = vmatprep.subr.mxu0 0.0
        %2773 = vmatpush2.msra.mxu0 0.0
        %2774 = vmatprep.subr.mxu0 0.0
        %2775 = vmatpush2.msra.mxu0 0.0
        %2776 = vmatprep.subr.mxu0 0.0
        %2777 = vmatpush2.msra.mxu0 0.0
        %2778 = vmatprep.subr.mxu0 0.0
        %2779 = vmatpush2.msra.mxu0 0.0
        %2780 = vmatprep.subr.mxu0 0.0
        %2781 = vmatpush2.msra.mxu0 0.0
        %2782 = vmatprep.subr.mxu0 0.0
        %2783 = vmatpush2.msra.mxu0 0.0
        %2784 = vmatprep.subr.mxu0 0.0
        %2785 = vmatpush2.msra.mxu0 0.0
        %2786 = vmatprep.subr.mxu0 0.0
        %2787 = vmatpush2.msra.mxu0 0.0
        %2788 = vmatprep.subr.mxu0 0.0
        %2789 = vmatpush2.msra.mxu0 0.0
        %2790 = vmatprep.subr.mxu0 0.0
        %2791 = vmatpush2.msra.mxu0 0.0
        %2792 = vmatprep.subr.mxu0 0.0
        %2793 = vmatpush2.msra.mxu0 0.0
        %2794 = vmatprep.subr.mxu0 0.0
        %2795 = vmatpush2.msra.mxu0 0.0
        %2796 = vmatprep.mubr.f32.mxu0 0.0
        %2797 = vmatmul.mubr.f32.gmra.mxu0 %v2727
        %v2798 = vpop.f32.mrf.mxu0
        %v2799 = vadd.f32 0.0, %v2798
        %v2800 = vpop.f32.mrf.mxu0
        %2801 = vmatprep.mubr.f32.mxu0 0.0
        %2802 = vmatmul.mubr.f32.gmra.mxu0 %v2730
        %v2803 = vpop.f32.mrf.mxu0
        %v2804 = vadd.f32 0.0, %v2803
        %v2805 = vpop.f32.mrf.mxu0
        %2806 = vdwg.mxu0
        %2809 = vrot.lane.b32.xlu0 %v1108, 64
        %v2810 = vpop.permute.xlu0 %2809
        %2811 = vrot.lane.b32.xlu0 %v1113, 64
        %v2812 = vpop.permute.xlu0 %2811
        %v2816 = vsel %vm2453, %v2696, 0
        %v2819 = vsel %vm2453, %v2697, 0
        %2821 = vmatprep.subr.mxu0 0.0
        %2822 = vmatpush1.msra.mxu0 0.0
        %2823 = vmatprep.subr.mxu0 0.0
        %2824 = vmatpush1.msra.mxu0 0.0
        %2825 = vmatprep.subr.mxu0 0.0
        %2826 = vmatpush1.msra.mxu0 0.0
        %2827 = vmatprep.subr.mxu0 0.0
        %2828 = vmatpush1.msra.mxu0 0.0
        %2829 = vmatprep.subr.mxu0 0.0
        %2830 = vmatpush1.msra.mxu0 0.0
        %2831 = vmatprep.subr.mxu0 0.0
        %2832 = vmatpush1.msra.mxu0 0.0
        %2833 = vmatprep.subr.mxu0 0.0
        %2834 = vmatpush1.msra.mxu0 0.0
        %2835 = vmatprep.subr.mxu0 0.0
        %2836 = vmatpush1.msra.mxu0 0.0
        %2837 = vmatprep.subr.mxu0 0.0
        %2838 = vmatpush1.msra.mxu0 0.0
        %2839 = vmatprep.subr.mxu0 0.0
        %2840 = vmatpush1.msra.mxu0 0.0
        %2841 = vmatprep.subr.mxu0 0.0
        %2842 = vmatpush1.msra.mxu0 0.0
        %2843 = vmatprep.subr.mxu0 0.0
        %2844 = vmatpush1.msra.mxu0 0.0
        %2845 = vmatprep.subr.mxu0 0.0
        %2846 = vmatpush1.msra.mxu0 0.0
        %2847 = vmatprep.subr.mxu0 0.0
        %2848 = vmatpush1.msra.mxu0 0.0
        %2849 = vmatprep.subr.mxu0 0.0
        %2850 = vmatpush1.msra.mxu0 %v2812
        %2851 = vmatprep.subr.mxu0 0.0
        %2852 = vmatpush1.msra.mxu0 %v2810
        %2853 = vmatprep.subr.mxu0 0.0
        %2854 = vmatpush2.msra.mxu0 0.0
        %2855 = vmatprep.subr.mxu0 0.0
        %2856 = vmatpush2.msra.mxu0 0.0
        %2857 = vmatprep.subr.mxu0 0.0
        %2858 = vmatpush2.msra.mxu0 0.0
        %2859 = vmatprep.subr.mxu0 0.0
        %2860 = vmatpush2.msra.mxu0 0.0
        %2861 = vmatprep.subr.mxu0 0.0
        %2862 = vmatpush2.msra.mxu0 0.0
        %2863 = vmatprep.subr.mxu0 0.0
        %2864 = vmatpush2.msra.mxu0 0.0
        %2865 = vmatprep.subr.mxu0 0.0
        %2866 = vmatpush2.msra.mxu0 0.0
        %2867 = vmatprep.subr.mxu0 0.0
        %2868 = vmatpush2.msra.mxu0 0.0
        %2869 = vmatprep.subr.mxu0 0.0
        %2870 = vmatpush2.msra.mxu0 0.0
        %2871 = vmatprep.subr.mxu0 0.0
        %2872 = vmatpush2.msra.mxu0 0.0
        %2873 = vmatprep.subr.mxu0 0.0
        %2874 = vmatpush2.msra.mxu0 0.0
        %2875 = vmatprep.subr.mxu0 0.0
        %2876 = vmatpush2.msra.mxu0 0.0
        %2877 = vmatprep.subr.mxu0 0.0
        %2878 = vmatpush2.msra.mxu0 0.0
        %2879 = vmatprep.subr.mxu0 0.0
        %2880 = vmatpush2.msra.mxu0 0.0
        %2881 = vmatprep.subr.mxu0 0.0
        %2882 = vmatpush2.msra.mxu0 0.0
        %2883 = vmatprep.subr.mxu0 0.0
        %2884 = vmatpush2.msra.mxu0 0.0
        %2885 = vmatprep.mubr.f32.mxu0 0.0
        %2886 = vmatmul.mubr.f32.gmra.mxu0 %v2816
        %v2887 = vpop.f32.mrf.mxu0
        %v2888 = vadd.f32 0.0, %v2887
        %v2889 = vpop.f32.mrf.mxu0
        %2890 = vmatprep.mubr.f32.mxu0 0.0
        %2891 = vmatmul.mubr.f32.gmra.mxu0 %v2819
        %v2892 = vpop.f32.mrf.mxu0
        %v2893 = vadd.f32 0.0, %v2892
        %v2894 = vpop.f32.mrf.mxu0
        %2895 = vdwg.mxu0
        %2898 = vrot.lane.b32.xlu0 %v1118, 64
        %v2899 = vpop.permute.xlu0 %2898
        %2900 = vrot.lane.b32.xlu0 %v1123, 64
        %v2901 = vpop.permute.xlu0 %2900
        %v2905 = vsel %vm2453, %v2698, 0
        %v2908 = vsel %vm2453, %v2699, 0
        %2910 = vmatprep.subr.mxu0 0.0
        %2911 = vmatpush1.msra.mxu0 0.0
        %2912 = vmatprep.subr.mxu0 0.0
        %2913 = vmatpush1.msra.mxu0 0.0
        %2914 = vmatprep.subr.mxu0 0.0
        %2915 = vmatpush1.msra.mxu0 0.0
        %2916 = vmatprep.subr.mxu0 0.0
        %2917 = vmatpush1.msra.mxu0 0.0
        %2918 = vmatprep.subr.mxu0 0.0
        %2919 = vmatpush1.msra.mxu0 0.0
        %2920 = vmatprep.subr.mxu0 0.0
        %2921 = vmatpush1.msra.mxu0 0.0
        %2922 = vmatprep.subr.mxu0 0.0
        %2923 = vmatpush1.msra.mxu0 0.0
        %2924 = vmatprep.subr.mxu0 0.0
        %2925 = vmatpush1.msra.mxu0 0.0
        %2926 = vmatprep.subr.mxu0 0.0
        %2927 = vmatpush1.msra.mxu0 0.0
        %2928 = vmatprep.subr.mxu0 0.0
        %2929 = vmatpush1.msra.mxu0 0.0
        %2930 = vmatprep.subr.mxu0 0.0
        %2931 = vmatpush1.msra.mxu0 0.0
        %2932 = vmatprep.subr.mxu0 0.0
        %2933 = vmatpush1.msra.mxu0 0.0
        %2934 = vmatprep.subr.mxu0 0.0
        %2935 = vmatpush1.msra.mxu0 0.0
        %2936 = vmatprep.subr.mxu0 0.0
        %2937 = vmatpush1.msra.mxu0 0.0
        %2938 = vmatprep.subr.mxu0 0.0
        %2939 = vmatpush1.msra.mxu0 %v2901
        %2940 = vmatprep.subr.mxu0 0.0
        %2941 = vmatpush1.msra.mxu0 %v2899
        %2942 = vmatprep.subr.mxu0 0.0
        %2943 = vmatpush2.msra.mxu0 0.0
        %2944 = vmatprep.subr.mxu0 0.0
        %2945 = vmatpush2.msra.mxu0 0.0
        %2946 = vmatprep.subr.mxu0 0.0
        %2947 = vmatpush2.msra.mxu0 0.0
        %2948 = vmatprep.subr.mxu0 0.0
        %2949 = vmatpush2.msra.mxu0 0.0
        %2950 = vmatprep.subr.mxu0 0.0
        %2951 = vmatpush2.msra.mxu0 0.0
        %2952 = vmatprep.subr.mxu0 0.0
        %2953 = vmatpush2.msra.mxu0 0.0
        %2954 = vmatprep.subr.mxu0 0.0
        %2955 = vmatpush2.msra.mxu0 0.0
        %2956 = vmatprep.subr.mxu0 0.0
        %2957 = vmatpush2.msra.mxu0 0.0
        %2958 = vmatprep.subr.mxu0 0.0
        %2959 = vmatpush2.msra.mxu0 0.0
        %2960 = vmatprep.subr.mxu0 0.0
        %2961 = vmatpush2.msra.mxu0 0.0
        %2962 = vmatprep.subr.mxu0 0.0
        %2963 = vmatpush2.msra.mxu0 0.0
        %2964 = vmatprep.subr.mxu0 0.0
        %2965 = vmatpush2.msra.mxu0 0.0
        %2966 = vmatprep.subr.mxu0 0.0
        %2967 = vmatpush2.msra.mxu0 0.0
        %2968 = vmatprep.subr.mxu0 0.0
        %2969 = vmatpush2.msra.mxu0 0.0
        %2970 = vmatprep.subr.mxu0 0.0
        %2971 = vmatpush2.msra.mxu0 0.0
        %2972 = vmatprep.subr.mxu0 0.0
        %2973 = vmatpush2.msra.mxu0 0.0
        %2974 = vmatprep.mubr.f32.mxu0 0.0
        %2975 = vmatmul.mubr.f32.gmra.mxu0 %v2905
        %v2976 = vpop.f32.mrf.mxu0
        %v2977 = vadd.f32 0.0, %v2976
        %v2978 = vpop.f32.mrf.mxu0
        %2979 = vmatprep.mubr.f32.mxu0 0.0
        %2980 = vmatmul.mubr.f32.gmra.mxu0 %v2908
        %v2981 = vpop.f32.mrf.mxu0
        %v2982 = vadd.f32 0.0, %v2981
        %v2983 = vpop.f32.mrf.mxu0
        %2984 = vdwg.mxu0
        %2987 = vrot.lane.b32.xlu0 %v1128, 64
        %v2988 = vpop.permute.xlu0 %2987
        %2989 = vrot.lane.b32.xlu0 %v1133, 64
        %v2990 = vpop.permute.xlu0 %2989
        %v2994 = vsel %vm2453, %v2700, 0
        %v2997 = vsel %vm2453, %v2701, 0
        %2999 = vmatprep.subr.mxu0 0.0
        %3000 = vmatpush1.msra.mxu0 0.0
        %3001 = vmatprep.subr.mxu0 0.0
        %3002 = vmatpush1.msra.mxu0 0.0
        %3003 = vmatprep.subr.mxu0 0.0
        %3004 = vmatpush1.msra.mxu0 0.0
        %3005 = vmatprep.subr.mxu0 0.0
        %3006 = vmatpush1.msra.mxu0 0.0
        %3007 = vmatprep.subr.mxu0 0.0
        %3008 = vmatpush1.msra.mxu0 0.0
        %3009 = vmatprep.subr.mxu0 0.0
        %3010 = vmatpush1.msra.mxu0 0.0
        %3011 = vmatprep.subr.mxu0 0.0
        %3012 = vmatpush1.msra.mxu0 0.0
        %3013 = vmatprep.subr.mxu0 0.0
        %3014 = vmatpush1.msra.mxu0 0.0
        %3015 = vmatprep.subr.mxu0 0.0
        %3016 = vmatpush1.msra.mxu0 0.0
        %3017 = vmatprep.subr.mxu0 0.0
        %3018 = vmatpush1.msra.mxu0 0.0
        %3019 = vmatprep.subr.mxu0 0.0
        %3020 = vmatpush1.msra.mxu0 0.0
        %3021 = vmatprep.subr.mxu0 0.0
        %3022 = vmatpush1.msra.mxu0 0.0
        %3023 = vmatprep.subr.mxu0 0.0
        %3024 = vmatpush1.msra.mxu0 0.0
        %3025 = vmatprep.subr.mxu0 0.0
        %3026 = vmatpush1.msra.mxu0 0.0
        %3027 = vmatprep.subr.mxu0 0.0
        %3028 = vmatpush1.msra.mxu0 %v2990
        %3029 = vmatprep.subr.mxu0 0.0
        %3030 = vmatpush1.msra.mxu0 %v2988
        %3031 = vmatprep.subr.mxu0 0.0
        %3032 = vmatpush2.msra.mxu0 0.0
        %3033 = vmatprep.subr.mxu0 0.0
        %3034 = vmatpush2.msra.mxu0 0.0
        %3035 = vmatprep.subr.mxu0 0.0
        %3036 = vmatpush2.msra.mxu0 0.0
        %3037 = vmatprep.subr.mxu0 0.0
        %3038 = vmatpush2.msra.mxu0 0.0
        %3039 = vmatprep.subr.mxu0 0.0
        %3040 = vmatpush2.msra.mxu0 0.0
        %3041 = vmatprep.subr.mxu0 0.0
        %3042 = vmatpush2.msra.mxu0 0.0
        %3043 = vmatprep.subr.mxu0 0.0
        %3044 = vmatpush2.msra.mxu0 0.0
        %3045 = vmatprep.subr.mxu0 0.0
        %3046 = vmatpush2.msra.mxu0 0.0
        %3047 = vmatprep.subr.mxu0 0.0
        %3048 = vmatpush2.msra.mxu0 0.0
        %3049 = vmatprep.subr.mxu0 0.0
        %3050 = vmatpush2.msra.mxu0 0.0
        %3051 = vmatprep.subr.mxu0 0.0
        %3052 = vmatpush2.msra.mxu0 0.0
        %3053 = vmatprep.subr.mxu0 0.0
        %3054 = vmatpush2.msra.mxu0 0.0
        %3055 = vmatprep.subr.mxu0 0.0
        %3056 = vmatpush2.msra.mxu0 0.0
        %3057 = vmatprep.subr.mxu0 0.0
        %3058 = vmatpush2.msra.mxu0 0.0
        %3059 = vmatprep.subr.mxu0 0.0
        %3060 = vmatpush2.msra.mxu0 0.0
        %3061 = vmatprep.subr.mxu0 0.0
        %3062 = vmatpush2.msra.mxu0 0.0
        %3063 = vmatprep.mubr.f32.mxu0 0.0
        %3064 = vmatmul.mubr.f32.gmra.mxu0 %v2994
        %v3065 = vpop.f32.mrf.mxu0
        %v3066 = vadd.f32 0.0, %v3065
        %v3067 = vpop.f32.mrf.mxu0
        %3068 = vmatprep.mubr.f32.mxu0 0.0
        %3069 = vmatmul.mubr.f32.gmra.mxu0 %v2997
        %v3070 = vpop.f32.mrf.mxu0
        %v3071 = vadd.f32 0.0, %v3070
        %v3072 = vpop.f32.mrf.mxu0
        %3073 = vdwg.mxu0
        %3076 = vrot.lane.b32.xlu0 %v1138, 64
        %v3077 = vpop.permute.xlu0 %3076
        %3078 = vrot.lane.b32.xlu0 %v1143, 64
        %v3079 = vpop.permute.xlu0 %3078
        %v3083 = vsel %vm2453, %v2702, 0
        %v3086 = vsel %vm2453, %v2703, 0
        %3088 = vmatprep.subr.mxu0 0.0
        %3089 = vmatpush1.msra.mxu0 0.0
        %3090 = vmatprep.subr.mxu0 0.0
        %3091 = vmatpush1.msra.mxu0 0.0
        %3092 = vmatprep.subr.mxu0 0.0
        %3093 = vmatpush1.msra.mxu0 0.0
        %3094 = vmatprep.subr.mxu0 0.0
        %3095 = vmatpush1.msra.mxu0 0.0
        %3096 = vmatprep.subr.mxu0 0.0
        %3097 = vmatpush1.msra.mxu0 0.0
        %3098 = vmatprep.subr.mxu0 0.0
        %3099 = vmatpush1.msra.mxu0 0.0
        %3100 = vmatprep.subr.mxu0 0.0
        %3101 = vmatpush1.msra.mxu0 0.0
        %3102 = vmatprep.subr.mxu0 0.0
        %3103 = vmatpush1.msra.mxu0 0.0
        %3104 = vmatprep.subr.mxu0 0.0
        %3105 = vmatpush1.msra.mxu0 0.0
        %3106 = vmatprep.subr.mxu0 0.0
        %3107 = vmatpush1.msra.mxu0 0.0
        %3108 = vmatprep.subr.mxu0 0.0
        %3109 = vmatpush1.msra.mxu0 0.0
        %3110 = vmatprep.subr.mxu0 0.0
        %3111 = vmatpush1.msra.mxu0 0.0
        %3112 = vmatprep.subr.mxu0 0.0
        %3113 = vmatpush1.msra.mxu0 0.0
        %3114 = vmatprep.subr.mxu0 0.0
        %3115 = vmatpush1.msra.mxu0 0.0
        %3116 = vmatprep.subr.mxu0 0.0
        %3117 = vmatpush1.msra.mxu0 %v3079
        %3118 = vmatprep.subr.mxu0 0.0
        %3119 = vmatpush1.msra.mxu0 %v3077
        %3120 = vmatprep.subr.mxu0 0.0
        %3121 = vmatpush2.msra.mxu0 0.0
        %3122 = vmatprep.subr.mxu0 0.0
        %3123 = vmatpush2.msra.mxu0 0.0
        %3124 = vmatprep.subr.mxu0 0.0
        %3125 = vmatpush2.msra.mxu0 0.0
        %3126 = vmatprep.subr.mxu0 0.0
        %3127 = vmatpush2.msra.mxu0 0.0
        %3128 = vmatprep.subr.mxu0 0.0
        %3129 = vmatpush2.msra.mxu0 0.0
        %3130 = vmatprep.subr.mxu0 0.0
        %3131 = vmatpush2.msra.mxu0 0.0
        %3132 = vmatprep.subr.mxu0 0.0
        %3133 = vmatpush2.msra.mxu0 0.0
        %3134 = vmatprep.subr.mxu0 0.0
        %3135 = vmatpush2.msra.mxu0 0.0
        %3136 = vmatprep.subr.mxu0 0.0
        %3137 = vmatpush2.msra.mxu0 0.0
        %3138 = vmatprep.subr.mxu0 0.0
        %3139 = vmatpush2.msra.mxu0 0.0
        %3140 = vmatprep.subr.mxu0 0.0
        %3141 = vmatpush2.msra.mxu0 0.0
        %3142 = vmatprep.subr.mxu0 0.0
        %3143 = vmatpush2.msra.mxu0 0.0
        %3144 = vmatprep.subr.mxu0 0.0
        %3145 = vmatpush2.msra.mxu0 0.0
        %3146 = vmatprep.subr.mxu0 0.0
        %3147 = vmatpush2.msra.mxu0 0.0
        %3148 = vmatprep.subr.mxu0 0.0
        %3149 = vmatpush2.msra.mxu0 0.0
        %3150 = vmatprep.subr.mxu0 0.0
        %3151 = vmatpush2.msra.mxu0 0.0
        %3152 = vmatprep.mubr.f32.mxu0 0.0
        %3153 = vmatmul.mubr.f32.gmra.mxu0 %v3083
        %v3154 = vpop.f32.mrf.mxu0
        %v3155 = vadd.f32 0.0, %v3154
        %v3156 = vpop.f32.mrf.mxu0
        %3157 = vmatprep.mubr.f32.mxu0 0.0
        %3158 = vmatmul.mubr.f32.gmra.mxu0 %v3086
        %v3159 = vpop.f32.mrf.mxu0
        %v3160 = vadd.f32 0.0, %v3159
        %v3161 = vpop.f32.mrf.mxu0
        %3162 = vdwg.mxu0
        %3165 = vrot.lane.b32.xlu0 %v1148, 64
        %v3166 = vpop.permute.xlu0 %3165
        %3167 = vrot.lane.b32.xlu0 %v1153, 64
        %v3168 = vpop.permute.xlu0 %3167
        %v3172 = vsel %vm2453, %v2704, 0
        %v3175 = vsel %vm2453, %v2705, 0
        %3177 = vmatprep.subr.mxu0 0.0
        %3178 = vmatpush1.msra.mxu0 0.0
        %3179 = vmatprep.subr.mxu0 0.0
        %3180 = vmatpush1.msra.mxu0 0.0
        %3181 = vmatprep.subr.mxu0 0.0
        %3182 = vmatpush1.msra.mxu0 0.0
        %3183 = vmatprep.subr.mxu0 0.0
        %3184 = vmatpush1.msra.mxu0 0.0
        %3185 = vmatprep.subr.mxu0 0.0
        %3186 = vmatpush1.msra.mxu0 0.0
        %3187 = vmatprep.subr.mxu0 0.0
        %3188 = vmatpush1.msra.mxu0 0.0
        %3189 = vmatprep.subr.mxu0 0.0
        %3190 = vmatpush1.msra.mxu0 0.0
        %3191 = vmatprep.subr.mxu0 0.0
        %3192 = vmatpush1.msra.mxu0 0.0
        %3193 = vmatprep.subr.mxu0 0.0
        %3194 = vmatpush1.msra.mxu0 0.0
        %3195 = vmatprep.subr.mxu0 0.0
        %3196 = vmatpush1.msra.mxu0 0.0
        %3197 = vmatprep.subr.mxu0 0.0
        %3198 = vmatpush1.msra.mxu0 0.0
        %3199 = vmatprep.subr.mxu0 0.0
        %3200 = vmatpush1.msra.mxu0 0.0
        %3201 = vmatprep.subr.mxu0 0.0
        %3202 = vmatpush1.msra.mxu0 0.0
        %3203 = vmatprep.subr.mxu0 0.0
        %3204 = vmatpush1.msra.mxu0 0.0
        %3205 = vmatprep.subr.mxu0 0.0
        %3206 = vmatpush1.msra.mxu0 %v3168
        %3207 = vmatprep.subr.mxu0 0.0
        %3208 = vmatpush1.msra.mxu0 %v3166
        %3209 = vmatprep.subr.mxu0 0.0
        %3210 = vmatpush2.msra.mxu0 0.0
        %3211 = vmatprep.subr.mxu0 0.0
        %3212 = vmatpush2.msra.mxu0 0.0
        %3213 = vmatprep.subr.mxu0 0.0
        %3214 = vmatpush2.msra.mxu0 0.0
        %3215 = vmatprep.subr.mxu0 0.0
        %3216 = vmatpush2.msra.mxu0 0.0
        %3217 = vmatprep.subr.mxu0 0.0
        %3218 = vmatpush2.msra.mxu0 0.0
        %3219 = vmatprep.subr.mxu0 0.0
        %3220 = vmatpush2.msra.mxu0 0.0
        %3221 = vmatprep.subr.mxu0 0.0
        %3222 = vmatpush2.msra.mxu0 0.0
        %3223 = vmatprep.subr.mxu0 0.0
        %3224 = vmatpush2.msra.mxu0 0.0
        %3225 = vmatprep.subr.mxu0 0.0
        %3226 = vmatpush2.msra.mxu0 0.0
        %3227 = vmatprep.subr.mxu0 0.0
        %3228 = vmatpush2.msra.mxu0 0.0
        %3229 = vmatprep.subr.mxu0 0.0
        %3230 = vmatpush2.msra.mxu0 0.0
        %3231 = vmatprep.subr.mxu0 0.0
        %3232 = vmatpush2.msra.mxu0 0.0
        %3233 = vmatprep.subr.mxu0 0.0
        %3234 = vmatpush2.msra.mxu0 0.0
        %3235 = vmatprep.subr.mxu0 0.0
        %3236 = vmatpush2.msra.mxu0 0.0
        %3237 = vmatprep.subr.mxu0 0.0
        %3238 = vmatpush2.msra.mxu0 0.0
        %3239 = vmatprep.subr.mxu0 0.0
        %3240 = vmatpush2.msra.mxu0 0.0
        %3241 = vmatprep.mubr.f32.mxu0 0.0
        %3242 = vmatmul.mubr.f32.gmra.mxu0 %v3172
        %v3243 = vpop.f32.mrf.mxu0
        %v3244 = vadd.f32 0.0, %v3243
        %v3245 = vpop.f32.mrf.mxu0
        %3246 = vmatprep.mubr.f32.mxu0 0.0
        %3247 = vmatmul.mubr.f32.gmra.mxu0 %v3175
        %v3248 = vpop.f32.mrf.mxu0
        %v3249 = vadd.f32 0.0, %v3248
        %v3250 = vpop.f32.mrf.mxu0
        %3251 = vdwg.mxu0
        %3254 = vrot.lane.b32.xlu0 %v1158, 64
        %v3255 = vpop.permute.xlu0 %3254
        %3256 = vrot.lane.b32.xlu0 %v1163, 64
        %v3257 = vpop.permute.xlu0 %3256
        %v3261 = vsel %vm2453, %v2706, 0
        %v3264 = vsel %vm2453, %v2707, 0
        %3266 = vmatprep.subr.mxu0 0.0
        %3267 = vmatpush1.msra.mxu0 0.0
        %3268 = vmatprep.subr.mxu0 0.0
        %3269 = vmatpush1.msra.mxu0 0.0
        %3270 = vmatprep.subr.mxu0 0.0
        %3271 = vmatpush1.msra.mxu0 0.0
        %3272 = vmatprep.subr.mxu0 0.0
        %3273 = vmatpush1.msra.mxu0 0.0
        %3274 = vmatprep.subr.mxu0 0.0
        %3275 = vmatpush1.msra.mxu0 0.0
        %3276 = vmatprep.subr.mxu0 0.0
        %3277 = vmatpush1.msra.mxu0 0.0
        %3278 = vmatprep.subr.mxu0 0.0
        %3279 = vmatpush1.msra.mxu0 0.0
        %3280 = vmatprep.subr.mxu0 0.0
        %3281 = vmatpush1.msra.mxu0 0.0
        %3282 = vmatprep.subr.mxu0 0.0
        %3283 = vmatpush1.msra.mxu0 0.0
        %3284 = vmatprep.subr.mxu0 0.0
        %3285 = vmatpush1.msra.mxu0 0.0
        %3286 = vmatprep.subr.mxu0 0.0
        %3287 = vmatpush1.msra.mxu0 0.0
        %3288 = vmatprep.subr.mxu0 0.0
        %3289 = vmatpush1.msra.mxu0 0.0
        %3290 = vmatprep.subr.mxu0 0.0
        %3291 = vmatpush1.msra.mxu0 0.0
        %3292 = vmatprep.subr.mxu0 0.0
        %3293 = vmatpush1.msra.mxu0 0.0
        %3294 = vmatprep.subr.mxu0 0.0
        %3295 = vmatpush1.msra.mxu0 %v3257
        %3296 = vmatprep.subr.mxu0 0.0
        %3297 = vmatpush1.msra.mxu0 %v3255
        %3298 = vmatprep.subr.mxu0 0.0
        %3299 = vmatpush2.msra.mxu0 0.0
        %3300 = vmatprep.subr.mxu0 0.0
        %3301 = vmatpush2.msra.mxu0 0.0
        %3302 = vmatprep.subr.mxu0 0.0
        %3303 = vmatpush2.msra.mxu0 0.0
        %3304 = vmatprep.subr.mxu0 0.0
        %3305 = vmatpush2.msra.mxu0 0.0
        %3306 = vmatprep.subr.mxu0 0.0
        %3307 = vmatpush2.msra.mxu0 0.0
        %3308 = vmatprep.subr.mxu0 0.0
        %3309 = vmatpush2.msra.mxu0 0.0
        %3310 = vmatprep.subr.mxu0 0.0
        %3311 = vmatpush2.msra.mxu0 0.0
        %3312 = vmatprep.subr.mxu0 0.0
        %3313 = vmatpush2.msra.mxu0 0.0
        %3314 = vmatprep.subr.mxu0 0.0
        %3315 = vmatpush2.msra.mxu0 0.0
        %3316 = vmatprep.subr.mxu0 0.0
        %3317 = vmatpush2.msra.mxu0 0.0
        %3318 = vmatprep.subr.mxu0 0.0
        %3319 = vmatpush2.msra.mxu0 0.0
        %3320 = vmatprep.subr.mxu0 0.0
        %3321 = vmatpush2.msra.mxu0 0.0
        %3322 = vmatprep.subr.mxu0 0.0
        %3323 = vmatpush2.msra.mxu0 0.0
        %3324 = vmatprep.subr.mxu0 0.0
        %3325 = vmatpush2.msra.mxu0 0.0
        %3326 = vmatprep.subr.mxu0 0.0
        %3327 = vmatpush2.msra.mxu0 0.0
        %3328 = vmatprep.subr.mxu0 0.0
        %3329 = vmatpush2.msra.mxu0 0.0
        %3330 = vmatprep.mubr.f32.mxu0 0.0
        %3331 = vmatmul.mubr.f32.gmra.mxu0 %v3261
        %v3332 = vpop.f32.mrf.mxu0
        %v3333 = vadd.f32 0.0, %v3332
        %v3334 = vpop.f32.mrf.mxu0
        %3335 = vmatprep.mubr.f32.mxu0 0.0
        %3336 = vmatmul.mubr.f32.gmra.mxu0 %v3264
        %v3337 = vpop.f32.mrf.mxu0
        %v3338 = vadd.f32 0.0, %v3337
        %v3339 = vpop.f32.mrf.mxu0
        %3340 = vdwg.mxu0
        %3343 = vrot.lane.b32.xlu0 %v1168, 64
        %v3344 = vpop.permute.xlu0 %3343
        %3345 = vrot.lane.b32.xlu0 %v1173, 64
        %v3346 = vpop.permute.xlu0 %3345
        %v3350 = vsel %vm2453, %v2708, 0
        %v3353 = vsel %vm2453, %v2709, 0
        %3355 = vmatprep.subr.mxu0 0.0
        %3356 = vmatpush1.msra.mxu0 0.0
        %3357 = vmatprep.subr.mxu0 0.0
        %3358 = vmatpush1.msra.mxu0 0.0
        %3359 = vmatprep.subr.mxu0 0.0
        %3360 = vmatpush1.msra.mxu0 0.0
        %3361 = vmatprep.subr.mxu0 0.0
        %3362 = vmatpush1.msra.mxu0 0.0
        %3363 = vmatprep.subr.mxu0 0.0
        %3364 = vmatpush1.msra.mxu0 0.0
        %3365 = vmatprep.subr.mxu0 0.0
        %3366 = vmatpush1.msra.mxu0 0.0
        %3367 = vmatprep.subr.mxu0 0.0
        %3368 = vmatpush1.msra.mxu0 0.0
        %3369 = vmatprep.subr.mxu0 0.0
        %3370 = vmatpush1.msra.mxu0 0.0
        %3371 = vmatprep.subr.mxu0 0.0
        %3372 = vmatpush1.msra.mxu0 0.0
        %3373 = vmatprep.subr.mxu0 0.0
        %3374 = vmatpush1.msra.mxu0 0.0
        %3375 = vmatprep.subr.mxu0 0.0
        %3376 = vmatpush1.msra.mxu0 0.0
        %3377 = vmatprep.subr.mxu0 0.0
        %3378 = vmatpush1.msra.mxu0 0.0
        %3379 = vmatprep.subr.mxu0 0.0
        %3380 = vmatpush1.msra.mxu0 0.0
        %3381 = vmatprep.subr.mxu0 0.0
        %3382 = vmatpush1.msra.mxu0 0.0
        %3383 = vmatprep.subr.mxu0 0.0
        %3384 = vmatpush1.msra.mxu0 %v3346
        %3385 = vmatprep.subr.mxu0 0.0
        %3386 = vmatpush1.msra.mxu0 %v3344
        %3387 = vmatprep.subr.mxu0 0.0
        %3388 = vmatpush2.msra.mxu0 0.0
        %3389 = vmatprep.subr.mxu0 0.0
        %3390 = vmatpush2.msra.mxu0 0.0
        %3391 = vmatprep.subr.mxu0 0.0
        %3392 = vmatpush2.msra.mxu0 0.0
        %3393 = vmatprep.subr.mxu0 0.0
        %3394 = vmatpush2.msra.mxu0 0.0
        %3395 = vmatprep.subr.mxu0 0.0
        %3396 = vmatpush2.msra.mxu0 0.0
        %3397 = vmatprep.subr.mxu0 0.0
        %3398 = vmatpush2.msra.mxu0 0.0
        %3399 = vmatprep.subr.mxu0 0.0
        %3400 = vmatpush2.msra.mxu0 0.0
        %3401 = vmatprep.subr.mxu0 0.0
        %3402 = vmatpush2.msra.mxu0 0.0
        %3403 = vmatprep.subr.mxu0 0.0
        %3404 = vmatpush2.msra.mxu0 0.0
        %3405 = vmatprep.subr.mxu0 0.0
        %3406 = vmatpush2.msra.mxu0 0.0
        %3407 = vmatprep.subr.mxu0 0.0
        %3408 = vmatpush2.msra.mxu0 0.0
        %3409 = vmatprep.subr.mxu0 0.0
        %3410 = vmatpush2.msra.mxu0 0.0
        %3411 = vmatprep.subr.mxu0 0.0
        %3412 = vmatpush2.msra.mxu0 0.0
        %3413 = vmatprep.subr.mxu0 0.0
        %3414 = vmatpush2.msra.mxu0 0.0
        %3415 = vmatprep.subr.mxu0 0.0
        %3416 = vmatpush2.msra.mxu0 0.0
        %3417 = vmatprep.subr.mxu0 0.0
        %3418 = vmatpush2.msra.mxu0 0.0
        %3419 = vmatprep.mubr.f32.mxu0 0.0
        %3420 = vmatmul.mubr.f32.gmra.mxu0 %v3350
        %v3421 = vpop.f32.mrf.mxu0
        %v3422 = vadd.f32 0.0, %v3421
        %v3423 = vpop.f32.mrf.mxu0
        %3424 = vmatprep.mubr.f32.mxu0 0.0
        %3425 = vmatmul.mubr.f32.gmra.mxu0 %v3353
        %v3426 = vpop.f32.mrf.mxu0
        %v3427 = vadd.f32 0.0, %v3426
        %v3428 = vpop.f32.mrf.mxu0
        %3429 = vdwg.mxu0
        %3432 = vrot.lane.b32.xlu0 %v1178, 64
        %v3433 = vpop.permute.xlu0 %3432
        %3434 = vrot.lane.b32.xlu0 %v1183, 64
        %v3435 = vpop.permute.xlu0 %3434
        %v3439 = vsel %vm2453, %v2710, 0
        %v3442 = vsel %vm2453, %v2711, 0
        %3444 = vmatprep.subr.mxu0 0.0
        %3445 = vmatpush1.msra.mxu0 0.0
        %3446 = vmatprep.subr.mxu0 0.0
        %3447 = vmatpush1.msra.mxu0 0.0
        %3448 = vmatprep.subr.mxu0 0.0
        %3449 = vmatpush1.msra.mxu0 0.0
        %3450 = vmatprep.subr.mxu0 0.0
        %3451 = vmatpush1.msra.mxu0 0.0
        %3452 = vmatprep.subr.mxu0 0.0
        %3453 = vmatpush1.msra.mxu0 0.0
        %3454 = vmatprep.subr.mxu0 0.0
        %3455 = vmatpush1.msra.mxu0 0.0
        %3456 = vmatprep.subr.mxu0 0.0
        %3457 = vmatpush1.msra.mxu0 0.0
        %3458 = vmatprep.subr.mxu0 0.0
        %3459 = vmatpush1.msra.mxu0 0.0
        %3460 = vmatprep.subr.mxu0 0.0
        %3461 = vmatpush1.msra.mxu0 0.0
        %3462 = vmatprep.subr.mxu0 0.0
        %3463 = vmatpush1.msra.mxu0 0.0
        %3464 = vmatprep.subr.mxu0 0.0
        %3465 = vmatpush1.msra.mxu0 0.0
        %3466 = vmatprep.subr.mxu0 0.0
        %3467 = vmatpush1.msra.mxu0 0.0
        %3468 = vmatprep.subr.mxu0 0.0
        %3469 = vmatpush1.msra.mxu0 0.0
        %3470 = vmatprep.subr.mxu0 0.0
        %3471 = vmatpush1.msra.mxu0 0.0
        %3472 = vmatprep.subr.mxu0 0.0
        %3473 = vmatpush1.msra.mxu0 %v3435
        %3474 = vmatprep.subr.mxu0 0.0
        %3475 = vmatpush1.msra.mxu0 %v3433
        %3476 = vmatprep.subr.mxu0 0.0
        %3477 = vmatpush2.msra.mxu0 0.0
        %3478 = vmatprep.subr.mxu0 0.0
        %3479 = vmatpush2.msra.mxu0 0.0
        %3480 = vmatprep.subr.mxu0 0.0
        %3481 = vmatpush2.msra.mxu0 0.0
        %3482 = vmatprep.subr.mxu0 0.0
        %3483 = vmatpush2.msra.mxu0 0.0
        %3484 = vmatprep.subr.mxu0 0.0
        %3485 = vmatpush2.msra.mxu0 0.0
        %3486 = vmatprep.subr.mxu0 0.0
        %3487 = vmatpush2.msra.mxu0 0.0
        %3488 = vmatprep.subr.mxu0 0.0
        %3489 = vmatpush2.msra.mxu0 0.0
        %3490 = vmatprep.subr.mxu0 0.0
        %3491 = vmatpush2.msra.mxu0 0.0
        %3492 = vmatprep.subr.mxu0 0.0
        %3493 = vmatpush2.msra.mxu0 0.0
        %3494 = vmatprep.subr.mxu0 0.0
        %3495 = vmatpush2.msra.mxu0 0.0
        %3496 = vmatprep.subr.mxu0 0.0
        %3497 = vmatpush2.msra.mxu0 0.0
        %3498 = vmatprep.subr.mxu0 0.0
        %3499 = vmatpush2.msra.mxu0 0.0
        %3500 = vmatprep.subr.mxu0 0.0
        %3501 = vmatpush2.msra.mxu0 0.0
        %3502 = vmatprep.subr.mxu0 0.0
        %3503 = vmatpush2.msra.mxu0 0.0
        %3504 = vmatprep.subr.mxu0 0.0
        %3505 = vmatpush2.msra.mxu0 0.0
        %3506 = vmatprep.subr.mxu0 0.0
        %3507 = vmatpush2.msra.mxu0 0.0
        %3508 = vmatprep.mubr.f32.mxu0 0.0
        %3509 = vmatmul.mubr.f32.gmra.mxu0 %v3439
        %v3510 = vpop.f32.mrf.mxu0
        %v3511 = vadd.f32 0.0, %v3510
        %v3512 = vpop.f32.mrf.mxu0
        %3513 = vmatprep.mubr.f32.mxu0 0.0
        %3514 = vmatmul.mubr.f32.gmra.mxu0 %v3442
        %v3515 = vpop.f32.mrf.mxu0
        %v3516 = vadd.f32 0.0, %v3515
        %v3517 = vpop.f32.mrf.mxu0
        %3518 = vdwg.mxu0
        %3521 = vrot.lane.b32.xlu0 %v1188, 64
        %v3522 = vpop.permute.xlu0 %3521
        %3523 = vrot.lane.b32.xlu0 %v1193, 64
        %v3524 = vpop.permute.xlu0 %3523
        %v3528 = vsel %vm2453, %v2712, 0
        %v3531 = vsel %vm2453, %v2713, 0
        %3533 = vmatprep.subr.mxu0 0.0
        %3534 = vmatpush1.msra.mxu0 0.0
        %3535 = vmatprep.subr.mxu0 0.0
        %3536 = vmatpush1.msra.mxu0 0.0
        %3537 = vmatprep.subr.mxu0 0.0
        %3538 = vmatpush1.msra.mxu0 0.0
        %3539 = vmatprep.subr.mxu0 0.0
        %3540 = vmatpush1.msra.mxu0 0.0
        %3541 = vmatprep.subr.mxu0 0.0
        %3542 = vmatpush1.msra.mxu0 0.0
        %3543 = vmatprep.subr.mxu0 0.0
        %3544 = vmatpush1.msra.mxu0 0.0
        %3545 = vmatprep.subr.mxu0 0.0
        %3546 = vmatpush1.msra.mxu0 0.0
        %3547 = vmatprep.subr.mxu0 0.0
        %3548 = vmatpush1.msra.mxu0 0.0
        %3549 = vmatprep.subr.mxu0 0.0
        %3550 = vmatpush1.msra.mxu0 0.0
        %3551 = vmatprep.subr.mxu0 0.0
        %3552 = vmatpush1.msra.mxu0 0.0
        %3553 = vmatprep.subr.mxu0 0.0
        %3554 = vmatpush1.msra.mxu0 0.0
        %3555 = vmatprep.subr.mxu0 0.0
        %3556 = vmatpush1.msra.mxu0 0.0
        %3557 = vmatprep.subr.mxu0 0.0
        %3558 = vmatpush1.msra.mxu0 0.0
        %3559 = vmatprep.subr.mxu0 0.0
        %3560 = vmatpush1.msra.mxu0 0.0
        %3561 = vmatprep.subr.mxu0 0.0
        %3562 = vmatpush1.msra.mxu0 %v3524
        %3563 = vmatprep.subr.mxu0 0.0
        %3564 = vmatpush1.msra.mxu0 %v3522
        %3565 = vmatprep.subr.mxu0 0.0
        %3566 = vmatpush2.msra.mxu0 0.0
        %3567 = vmatprep.subr.mxu0 0.0
        %3568 = vmatpush2.msra.mxu0 0.0
        %3569 = vmatprep.subr.mxu0 0.0
        %3570 = vmatpush2.msra.mxu0 0.0
        %3571 = vmatprep.subr.mxu0 0.0
        %3572 = vmatpush2.msra.mxu0 0.0
        %3573 = vmatprep.subr.mxu0 0.0
        %3574 = vmatpush2.msra.mxu0 0.0
        %3575 = vmatprep.subr.mxu0 0.0
        %3576 = vmatpush2.msra.mxu0 0.0
        %3577 = vmatprep.subr.mxu0 0.0
        %3578 = vmatpush2.msra.mxu0 0.0
        %3579 = vmatprep.subr.mxu0 0.0
        %3580 = vmatpush2.msra.mxu0 0.0
        %3581 = vmatprep.subr.mxu0 0.0
        %3582 = vmatpush2.msra.mxu0 0.0
        %3583 = vmatprep.subr.mxu0 0.0
        %3584 = vmatpush2.msra.mxu0 0.0
        %3585 = vmatprep.subr.mxu0 0.0
        %3586 = vmatpush2.msra.mxu0 0.0
        %3587 = vmatprep.subr.mxu0 0.0
        %3588 = vmatpush2.msra.mxu0 0.0
        %3589 = vmatprep.subr.mxu0 0.0
        %3590 = vmatpush2.msra.mxu0 0.0
        %3591 = vmatprep.subr.mxu0 0.0
        %3592 = vmatpush2.msra.mxu0 0.0
        %3593 = vmatprep.subr.mxu0 0.0
        %3594 = vmatpush2.msra.mxu0 0.0
        %3595 = vmatprep.subr.mxu0 0.0
        %3596 = vmatpush2.msra.mxu0 0.0
        %3597 = vmatprep.mubr.f32.mxu0 0.0
        %3598 = vmatmul.mubr.f32.gmra.mxu0 %v3528
        %v3599 = vpop.f32.mrf.mxu0
        %v3600 = vadd.f32 0.0, %v3599
        %v3601 = vpop.f32.mrf.mxu0
        %3602 = vmatprep.mubr.f32.mxu0 0.0
        %3603 = vmatmul.mubr.f32.gmra.mxu0 %v3531
        %v3604 = vpop.f32.mrf.mxu0
        %v3605 = vadd.f32 0.0, %v3604
        %v3606 = vpop.f32.mrf.mxu0
        %3607 = vdwg.mxu0
        %3610 = vrot.lane.b32.xlu0 %v1198, 64
        %v3611 = vpop.permute.xlu0 %3610
        %3612 = vrot.lane.b32.xlu0 %v1203, 64
        %v3613 = vpop.permute.xlu0 %3612
        %v3617 = vsel %vm2453, %v2714, 0
        %v3620 = vsel %vm2453, %v2715, 0
        %3622 = vmatprep.subr.mxu0 0.0
        %3623 = vmatpush1.msra.mxu0 0.0
        %3624 = vmatprep.subr.mxu0 0.0
        %3625 = vmatpush1.msra.mxu0 0.0
        %3626 = vmatprep.subr.mxu0 0.0
        %3627 = vmatpush1.msra.mxu0 0.0
        %3628 = vmatprep.subr.mxu0 0.0
        %3629 = vmatpush1.msra.mxu0 0.0
        %3630 = vmatprep.subr.mxu0 0.0
        %3631 = vmatpush1.msra.mxu0 0.0
        %3632 = vmatprep.subr.mxu0 0.0
        %3633 = vmatpush1.msra.mxu0 0.0
        %3634 = vmatprep.subr.mxu0 0.0
        %3635 = vmatpush1.msra.mxu0 0.0
        %3636 = vmatprep.subr.mxu0 0.0
        %3637 = vmatpush1.msra.mxu0 0.0
        %3638 = vmatprep.subr.mxu0 0.0
        %3639 = vmatpush1.msra.mxu0 0.0
        %3640 = vmatprep.subr.mxu0 0.0
        %3641 = vmatpush1.msra.mxu0 0.0
        %3642 = vmatprep.subr.mxu0 0.0
        %3643 = vmatpush1.msra.mxu0 0.0
        %3644 = vmatprep.subr.mxu0 0.0
        %3645 = vmatpush1.msra.mxu0 0.0
        %3646 = vmatprep.subr.mxu0 0.0
        %3647 = vmatpush1.msra.mxu0 0.0
        %3648 = vmatprep.subr.mxu0 0.0
        %3649 = vmatpush1.msra.mxu0 0.0
        %3650 = vmatprep.subr.mxu0 0.0
        %3651 = vmatpush1.msra.mxu0 %v3613
        %3652 = vmatprep.subr.mxu0 0.0
        %3653 = vmatpush1.msra.mxu0 %v3611
        %3654 = vmatprep.subr.mxu0 0.0
        %3655 = vmatpush2.msra.mxu0 0.0
        %3656 = vmatprep.subr.mxu0 0.0
        %3657 = vmatpush2.msra.mxu0 0.0
        %3658 = vmatprep.subr.mxu0 0.0
        %3659 = vmatpush2.msra.mxu0 0.0
        %3660 = vmatprep.subr.mxu0 0.0
        %3661 = vmatpush2.msra.mxu0 0.0
        %3662 = vmatprep.subr.mxu0 0.0
        %3663 = vmatpush2.msra.mxu0 0.0
        %3664 = vmatprep.subr.mxu0 0.0
        %3665 = vmatpush2.msra.mxu0 0.0
        %3666 = vmatprep.subr.mxu0 0.0
        %3667 = vmatpush2.msra.mxu0 0.0
        %3668 = vmatprep.subr.mxu0 0.0
        %3669 = vmatpush2.msra.mxu0 0.0
        %3670 = vmatprep.subr.mxu0 0.0
        %3671 = vmatpush2.msra.mxu0 0.0
        %3672 = vmatprep.subr.mxu0 0.0
        %3673 = vmatpush2.msra.mxu0 0.0
        %3674 = vmatprep.subr.mxu0 0.0
        %3675 = vmatpush2.msra.mxu0 0.0
        %3676 = vmatprep.subr.mxu0 0.0
        %3677 = vmatpush2.msra.mxu0 0.0
        %3678 = vmatprep.subr.mxu0 0.0
        %3679 = vmatpush2.msra.mxu0 0.0
        %3680 = vmatprep.subr.mxu0 0.0
        %3681 = vmatpush2.msra.mxu0 0.0
        %3682 = vmatprep.subr.mxu0 0.0
        %3683 = vmatpush2.msra.mxu0 0.0
        %3684 = vmatprep.subr.mxu0 0.0
        %3685 = vmatpush2.msra.mxu0 0.0
        %3686 = vmatprep.mubr.f32.mxu0 0.0
        %3687 = vmatmul.mubr.f32.gmra.mxu0 %v3617
        %v3688 = vpop.f32.mrf.mxu0
        %v3689 = vadd.f32 0.0, %v3688
        %v3690 = vpop.f32.mrf.mxu0
        %3691 = vmatprep.mubr.f32.mxu0 0.0
        %3692 = vmatmul.mubr.f32.gmra.mxu0 %v3620
        %v3693 = vpop.f32.mrf.mxu0
        %v3694 = vadd.f32 0.0, %v3693
        %v3695 = vpop.f32.mrf.mxu0
        %3696 = vdwg.mxu0
        %3699 = vrot.lane.b32.xlu0 %v1208, 64
        %v3700 = vpop.permute.xlu0 %3699
        %3701 = vrot.lane.b32.xlu0 %v1213, 64
        %v3702 = vpop.permute.xlu0 %3701
        %v3706 = vsel %vm2453, %v2716, 0
        %v3709 = vsel %vm2453, %v2717, 0
        %3711 = vmatprep.subr.mxu0 0.0
        %3712 = vmatpush1.msra.mxu0 0.0
        %3713 = vmatprep.subr.mxu0 0.0
        %3714 = vmatpush1.msra.mxu0 0.0
        %3715 = vmatprep.subr.mxu0 0.0
        %3716 = vmatpush1.msra.mxu0 0.0
        %3717 = vmatprep.subr.mxu0 0.0
        %3718 = vmatpush1.msra.mxu0 0.0
        %3719 = vmatprep.subr.mxu0 0.0
        %3720 = vmatpush1.msra.mxu0 0.0
        %3721 = vmatprep.subr.mxu0 0.0
        %3722 = vmatpush1.msra.mxu0 0.0
        %3723 = vmatprep.subr.mxu0 0.0
        %3724 = vmatpush1.msra.mxu0 0.0
        %3725 = vmatprep.subr.mxu0 0.0
        %3726 = vmatpush1.msra.mxu0 0.0
        %3727 = vmatprep.subr.mxu0 0.0
        %3728 = vmatpush1.msra.mxu0 0.0
        %3729 = vmatprep.subr.mxu0 0.0
        %3730 = vmatpush1.msra.mxu0 0.0
        %3731 = vmatprep.subr.mxu0 0.0
        %3732 = vmatpush1.msra.mxu0 0.0
        %3733 = vmatprep.subr.mxu0 0.0
        %3734 = vmatpush1.msra.mxu0 0.0
        %3735 = vmatprep.subr.mxu0 0.0
        %3736 = vmatpush1.msra.mxu0 0.0
        %3737 = vmatprep.subr.mxu0 0.0
        %3738 = vmatpush1.msra.mxu0 0.0
        %3739 = vmatprep.subr.mxu0 0.0
        %3740 = vmatpush1.msra.mxu0 %v3702
        %3741 = vmatprep.subr.mxu0 0.0
        %3742 = vmatpush1.msra.mxu0 %v3700
        %3743 = vmatprep.subr.mxu0 0.0
        %3744 = vmatpush2.msra.mxu0 0.0
        %3745 = vmatprep.subr.mxu0 0.0
        %3746 = vmatpush2.msra.mxu0 0.0
        %3747 = vmatprep.subr.mxu0 0.0
        %3748 = vmatpush2.msra.mxu0 0.0
        %3749 = vmatprep.subr.mxu0 0.0
        %3750 = vmatpush2.msra.mxu0 0.0
        %3751 = vmatprep.subr.mxu0 0.0
        %3752 = vmatpush2.msra.mxu0 0.0
        %3753 = vmatprep.subr.mxu0 0.0
        %3754 = vmatpush2.msra.mxu0 0.0
        %3755 = vmatprep.subr.mxu0 0.0
        %3756 = vmatpush2.msra.mxu0 0.0
        %3757 = vmatprep.subr.mxu0 0.0
        %3758 = vmatpush2.msra.mxu0 0.0
        %3759 = vmatprep.subr.mxu0 0.0
        %3760 = vmatpush2.msra.mxu0 0.0
        %3761 = vmatprep.subr.mxu0 0.0
        %3762 = vmatpush2.msra.mxu0 0.0
        %3763 = vmatprep.subr.mxu0 0.0
        %3764 = vmatpush2.msra.mxu0 0.0
        %3765 = vmatprep.subr.mxu0 0.0
        %3766 = vmatpush2.msra.mxu0 0.0
        %3767 = vmatprep.subr.mxu0 0.0
        %3768 = vmatpush2.msra.mxu0 0.0
        %3769 = vmatprep.subr.mxu0 0.0
        %3770 = vmatpush2.msra.mxu0 0.0
        %3771 = vmatprep.subr.mxu0 0.0
        %3772 = vmatpush2.msra.mxu0 0.0
        %3773 = vmatprep.subr.mxu0 0.0
        %3774 = vmatpush2.msra.mxu0 0.0
        %3775 = vmatprep.mubr.f32.mxu0 0.0
        %3776 = vmatmul.mubr.f32.gmra.mxu0 %v3706
        %v3777 = vpop.f32.mrf.mxu0
        %v3778 = vadd.f32 0.0, %v3777
        %v3779 = vpop.f32.mrf.mxu0
        %3780 = vmatprep.mubr.f32.mxu0 0.0
        %3781 = vmatmul.mubr.f32.gmra.mxu0 %v3709
        %v3782 = vpop.f32.mrf.mxu0
        %v3783 = vadd.f32 0.0, %v3782
        %v3784 = vpop.f32.mrf.mxu0
        %3785 = vdwg.mxu0
        %v3786 = vld [vmem:[%s6] sm:$0xff]
        %v3787 = vld [vmem:[%s6 + $0x8] sm:$0xff]
        %v3788 = vld [vmem:[%s6 + $0x10] sm:$0xff]
        %v3789 = vld [vmem:[%s6 + $0x18] sm:$0xff]
        %v3790 = vld [vmem:[%s7] sm:$0x1]
        %v3792 = vlaneseq
        %v3793 = vshrl.u32 %v3792, 7
        %v3794 = vsub.s32 0, %v3793
        %v3795 = vrot.slane %v3790, %v3794
        %v3798 = vsel %vm1222, %v2799, 0
        %v3801 = vsel %vm1222, %v2804, 0
        %v3804 = vsel %vm1222, %v2888, 0
        %v3807 = vsel %vm1222, %v2893, 0
        %v3810 = vsel %vm1222, %v2977, 0
        %v3813 = vsel %vm1222, %v2982, 0
        %v3816 = vsel %vm1222, %v3066, 0
        %v3819 = vsel %vm1222, %v3071, 0
        %v3822 = vsel %vm1222, %v3155, 0
        %v3825 = vsel %vm1222, %v3160, 0
        %v3828 = vsel %vm1222, %v3244, 0
        %v3831 = vsel %vm1222, %v3249, 0
        %v3834 = vsel %vm1222, %v3333, 0
        %v3837 = vsel %vm1222, %v3338, 0
        %v3840 = vsel %vm1222, %v3422, 0
        %v3843 = vsel %vm1222, %v3427, 0
        %v3846 = vsel %vm1222, %v3511, 0
        %v3849 = vsel %vm1222, %v3516, 0
        %v3852 = vsel %vm1222, %v3600, 0
        %v3855 = vsel %vm1222, %v3605, 0
        %v3858 = vsel %vm1222, %v3689, 0
        %v3861 = vsel %vm1222, %v3694, 0
        %v3864 = vsel %vm1222, %v3778, 0
        %v3867 = vsel %vm1222, %v3783, 0
        %3869 = vmatprep.subr.mxu0 0.0
        %3870 = vmatpush1.msra.mxu0 0.0
        %3871 = vmatprep.subr.mxu0 0.0
        %3872 = vmatpush1.msra.mxu0 0.0
        %3873 = vmatprep.subr.mxu0 0.0
        %3874 = vmatpush1.msra.mxu0 0.0
        %3875 = vmatprep.subr.mxu0 0.0
        %3876 = vmatpush1.msra.mxu0 0.0
        %3877 = vmatprep.subr.mxu0 0.0
        %3878 = vmatpush1.msra.mxu0 0.0
        %3879 = vmatprep.subr.mxu0 0.0
        %3880 = vmatpush1.msra.mxu0 0.0
        %3881 = vmatprep.subr.mxu0 0.0
        %3882 = vmatpush1.msra.mxu0 0.0
        %3883 = vmatprep.subr.mxu0 0.0
        %3884 = vmatpush1.msra.mxu0 0.0
        %3885 = vmatprep.subr.mxu0 0.0
        %3886 = vmatpush1.msra.mxu0 0.0
        %3887 = vmatprep.subr.mxu0 0.0
        %3888 = vmatpush1.msra.mxu0 0.0
        %3889 = vmatprep.subr.mxu0 0.0
        %3890 = vmatpush1.msra.mxu0 0.0
        %3891 = vmatprep.subr.mxu0 0.0
        %3892 = vmatpush1.msra.mxu0 0.0
        %3893 = vmatprep.subr.mxu0 0.0
        %3894 = vmatpush1.msra.mxu0 %v3789
        %3895 = vmatprep.subr.mxu0 0.0
        %3896 = vmatpush1.msra.mxu0 %v3788
        %3897 = vmatprep.subr.mxu0 0.0
        %3898 = vmatpush1.msra.mxu0 %v3787
        %3899 = vmatprep.subr.mxu0 0.0
        %3900 = vmatpush1.msra.mxu0 %v3786
        %3901 = vmatprep.subr.mxu0 0.0
        %3902 = vmatpush2.msra.mxu0 0.0
        %3903 = vmatprep.subr.mxu0 0.0
        %3904 = vmatpush2.msra.mxu0 0.0
        %3905 = vmatprep.subr.mxu0 0.0
        %3906 = vmatpush2.msra.mxu0 0.0
        %3907 = vmatprep.subr.mxu0 0.0
        %3908 = vmatpush2.msra.mxu0 0.0
        %3909 = vmatprep.subr.mxu0 0.0
        %3910 = vmatpush2.msra.mxu0 0.0
        %3911 = vmatprep.subr.mxu0 0.0
        %3912 = vmatpush2.msra.mxu0 0.0
        %3913 = vmatprep.subr.mxu0 0.0
        %3914 = vmatpush2.msra.mxu0 0.0
        %3915 = vmatprep.subr.mxu0 0.0
        %3916 = vmatpush2.msra.mxu0 0.0
        %3917 = vmatprep.subr.mxu0 0.0
        %3918 = vmatpush2.msra.mxu0 0.0
        %3919 = vmatprep.subr.mxu0 0.0
        %3920 = vmatpush2.msra.mxu0 0.0
        %3921 = vmatprep.subr.mxu0 0.0
        %3922 = vmatpush2.msra.mxu0 0.0
        %3923 = vmatprep.subr.mxu0 0.0
        %3924 = vmatpush2.msra.mxu0 0.0
        %3925 = vmatprep.subr.mxu0 0.0
        %3926 = vmatpush2.msra.mxu0 0.0
        %3927 = vmatprep.subr.mxu0 0.0
        %3928 = vmatpush2.msra.mxu0 0.0
        %3929 = vmatprep.subr.mxu0 0.0
        %3930 = vmatpush2.msra.mxu0 0.0
        %3931 = vmatprep.subr.mxu0 0.0
        %3932 = vmatpush2.msra.mxu0 0.0
        %3933 = vmatprep.mubr.f32.mxu0 0.0
        %3934 = vmatmul.mubr.f32.gmra.mxu0 %v3798
        %v3935 = vpop.f32.mrf.mxu0
        %v3936 = vadd.f32 %v3795, %v3935
        %v3937 = vpop.f32.mrf.mxu0
        %3938 = vmatprep.mubr.f32.mxu0 0.0
        %3939 = vmatmul.mubr.f32.gmra.mxu0 %v3801
        %v3940 = vpop.f32.mrf.mxu0
        %v3941 = vadd.f32 %v3795, %v3940
        %v3942 = vpop.f32.mrf.mxu0
        %3943 = vmatprep.mubr.f32.mxu0 0.0
        %3944 = vmatmul.mubr.f32.gmra.mxu0 %v3804
        %v3945 = vpop.f32.mrf.mxu0
        %v3946 = vadd.f32 %v3795, %v3945
        %v3947 = vpop.f32.mrf.mxu0
        %3948 = vmatprep.mubr.f32.mxu0 0.0
        %3949 = vmatmul.mubr.f32.gmra.mxu0 %v3807
        %v3950 = vpop.f32.mrf.mxu0
        %v3951 = vadd.f32 %v3795, %v3950
        %v3952 = vpop.f32.mrf.mxu0
        %3953 = vmatprep.mubr.f32.mxu0 0.0
        %3954 = vmatmul.mubr.f32.gmra.mxu0 %v3810
        %v3955 = vpop.f32.mrf.mxu0
        %v3956 = vadd.f32 %v3795, %v3955
        %v3957 = vpop.f32.mrf.mxu0
        %3958 = vmatprep.mubr.f32.mxu0 0.0
        %3959 = vmatmul.mubr.f32.gmra.mxu0 %v3813
        %v3960 = vpop.f32.mrf.mxu0
        %v3961 = vadd.f32 %v3795, %v3960
        %v3962 = vpop.f32.mrf.mxu0
        %3963 = vmatprep.mubr.f32.mxu0 0.0
        %3964 = vmatmul.mubr.f32.gmra.mxu0 %v3816
        %v3965 = vpop.f32.mrf.mxu0
        %v3966 = vadd.f32 %v3795, %v3965
        %v3967 = vpop.f32.mrf.mxu0
        %3968 = vmatprep.mubr.f32.mxu0 0.0
        %3969 = vmatmul.mubr.f32.gmra.mxu0 %v3819
        %v3970 = vpop.f32.mrf.mxu0
        %v3971 = vadd.f32 %v3795, %v3970
        %v3972 = vpop.f32.mrf.mxu0
        %3973 = vmatprep.mubr.f32.mxu0 0.0
        %3974 = vmatmul.mubr.f32.gmra.mxu0 %v3822
        %v3975 = vpop.f32.mrf.mxu0
        %v3976 = vadd.f32 %v3795, %v3975
        %v3977 = vpop.f32.mrf.mxu0
        %3978 = vmatprep.mubr.f32.mxu0 0.0
        %3979 = vmatmul.mubr.f32.gmra.mxu0 %v3825
        %v3980 = vpop.f32.mrf.mxu0
        %v3981 = vadd.f32 %v3795, %v3980
        %v3982 = vpop.f32.mrf.mxu0
        %3983 = vmatprep.mubr.f32.mxu0 0.0
        %3984 = vmatmul.mubr.f32.gmra.mxu0 %v3828
        %v3985 = vpop.f32.mrf.mxu0
        %v3986 = vadd.f32 %v3795, %v3985
        %v3987 = vpop.f32.mrf.mxu0
        %3988 = vmatprep.mubr.f32.mxu0 0.0
        %3989 = vmatmul.mubr.f32.gmra.mxu0 %v3831
        %v3990 = vpop.f32.mrf.mxu0
        %v3991 = vadd.f32 %v3795, %v3990
        %v3992 = vpop.f32.mrf.mxu0
        %3993 = vmatprep.mubr.f32.mxu0 0.0
        %3994 = vmatmul.mubr.f32.gmra.mxu0 %v3834
        %v3995 = vpop.f32.mrf.mxu0
        %v3996 = vadd.f32 %v3795, %v3995
        %v3997 = vpop.f32.mrf.mxu0
        %3998 = vmatprep.mubr.f32.mxu0 0.0
        %3999 = vmatmul.mubr.f32.gmra.mxu0 %v3837
        %v4000 = vpop.f32.mrf.mxu0
        %v4001 = vadd.f32 %v3795, %v4000
        %v4002 = vpop.f32.mrf.mxu0
        %4003 = vmatprep.mubr.f32.mxu0 0.0
        %4004 = vmatmul.mubr.f32.gmra.mxu0 %v3840
        %v4005 = vpop.f32.mrf.mxu0
        %v4006 = vadd.f32 %v3795, %v4005
        %v4007 = vpop.f32.mrf.mxu0
        %4008 = vmatprep.mubr.f32.mxu0 0.0
        %4009 = vmatmul.mubr.f32.gmra.mxu0 %v3843
        %v4010 = vpop.f32.mrf.mxu0
        %v4011 = vadd.f32 %v3795, %v4010
        %v4012 = vpop.f32.mrf.mxu0
        %4013 = vmatprep.mubr.f32.mxu0 0.0
        %4014 = vmatmul.mubr.f32.gmra.mxu0 %v3846
        %v4015 = vpop.f32.mrf.mxu0
        %v4016 = vadd.f32 %v3795, %v4015
        %v4017 = vpop.f32.mrf.mxu0
        %4018 = vmatprep.mubr.f32.mxu0 0.0
        %4019 = vmatmul.mubr.f32.gmra.mxu0 %v3849
        %v4020 = vpop.f32.mrf.mxu0
        %v4021 = vadd.f32 %v3795, %v4020
        %v4022 = vpop.f32.mrf.mxu0
        %4023 = vmatprep.mubr.f32.mxu0 0.0
        %4024 = vmatmul.mubr.f32.gmra.mxu0 %v3852
        %v4025 = vpop.f32.mrf.mxu0
        %v4026 = vadd.f32 %v3795, %v4025
        %v4027 = vpop.f32.mrf.mxu0
        %4028 = vmatprep.mubr.f32.mxu0 0.0
        %4029 = vmatmul.mubr.f32.gmra.mxu0 %v3855
        %v4030 = vpop.f32.mrf.mxu0
        %v4031 = vadd.f32 %v3795, %v4030
        %v4032 = vpop.f32.mrf.mxu0
        %4033 = vmatprep.mubr.f32.mxu0 0.0
        %4034 = vmatmul.mubr.f32.gmra.mxu0 %v3858
        %v4035 = vpop.f32.mrf.mxu0
        %v4036 = vadd.f32 %v3795, %v4035
        %v4037 = vpop.f32.mrf.mxu0
        %4038 = vmatprep.mubr.f32.mxu0 0.0
        %4039 = vmatmul.mubr.f32.gmra.mxu0 %v3861
        %v4040 = vpop.f32.mrf.mxu0
        %v4041 = vadd.f32 %v3795, %v4040
        %v4042 = vpop.f32.mrf.mxu0
        %4043 = vmatprep.mubr.f32.mxu0 0.0
        %4044 = vmatmul.mubr.f32.gmra.mxu0 %v3864
        %v4045 = vpop.f32.mrf.mxu0
        %v4046 = vadd.f32 %v3795, %v4045
        %v4047 = vpop.f32.mrf.mxu0
        %4048 = vmatprep.mubr.f32.mxu0 0.0
        %4049 = vmatmul.mubr.f32.gmra.mxu0 %v3867
        %v4050 = vpop.f32.mrf.mxu0
        %v4051 = vadd.f32 %v3795, %v4050
        %v4052 = vpop.f32.mrf.mxu0
        %4053 = vdwg.mxu0
        %v4054 = vadd.f32 %v3936, %v487
        %v4055 = vadd.f32 %v3941, %v488
        %v4056 = vadd.f32 %v3946, %v489
        %v4057 = vadd.f32 %v3951, %v490
        %v4058 = vadd.f32 %v3956, %v491
        %v4059 = vadd.f32 %v3961, %v492
        %v4060 = vadd.f32 %v3966, %v493
        %v4061 = vadd.f32 %v3971, %v494
        %v4062 = vadd.f32 %v3976, %v495
        %v4063 = vadd.f32 %v3981, %v496
        %v4064 = vadd.f32 %v3986, %v497
        %v4065 = vadd.f32 %v3991, %v498
        %v4066 = vadd.f32 %v3996, %v499
        %v4067 = vadd.f32 %v4001, %v500
        %v4068 = vadd.f32 %v4006, %v501
        %v4069 = vadd.f32 %v4011, %v502
        %v4070 = vadd.f32 %v4016, %v503
        %v4071 = vadd.f32 %v4021, %v504
        %v4072 = vadd.f32 %v4026, %v505
        %v4073 = vadd.f32 %v4031, %v506
        %v4074 = vadd.f32 %v4036, %v507
        %v4075 = vadd.f32 %v4041, %v508
        %v4076 = vadd.f32 %v4046, %v509
        %v4077 = vadd.f32 %v4051, %v510
        %v4078 = vsel %vm574, %v4054, 0.0
        %4079 = vadd.xlane.f32.xlu0 %v4078
        %v4080 = vpop.xlane.xlu0 %4079
        %v4081 = vsel %vm574, %v4055, 0.0
        %4082 = vadd.xlane.f32.xlu0 %v4081
        %v4083 = vpop.xlane.xlu0 %4082
        %v4084 = vsel %vm574, %v4056, 0.0
        %4085 = vadd.xlane.f32.xlu0 %v4084
        %v4086 = vpop.xlane.xlu0 %4085
        %v4087 = vsel %vm574, %v4057, 0.0
        %4088 = vadd.xlane.f32.xlu0 %v4087
        %v4089 = vpop.xlane.xlu0 %4088
        %v4090 = vsel %vm574, %v4058, 0.0
        %4091 = vadd.xlane.f32.xlu0 %v4090
        %v4092 = vpop.xlane.xlu0 %4091
        %v4093 = vsel %vm574, %v4059, 0.0
        %4094 = vadd.xlane.f32.xlu0 %v4093
        %v4095 = vpop.xlane.xlu0 %4094
        %v4096 = vsel %vm574, %v4060, 0.0
        %4097 = vadd.xlane.f32.xlu0 %v4096
        %v4098 = vpop.xlane.xlu0 %4097
        %v4099 = vsel %vm574, %v4061, 0.0
        %4100 = vadd.xlane.f32.xlu0 %v4099
        %v4101 = vpop.xlane.xlu0 %4100
        %v4102 = vsel %vm574, %v4062, 0.0
        %4103 = vadd.xlane.f32.xlu0 %v4102
        %v4104 = vpop.xlane.xlu0 %4103
        %v4105 = vsel %vm574, %v4063, 0.0
        %4106 = vadd.xlane.f32.xlu0 %v4105
        %v4107 = vpop.xlane.xlu0 %4106
        %v4108 = vsel %vm574, %v4064, 0.0
        %4109 = vadd.xlane.f32.xlu0 %v4108
        %v4110 = vpop.xlane.xlu0 %4109
        %v4111 = vsel %vm574, %v4065, 0.0
        %4112 = vadd.xlane.f32.xlu0 %v4111
        %v4113 = vpop.xlane.xlu0 %4112
        %v4114 = vsel %vm574, %v4066, 0.0
        %4115 = vadd.xlane.f32.xlu0 %v4114
        %v4116 = vpop.xlane.xlu0 %4115
        %v4117 = vsel %vm574, %v4067, 0.0
        %4118 = vadd.xlane.f32.xlu0 %v4117
        %v4119 = vpop.xlane.xlu0 %4118
        %v4120 = vsel %vm574, %v4068, 0.0
        %4121 = vadd.xlane.f32.xlu0 %v4120
        %v4122 = vpop.xlane.xlu0 %4121
        %v4123 = vsel %vm574, %v4069, 0.0
        %4124 = vadd.xlane.f32.xlu0 %v4123
        %v4125 = vpop.xlane.xlu0 %4124
        %v4126 = vsel %vm574, %v4070, 0.0
        %4127 = vadd.xlane.f32.xlu0 %v4126
        %v4128 = vpop.xlane.xlu0 %4127
        %v4129 = vsel %vm574, %v4071, 0.0
        %4130 = vadd.xlane.f32.xlu0 %v4129
        %v4131 = vpop.xlane.xlu0 %4130
        %v4132 = vsel %vm574, %v4072, 0.0
        %4133 = vadd.xlane.f32.xlu0 %v4132
        %v4134 = vpop.xlane.xlu0 %4133
        %v4135 = vsel %vm574, %v4073, 0.0
        %4136 = vadd.xlane.f32.xlu0 %v4135
        %v4137 = vpop.xlane.xlu0 %4136
        %v4138 = vsel %vm574, %v4074, 0.0
        %4139 = vadd.xlane.f32.xlu0 %v4138
        %v4140 = vpop.xlane.xlu0 %4139
        %v4141 = vsel %vm574, %v4075, 0.0
        %4142 = vadd.xlane.f32.xlu0 %v4141
        %v4143 = vpop.xlane.xlu0 %4142
        %v4144 = vsel %vm574, %v4076, 0.0
        %4145 = vadd.xlane.f32.xlu0 %v4144
        %v4146 = vpop.xlane.xlu0 %4145
        %v4147 = vsel %vm574, %v4077, 0.0
        %4148 = vadd.xlane.f32.xlu0 %v4147
        %v4149 = vpop.xlane.xlu0 %4148
        %v4150 = vrcp.pop 64.0
        %v4151 = vmul.f32 %v4080, %v4150
        %v4152 = vmul.f32 %v4083, %v4150
        %v4153 = vmul.f32 %v4086, %v4150
        %v4154 = vmul.f32 %v4089, %v4150
        %v4155 = vmul.f32 %v4092, %v4150
        %v4156 = vmul.f32 %v4095, %v4150
        %v4157 = vmul.f32 %v4098, %v4150
        %v4158 = vmul.f32 %v4101, %v4150
        %v4159 = vmul.f32 %v4104, %v4150
        %v4160 = vmul.f32 %v4107, %v4150
        %v4161 = vmul.f32 %v4110, %v4150
        %v4162 = vmul.f32 %v4113, %v4150
        %v4163 = vmul.f32 %v4116, %v4150
        %v4164 = vmul.f32 %v4119, %v4150
        %v4165 = vmul.f32 %v4122, %v4150
        %v4166 = vmul.f32 %v4125, %v4150
        %v4167 = vmul.f32 %v4128, %v4150
        %v4168 = vmul.f32 %v4131, %v4150
        %v4169 = vmul.f32 %v4134, %v4150
        %v4170 = vmul.f32 %v4137, %v4150
        %v4171 = vmul.f32 %v4140, %v4150
        %v4172 = vmul.f32 %v4143, %v4150
        %v4173 = vmul.f32 %v4146, %v4150
        %v4174 = vmul.f32 %v4149, %v4150
        %v4175 = vsub.f32 %v4054, %v4151
        %v4176 = vsub.f32 %v4055, %v4152
        %v4177 = vsub.f32 %v4056, %v4153
        %v4178 = vsub.f32 %v4057, %v4154
        %v4179 = vsub.f32 %v4058, %v4155
        %v4180 = vsub.f32 %v4059, %v4156
        %v4181 = vsub.f32 %v4060, %v4157
        %v4182 = vsub.f32 %v4061, %v4158
        %v4183 = vsub.f32 %v4062, %v4159
        %v4184 = vsub.f32 %v4063, %v4160
        %v4185 = vsub.f32 %v4064, %v4161
        %v4186 = vsub.f32 %v4065, %v4162
        %v4187 = vsub.f32 %v4066, %v4163
        %v4188 = vsub.f32 %v4067, %v4164
        %v4189 = vsub.f32 %v4068, %v4165
        %v4190 = vsub.f32 %v4069, %v4166
        %v4191 = vsub.f32 %v4070, %v4167
        %v4192 = vsub.f32 %v4071, %v4168
        %v4193 = vsub.f32 %v4072, %v4169
        %v4194 = vsub.f32 %v4073, %v4170
        %v4195 = vsub.f32 %v4074, %v4171
        %v4196 = vsub.f32 %v4075, %v4172
        %v4197 = vsub.f32 %v4076, %v4173
        %v4198 = vsub.f32 %v4077, %v4174
        %v4199 = vmul.f32 %v4175, %v4175
        %v4200 = vmul.f32 %v4176, %v4176
        %v4201 = vmul.f32 %v4177, %v4177
        %v4202 = vmul.f32 %v4178, %v4178
        %v4203 = vmul.f32 %v4179, %v4179
        %v4204 = vmul.f32 %v4180, %v4180
        %v4205 = vmul.f32 %v4181, %v4181
        %v4206 = vmul.f32 %v4182, %v4182
        %v4207 = vmul.f32 %v4183, %v4183
        %v4208 = vmul.f32 %v4184, %v4184
        %v4209 = vmul.f32 %v4185, %v4185
        %v4210 = vmul.f32 %v4186, %v4186
        %v4211 = vmul.f32 %v4187, %v4187
        %v4212 = vmul.f32 %v4188, %v4188
        %v4213 = vmul.f32 %v4189, %v4189
        %v4214 = vmul.f32 %v4190, %v4190
        %v4215 = vmul.f32 %v4191, %v4191
        %v4216 = vmul.f32 %v4192, %v4192
        %v4217 = vmul.f32 %v4193, %v4193
        %v4218 = vmul.f32 %v4194, %v4194
        %v4219 = vmul.f32 %v4195, %v4195
        %v4220 = vmul.f32 %v4196, %v4196
        %v4221 = vmul.f32 %v4197, %v4197
        %v4222 = vmul.f32 %v4198, %v4198
        %v4223 = vsel %vm574, %v4199, 0.0
        %4224 = vadd.xlane.f32.xlu0 %v4223
        %v4225 = vpop.xlane.xlu0 %4224
        %v4226 = vsel %vm574, %v4200, 0.0
        %4227 = vadd.xlane.f32.xlu0 %v4226
        %v4228 = vpop.xlane.xlu0 %4227
        %v4229 = vsel %vm574, %v4201, 0.0
        %4230 = vadd.xlane.f32.xlu0 %v4229
        %v4231 = vpop.xlane.xlu0 %4230
        %v4232 = vsel %vm574, %v4202, 0.0
        %4233 = vadd.xlane.f32.xlu0 %v4232
        %v4234 = vpop.xlane.xlu0 %4233
        %v4235 = vsel %vm574, %v4203, 0.0
        %4236 = vadd.xlane.f32.xlu0 %v4235
        %v4237 = vpop.xlane.xlu0 %4236
        %v4238 = vsel %vm574, %v4204, 0.0
        %4239 = vadd.xlane.f32.xlu0 %v4238
        %v4240 = vpop.xlane.xlu0 %4239
        %v4241 = vsel %vm574, %v4205, 0.0
        %4242 = vadd.xlane.f32.xlu0 %v4241
        %v4243 = vpop.xlane.xlu0 %4242
        %v4244 = vsel %vm574, %v4206, 0.0
        %4245 = vadd.xlane.f32.xlu0 %v4244
        %v4246 = vpop.xlane.xlu0 %4245
        %v4247 = vsel %vm574, %v4207, 0.0
        %4248 = vadd.xlane.f32.xlu0 %v4247
        %v4249 = vpop.xlane.xlu0 %4248
        %v4250 = vsel %vm574, %v4208, 0.0
        %4251 = vadd.xlane.f32.xlu0 %v4250
        %v4252 = vpop.xlane.xlu0 %4251
        %v4253 = vsel %vm574, %v4209, 0.0
        %4254 = vadd.xlane.f32.xlu0 %v4253
        %v4255 = vpop.xlane.xlu0 %4254
        %v4256 = vsel %vm574, %v4210, 0.0
        %4257 = vadd.xlane.f32.xlu0 %v4256
        %v4258 = vpop.xlane.xlu0 %4257
        %v4259 = vsel %vm574, %v4211, 0.0
        %4260 = vadd.xlane.f32.xlu0 %v4259
        %v4261 = vpop.xlane.xlu0 %4260
        %v4262 = vsel %vm574, %v4212, 0.0
        %4263 = vadd.xlane.f32.xlu0 %v4262
        %v4264 = vpop.xlane.xlu0 %4263
        %v4265 = vsel %vm574, %v4213, 0.0
        %4266 = vadd.xlane.f32.xlu0 %v4265
        %v4267 = vpop.xlane.xlu0 %4266
        %v4268 = vsel %vm574, %v4214, 0.0
        %4269 = vadd.xlane.f32.xlu0 %v4268
        %v4270 = vpop.xlane.xlu0 %4269
        %v4271 = vsel %vm574, %v4215, 0.0
        %4272 = vadd.xlane.f32.xlu0 %v4271
        %v4273 = vpop.xlane.xlu0 %4272
        %v4274 = vsel %vm574, %v4216, 0.0
        %4275 = vadd.xlane.f32.xlu0 %v4274
        %v4276 = vpop.xlane.xlu0 %4275
        %v4277 = vsel %vm574, %v4217, 0.0
        %4278 = vadd.xlane.f32.xlu0 %v4277
        %v4279 = vpop.xlane.xlu0 %4278
        %v4280 = vsel %vm574, %v4218, 0.0
        %4281 = vadd.xlane.f32.xlu0 %v4280
        %v4282 = vpop.xlane.xlu0 %4281
        %v4283 = vsel %vm574, %v4219, 0.0
        %4284 = vadd.xlane.f32.xlu0 %v4283
        %v4285 = vpop.xlane.xlu0 %4284
        %v4286 = vsel %vm574, %v4220, 0.0
        %4287 = vadd.xlane.f32.xlu0 %v4286
        %v4288 = vpop.xlane.xlu0 %4287
        %v4289 = vsel %vm574, %v4221, 0.0
        %4290 = vadd.xlane.f32.xlu0 %v4289
        %v4291 = vpop.xlane.xlu0 %4290
        %v4292 = vsel %vm574, %v4222, 0.0
        %4293 = vadd.xlane.f32.xlu0 %v4292
        %v4294 = vpop.xlane.xlu0 %4293
        %v4295 = vmul.f32 %v4225, %v4150
        %v4296 = vmul.f32 %v4228, %v4150
        %v4297 = vmul.f32 %v4231, %v4150
        %v4298 = vmul.f32 %v4234, %v4150
        %v4299 = vmul.f32 %v4237, %v4150
        %v4300 = vmul.f32 %v4240, %v4150
        %v4301 = vmul.f32 %v4243, %v4150
        %v4302 = vmul.f32 %v4246, %v4150
        %v4303 = vmul.f32 %v4249, %v4150
        %v4304 = vmul.f32 %v4252, %v4150
        %v4305 = vmul.f32 %v4255, %v4150
        %v4306 = vmul.f32 %v4258, %v4150
        %v4307 = vmul.f32 %v4261, %v4150
        %v4308 = vmul.f32 %v4264, %v4150
        %v4309 = vmul.f32 %v4267, %v4150
        %v4310 = vmul.f32 %v4270, %v4150
        %v4311 = vmul.f32 %v4273, %v4150
        %v4312 = vmul.f32 %v4276, %v4150
        %v4313 = vmul.f32 %v4279, %v4150
        %v4314 = vmul.f32 %v4282, %v4150
        %v4315 = vmul.f32 %v4285, %v4150
        %v4316 = vmul.f32 %v4288, %v4150
        %v4317 = vmul.f32 %v4291, %v4150
        %v4318 = vmul.f32 %v4294, %v4150
        %v4319 = vadd.f32 %v4295, 1e-05
        %v4320 = vadd.f32 %v4296, 1e-05
        %v4321 = vadd.f32 %v4297, 1e-05
        %v4322 = vadd.f32 %v4298, 1e-05
        %v4323 = vadd.f32 %v4299, 1e-05
        %v4324 = vadd.f32 %v4300, 1e-05
        %v4325 = vadd.f32 %v4301, 1e-05
        %v4326 = vadd.f32 %v4302, 1e-05
        %v4327 = vadd.f32 %v4303, 1e-05
        %v4328 = vadd.f32 %v4304, 1e-05
        %v4329 = vadd.f32 %v4305, 1e-05
        %v4330 = vadd.f32 %v4306, 1e-05
        %v4331 = vadd.f32 %v4307, 1e-05
        %v4332 = vadd.f32 %v4308, 1e-05
        %v4333 = vadd.f32 %v4309, 1e-05
        %v4334 = vadd.f32 %v4310, 1e-05
        %v4335 = vadd.f32 %v4311, 1e-05
        %v4336 = vadd.f32 %v4312, 1e-05
        %v4337 = vadd.f32 %v4313, 1e-05
        %v4338 = vadd.f32 %v4314, 1e-05
        %v4339 = vadd.f32 %v4315, 1e-05
        %v4340 = vadd.f32 %v4316, 1e-05
        %v4341 = vadd.f32 %v4317, 1e-05
        %v4342 = vadd.f32 %v4318, 1e-05
        %v4343 = vrsqrt.pop %v4319
        %v4344 = vrsqrt.pop %v4320
        %v4345 = vrsqrt.pop %v4321
        %v4346 = vrsqrt.pop %v4322
        %v4347 = vrsqrt.pop %v4323
        %v4348 = vrsqrt.pop %v4324
        %v4349 = vrsqrt.pop %v4325
        %v4350 = vrsqrt.pop %v4326
        %v4351 = vrsqrt.pop %v4327
        %v4352 = vrsqrt.pop %v4328
        %v4353 = vrsqrt.pop %v4329
        %v4354 = vrsqrt.pop %v4330
        %v4355 = vrsqrt.pop %v4331
        %v4356 = vrsqrt.pop %v4332
        %v4357 = vrsqrt.pop %v4333
        %v4358 = vrsqrt.pop %v4334
        %v4359 = vrsqrt.pop %v4335
        %v4360 = vrsqrt.pop %v4336
        %v4361 = vrsqrt.pop %v4337
        %v4362 = vrsqrt.pop %v4338
        %v4363 = vrsqrt.pop %v4339
        %v4364 = vrsqrt.pop %v4340
        %v4365 = vrsqrt.pop %v4341
        %v4366 = vrsqrt.pop %v4342
        %v4367 = vmul.f32 %v4175, %v4343
        %v4368 = vmul.f32 %v4176, %v4344
        %v4369 = vmul.f32 %v4177, %v4345
        %v4370 = vmul.f32 %v4178, %v4346
        %v4371 = vmul.f32 %v4179, %v4347
        %v4372 = vmul.f32 %v4180, %v4348
        %v4373 = vmul.f32 %v4181, %v4349
        %v4374 = vmul.f32 %v4182, %v4350
        %v4375 = vmul.f32 %v4183, %v4351
        %v4376 = vmul.f32 %v4184, %v4352
        %v4377 = vmul.f32 %v4185, %v4353
        %v4378 = vmul.f32 %v4186, %v4354
        %v4379 = vmul.f32 %v4187, %v4355
        %v4380 = vmul.f32 %v4188, %v4356
        %v4381 = vmul.f32 %v4189, %v4357
        %v4382 = vmul.f32 %v4190, %v4358
        %v4383 = vmul.f32 %v4191, %v4359
        %v4384 = vmul.f32 %v4192, %v4360
        %v4385 = vmul.f32 %v4193, %v4361
        %v4386 = vmul.f32 %v4194, %v4362
        %v4387 = vmul.f32 %v4195, %v4363
        %v4388 = vmul.f32 %v4196, %v4364
        %v4389 = vmul.f32 %v4197, %v4365
        %v4390 = vmul.f32 %v4198, %v4366
        %v4391 = vld [vmem:[%s8] sm:$0x1]
        %v4393 = vlaneseq
        %v4394 = vshrl.u32 %v4393, 7
        %v4395 = vsub.s32 0, %v4394
        %v4396 = vrot.slane %v4391, %v4395
        %v4398 = vmul.f32 %v4367, %v4396
        %v4399 = vmul.f32 %v4368, %v4396
        %v4400 = vmul.f32 %v4369, %v4396
        %v4401 = vmul.f32 %v4370, %v4396
        %v4402 = vmul.f32 %v4371, %v4396
        %v4403 = vmul.f32 %v4372, %v4396
        %v4404 = vmul.f32 %v4373, %v4396
        %v4405 = vmul.f32 %v4374, %v4396
        %v4406 = vmul.f32 %v4375, %v4396
        %v4407 = vmul.f32 %v4376, %v4396
        %v4408 = vmul.f32 %v4377, %v4396
        %v4409 = vmul.f32 %v4378, %v4396
        %v4410 = vmul.f32 %v4379, %v4396
        %v4411 = vmul.f32 %v4380, %v4396
        %v4412 = vmul.f32 %v4381, %v4396
        %v4413 = vmul.f32 %v4382, %v4396
        %v4414 = vmul.f32 %v4383, %v4396
        %v4415 = vmul.f32 %v4384, %v4396
        %v4416 = vmul.f32 %v4385, %v4396
        %v4417 = vmul.f32 %v4386, %v4396
        %v4418 = vmul.f32 %v4387, %v4396
        %v4419 = vmul.f32 %v4388, %v4396
        %v4420 = vmul.f32 %v4389, %v4396
        %v4421 = vmul.f32 %v4390, %v4396
        %v4422 = vld [vmem:[%s9] sm:$0x1]
        %v4424 = vlaneseq
        %v4425 = vshrl.u32 %v4424, 7
        %v4426 = vsub.s32 0, %v4425
        %v4427 = vrot.slane %v4422, %v4426
        %v4429 = vadd.f32 %v4398, %v4427
        %v4430 = vadd.f32 %v4399, %v4427
        %v4431 = vadd.f32 %v4400, %v4427
        %v4432 = vadd.f32 %v4401, %v4427
        %v4433 = vadd.f32 %v4402, %v4427
        %v4434 = vadd.f32 %v4403, %v4427
        %v4435 = vadd.f32 %v4404, %v4427
        %v4436 = vadd.f32 %v4405, %v4427
        %v4437 = vadd.f32 %v4406, %v4427
        %v4438 = vadd.f32 %v4407, %v4427
        %v4439 = vadd.f32 %v4408, %v4427
        %v4440 = vadd.f32 %v4409, %v4427
        %v4441 = vadd.f32 %v4410, %v4427
        %v4442 = vadd.f32 %v4411, %v4427
        %v4443 = vadd.f32 %v4412, %v4427
        %v4444 = vadd.f32 %v4413, %v4427
        %v4445 = vadd.f32 %v4414, %v4427
        %v4446 = vadd.f32 %v4415, %v4427
        %v4447 = vadd.f32 %v4416, %v4427
        %v4448 = vadd.f32 %v4417, %v4427
        %v4449 = vadd.f32 %v4418, %v4427
        %v4450 = vadd.f32 %v4419, %v4427
        %v4451 = vadd.f32 %v4420, %v4427
        %v4452 = vadd.f32 %v4421, %v4427
        %4453 = vst.msk [vmem:[%s475] sm:$0xff] %vm574, %v4429
        %4454 = vst.msk [vmem:[%s475 + $0x8] sm:$0xff] %vm574, %v4430
        %4455 = vst.msk [vmem:[%s475 + $0x10] sm:$0xff] %vm574, %v4431
        %4456 = vst.msk [vmem:[%s475 + $0x18] sm:$0xff] %vm574, %v4432
        %4457 = vst.msk [vmem:[%s475 + $0x20] sm:$0xff] %vm574, %v4433
        %4458 = vst.msk [vmem:[%s475 + $0x28] sm:$0xff] %vm574, %v4434
        %4459 = vst.msk [vmem:[%s475 + $0x30] sm:$0xff] %vm574, %v4435
        %4460 = vst.msk [vmem:[%s475 + $0x38] sm:$0xff] %vm574, %v4436
        %4461 = vst.msk [vmem:[%s475 + $0x40] sm:$0xff] %vm574, %v4437
        %4462 = vst.msk [vmem:[%s475 + $0x48] sm:$0xff] %vm574, %v4438
        %4463 = vst.msk [vmem:[%s475 + $0x50] sm:$0xff] %vm574, %v4439
        %4464 = vst.msk [vmem:[%s475 + $0x58] sm:$0xff] %vm574, %v4440
        %4465 = vst.msk [vmem:[%s475 + $0x60] sm:$0xff] %vm574, %v4441
        %4466 = vst.msk [vmem:[%s475 + $0x68] sm:$0xff] %vm574, %v4442
        %4467 = vst.msk [vmem:[%s475 + $0x70] sm:$0xff] %vm574, %v4443
        %4468 = vst.msk [vmem:[%s475 + $0x78] sm:$0xff] %vm574, %v4444
        %4469 = vst.msk [vmem:[%s475 + $0x80] sm:$0xff] %vm574, %v4445
        %4470 = vst.msk [vmem:[%s475 + $0x88] sm:$0xff] %vm574, %v4446
        %4471 = vst.msk [vmem:[%s475 + $0x90] sm:$0xff] %vm574, %v4447
        %4472 = vst.msk [vmem:[%s475 + $0x98] sm:$0xff] %vm574, %v4448
        %4473 = vst.msk [vmem:[%s475 + $0xa0] sm:$0xff] %vm574, %v4449
        %4474 = vst.msk [vmem:[%s475 + $0xa8] sm:$0xff] %vm574, %v4450
        %4475 = vst.msk [vmem:[%s475 + $0xb0] sm:$0xff] %vm574, %v4451
        %4476 = vst.msk [vmem:[%s475 + $0xb8] sm:$0xff] %vm574, %v4452
        %s4477 = sand.u32 %s268, 1
        %s4478 = scalar_lea.sflag [#allocation4], %s4477
        %s4479 = sand.u32 %s268, 1
        %s4480 = smul.addr %s4479, 192
        %s4481 = scalar_lea.vmem [#allocation8], %s4480
        // Predicated region
        $region73: #{tpu_custom_call.1} parent=59 // pred_check
          %p4482 = pneg %p278
        $region74: #{tpu_custom_call.1} parent=59 // pred_check_branch
          %4484 = sbr.rel (%p4482) target = $region76
        $region75: #{tpu_custom_call.1} parent=59 // pred_region
          %s4485 = smul.u32 12, %s30
          %s4487 = ssub.s32 3072, 3072
          %4488 = vsyncadd %s4478, %s4487
          %s4489 = smul.addr %s4485, 2
          %s4490 = smul.addr %s4489, 128
          %s4491 = scalar_lea.hbm %s10, %s4490
          %s4492 = sshll.u32 %s4481, 4
          %s4493 = int_to_ptr.vmem [resolvable:$true] %s4492
          %4498 = dma.vmem_to_hbm [thread:$0]  %s4493, 3072, %s4491, %s4478, 128, 128, 8
        $region76: #{tpu_custom_call.1} parent=59 // pred_fallthru
          _
      $region60: #{tpu_custom_call.1} parent=5 // pred_fallthru
        _
      %p4499 = scmp.le.s32.totalorder 2, %s25
      // Predicated region
      $region77: #{tpu_custom_call.1} parent=5 // pred_check
        %p4500 = pneg %p4499
      $region78: #{tpu_custom_call.1} parent=5 // pred_check_branch
        %4502 = sbr.rel (%p4500) target = $region80
      $region79: #{tpu_custom_call.1} parent=5 // pred_region
        %s4503 = ssub.s32 %s25, 2
        // Predicated region
        $region81: #{tpu_custom_call.1} parent=79 // pred_check
          %p4504 = pneg %p284
        $region82: #{tpu_custom_call.1} parent=79 // pred_check_branch
          %4506 = sbr.rel (%p4504) target = $region84
        $region83: #{tpu_custom_call.1} parent=79 // pred_region
          %s4507 = sand.u32 %s269, 1
          %s4508 = scalar_lea.sflag [#allocation4], %s4507
          %s4509 = sand.u32 %s269, 1
          %s4510 = smul.addr %s4509, 192
          %s4511 = scalar_lea.vmem [#allocation8], %s4510
          %4512 = dma.done %s4508, 3072
        $region84: #{tpu_custom_call.1} parent=79 // pred_fallthru
          _
      $region80: #{tpu_custom_call.1} parent=5 // pred_fallthru
        _
    $region6: #{tpu_custom_call.1} parent=1 // loop_footer
      %s29 = sadd.s32 1, %s25
    $region7: #{tpu_custom_call.1} parent=1 // loop_footer_branch
      %24 = sbr.rel target = $region3
    $region8: #{tpu_custom_call.1} parent=1 // loop_exit
      _
    %4513 = vsyncpa [#allocation3], 1
    %s4514 = scalar_lea.sflag [#allocation3], 1
    %4515 = vsyncpa %s4514, 1
    %4516 = vsyncpa [#allocation6], 1
    %s4517 = scalar_lea.sflag [#allocation6], 1
    %4518 = vsyncpa %s4517, 1
    %4519 = vsyncpa [#allocation4], 1
    %s4520 = scalar_lea.sflag [#allocation4], 1
    %4521 = vsyncpa %s4520, 1

</llo_original>
